<compile_context>
chip_gen: v6e
topology: v6e:2x2x1
jax: 0.10.0
libtpu: 0.0.40
codegen_flags: <defaults>
</compile_context>

<pallas_src>
import functools
import math

import jax
import jax.numpy as jnp
from jax import lax
from jax.experimental import pallas as pl
from jax.experimental.pallas import tpu as pltpu


_T_CHUNK = 32    # timesteps per grid step; sweep up to 64-128 on v5e/v6e
_B_SHARD = 8     # batch rows per grid step (>= 8 sublanes)
_B_ALIGN = 8     # pad batch to a multiple of this
_H_ALIGN = 128   # pad hidden size to a lane-aligned multiple
_UNROLL = 8      # inner loop unroll factor (full unroll can spill vregs)


def _round_up(x, m):
    return -(-x // m) * m


def _lstm_recurrence_kernel(gx_ref, whh_ref, out_ref, h_ref, c_ref):
    """LSTM recurrence over one (batch-shard, T-timestep) chunk.

    gx_ref  : (T, Bs, 4H) bf16  precomputed x @ W_ih + (b_ih + b_hh), gate
                                order (i, f, o, g), each gate H_pad wide
    whh_ref : (H, 4H)     bf16  hidden->gates weights (permuted, transposed)
    out_ref : (T, Bs, H)        hidden-state outputs for this chunk
    h_ref   : (Bs, H) f32 VMEM scratch (persists across the chunk axis)
    c_ref   : (Bs, H) f32 VMEM scratch (persists across the chunk axis)
    """
    chunk = pl.program_id(1)  # time-chunk axis (reset per batch shard)

    @pl.when(chunk == 0)
    def _():
        h_ref[...] = jnp.zeros_like(h_ref)
        c_ref[...] = jnp.zeros_like(c_ref)

    H = h_ref.shape[-1]
    T = gx_ref.shape[0]
    # Load the weight block once per chunk so the RHS read is hoisted out of
    # the timestep loop (see TODO about explicit weight-stationary MXU use).
    w_hh = whh_ref[...]

    def step(t, carry):
        h_prev = h_ref[...]                                    # (Bs, H) f32
        # One MXU push per timestep; bf16 operands, f32 accumulation.
        gates = gx_ref[t].astype(jnp.float32) + jnp.dot(
            h_prev.astype(w_hh.dtype), w_hh,
            preferred_element_type=jnp.float32)                # (Bs, 4H) f32

        # Gate order (i, f, o, g): one contiguous sigmoid, one tanh.  Gate
        # math stays f32 (correct on v5e, which has no bf16 VPU/EUP).
        sig = jax.nn.sigmoid(gates[:, :3 * H])
        i_g = sig[:, 0 * H:1 * H]
        f_g = sig[:, 1 * H:2 * H]
        o_g = sig[:, 2 * H:3 * H]
        g_g = jnp.tanh(gates[:, 3 * H:4 * H])

        c_new = f_g * c_ref[...] + i_g * g_g
        h_new = o_g * jnp.tanh(c_new)

        c_ref[...] = c_new
        h_ref[...] = h_new
        out_ref[t] = h_new.astype(out_ref.dtype)
        return carry

    lax.fori_loop(0, T, step, 0, unroll=min(_UNROLL, T))


def lstm_recurrence_pallas(gates_x, w_hh_t, out_dtype, *,
                           t_chunk=_T_CHUNK, b_shard=_B_SHARD):
    """Run the serial LSTM recurrence over the full (padded) sequence.

    gates_x : (N, B_pad, 4H_pad) bf16  hoisted input projection (+ biases)
    w_hh_t  : (H_pad, 4H_pad)    bf16
    returns h_seq : (N, B_pad, H_pad) out_dtype
    """
    N, B, G4 = gates_x.shape
    H = w_hh_t.shape[0]
    assert G4 == 4 * H
    assert B % b_shard == 0

    T = min(t_chunk, N)
    n_chunks = -(-N // T)
    N_pad = n_chunks * T
    if N_pad != N:
        # Padding appends timesteps at the end: real outputs are unaffected
        # (h/c after the padded region are garbage, but never returned).
        gates_x = jnp.pad(gates_x, ((0, N_pad - N), (0, 0), (0, 0)))
    n_bshards = B // b_shard

    h_seq = pl.pallas_call(
        _lstm_recurrence_kernel,
        out_shape=jax.ShapeDtypeStruct((N_pad, B, H), out_dtype),
        grid=(n_bshards, n_chunks),
        in_specs=[
            pl.BlockSpec((T, b_shard, 4 * H), lambda b, i: (i, b, 0)),
            # Constant index_map: weight block is not re-DMA'd per grid step.
            pl.BlockSpec((H, 4 * H), lambda b, i: (0, 0)),
        ],
        out_specs=pl.BlockSpec((T, b_shard, H), lambda b, i: (i, b, 0)),
        scratch_shapes=[
            pltpu.VMEM((b_shard, H), jnp.float32),   # h state
            pltpu.VMEM((b_shard, H), jnp.float32),   # c state
        ],
        compiler_params=pltpu.CompilerParams(
            # Batch shards are independent (megacore-shardable); the time
            # chunk axis is the sequential recurrence.
            dimension_semantics=("parallel", "arbitrary"),
            vmem_limit_bytes=64 * 1024 * 1024,
        ),
    )(gates_x, w_hh_t)
    return h_seq[:N]


def init_seq2seq_blocks_params(key, n_block, n_input_channel, n_output_channel):
    """Raw PyTorch-layout nn.LSTM parameters (f32).

    weight_ih_l{l}: (4H, in), weight_hh_l{l}: (4H, H), biases: (4H,),
    gate order (i, f, g, o), init U(-1/sqrt(H), 1/sqrt(H)).
    """
    H = n_output_channel
    k = 1.0 / math.sqrt(H)
    params = []
    for layer in range(n_block):
        in_dim = n_input_channel if layer == 0 else H
        key, k1, k2, k3, k4 = jax.random.split(key, 5)
        params.append({
            "w_ih": jax.random.uniform(k1, (4 * H, in_dim), jnp.float32, -k, k),
            "w_hh": jax.random.uniform(k2, (4 * H, H), jnp.float32, -k, k),
            "b_ih": jax.random.uniform(k3, (4 * H,), jnp.float32, -k, k),
            "b_hh": jax.random.uniform(k4, (4 * H,), jnp.float32, -k, k),
        })
    return params


def prepare_params(raw_params, n_input_channel, n_output_channel,
                   h_align=_H_ALIGN):
    """Kernel-friendly parameters: gate order permuted (i,f,g,o)->(i,f,o,g),
    hidden size padded to a lane-aligned multiple, weights transposed + bf16,
    biases folded (f32)."""
    H = n_output_channel
    H_pad = _round_up(H, h_align)
    # PyTorch gate order i,f,g,o -> kernel order i,f,o,g.
    perm = jnp.concatenate([
        jnp.arange(0, H), jnp.arange(H, 2 * H),
        jnp.arange(3 * H, 4 * H), jnp.arange(2 * H, 3 * H)])

    def pad_gate_axis(w):  # (4H, X) -> (4H_pad, X), per-gate zero padding
        _, X = w.shape
        w = w.reshape(4, H, X)
        w = jnp.pad(w, ((0, 0), (0, H_pad - H), (0, 0)))
        return w.reshape(4 * H_pad, X)

    prepared = []
    for layer, p in enumerate(raw_params):
        in_dim = n_input_channel if layer == 0 else H
        in_pad = in_dim if layer == 0 else H_pad

        w_ih = pad_gate_axis(p["w_ih"][perm])                    # (4H_pad, in)
        w_ih = jnp.pad(w_ih, ((0, 0), (0, in_pad - in_dim)))     # (4H_pad, in_pad)
        w_hh = pad_gate_axis(p["w_hh"][perm])                    # (4H_pad, H)
        w_hh = jnp.pad(w_hh, ((0, 0), (0, H_pad - H)))           # (4H_pad, H_pad)
        bias = pad_gate_axis((p["b_ih"] + p["b_hh"])[perm][:, None])[:, 0]

        prepared.append({
            "w_ih_t": w_ih.T.astype(jnp.bfloat16),     # (in_pad, 4H_pad) bf16
            "w_hh_t": w_hh.T.astype(jnp.bfloat16),     # (H_pad, 4H_pad) bf16
            "bias": bias[None, :].astype(jnp.float32),  # (1, 4H_pad) f32
        })
    return prepared


@functools.partial(jax.jit, static_argnames=("n_output_channel",))
def seq2seq_blocks_forward(x_bcn, params, *, n_output_channel):
    """x_bcn: (B, C, N) -> logits (B, H, N)."""
    B, C, N = x_bcn.shape
    # (B, C, N) -> (N, B, C) time-major for the recurrent kernel.
    h = jnp.transpose(x_bcn, (2, 0, 1)).astype(jnp.float32)
    B_pad = _round_up(B, _B_ALIGN)
    if B_pad != B:
        h = jnp.pad(h, ((0, 0), (0, B_pad - B), (0, 0)))

    n_layers = len(params)
    for layer, p in enumerate(params):
        Ncur, Bcur, Cin = h.shape
        # Hoisted input projection: one dense bf16 MXU matmul, f32 accumulate,
        # fold biases in f32, then store gates_x bf16 for the kernel stream.
        gx = jnp.dot(h.reshape(Ncur * Bcur, Cin).astype(jnp.bfloat16),
                     p["w_ih_t"],
                     preferred_element_type=jnp.float32) + p["bias"]
        gx = gx.astype(jnp.bfloat16).reshape(Ncur, Bcur, -1)
        out_dtype = jnp.float32 if layer == n_layers - 1 else jnp.bfloat16
        h = lstm_recurrence_pallas(gx, p["w_hh_t"], out_dtype)

    # (N, B_pad, H_pad) -> (B, H, N), dropping batch/hidden padding.
    out = jnp.transpose(h, (1, 2, 0))
    return out[:B, :n_output_channel, :]


def _reference_forward_f32(x_bcn, raw_params):
    """Pure-f32 JAX reference mirroring PyTorch nn.LSTM exactly (no bf16,
    no padding, PyTorch gate order).  Detects drift from the true baseline."""
    h_seq = jnp.transpose(x_bcn, (2, 0, 1)).astype(jnp.float32)  # (N, B, C)
    for p in raw_params:
        w_ih, w_hh = p["w_ih"], p["w_hh"]
        b = p["b_ih"] + p["b_hh"]
        H = w_hh.shape[1]
        B = h_seq.shape[1]

        def step(carry, x_t, w_ih=w_ih, w_hh=w_hh, b=b, H=H):
            h_prev, c_prev = carry
            gates = x_t @ w_ih.T + h_prev @ w_hh.T + b
            i_g = jax.nn.sigmoid(gates[:, 0 * H:1 * H])
            f_g = jax.nn.sigmoid(gates[:, 1 * H:2 * H])
            g_g = jnp.tanh(gates[:, 2 * H:3 * H])
            o_g = jax.nn.sigmoid(gates[:, 3 * H:4 * H])
            c_new = f_g * c_prev + i_g * g_g
            h_new = o_g * jnp.tanh(c_new)
            return (h_new, c_new), h_new

        init = (jnp.zeros((B, H), jnp.float32), jnp.zeros((B, H), jnp.float32))
        _, h_seq = lax.scan(step, init, h_seq)
    return jnp.transpose(h_seq, (1, 2, 0))


if __name__ == "__main__":
    # Small shapes: B=2, C=4 input channels, N=8 sequence length,
    # H=32 output channels, n_block=2 stacked LSTM layers.
    B, C, N, H, n_block = 2, 4, 8, 32, 2

    key = jax.random.PRNGKey(0)
    key, xk, pk = jax.random.split(key, 3)
    x = jax.random.normal(xk, (B, C, N), dtype=jnp.float32)
    raw_params = init_seq2seq_blocks_params(pk, n_block, C, H)
    params = prepare_params(raw_params, C, H)

    out = seq2seq_blocks_forward(x, params, n_output_channel=H)
    out = jax.block_until_ready(out)
    assert out.shape == (B, H, N), out.shape

    # Compare against a pure-f32 PyTorch-equivalent reference.  Tolerance
    # covers the kernel's bf16 matmul operands / bf16 gates_x storage; at
    # these shapes the observed error is ~1e-2 worst case.
    ref = _reference_forward_f32(x, raw_params)
    max_err = float(jnp.max(jnp.abs(out.astype(jnp.float32) - ref)))
    assert max_err < 5e-2, max_err

    print("KERNEL_OK")
</pallas_src>

<mosaic_0001>
module attributes {stable_mosaic.version = 11 : i64} {
  func.func @_lstm_recurrence_kernel(%arg0: i32, %arg1: i32, %arg2: memref<8x8x512xbf16, #tpu.memory_space<vmem>>, %arg3: memref<128x512xbf16, #tpu.memory_space<vmem>>, %arg4: memref<8x8x128xbf16, #tpu.memory_space<vmem>>, %arg5: memref<8x128xf32, #tpu.memory_space<vmem>>, %arg6: memref<8x128xf32, #tpu.memory_space<vmem>>) attributes {dimension_semantics = [#tpu.dimension_semantics<parallel>, #tpu.dimension_semantics<arbitrary>], iteration_bounds = array<i64: 1, 1>, scalar_prefetch = 0 : i64, scratch_operands = 2 : i64, tpu.core_type = #tpu.core_type<tc>, window_params = [{transform_indices = @transform_0, window_bounds = array<i64: 8, 8, 512>}, {pipeline_mode = #tpu.pipeline_mode<synchronous>, transform_indices = @transform_1, window_bounds = array<i64: 128, 512>}, {transform_indices = @transform_2, window_bounds = array<i64: 8, 8, 128>}]} {
    %c0_i32 = arith.constant 0 : i32
    %0 = arith.cmpi eq, %arg1, %c0_i32 : i32
    %1 = arith.extui %0 : i1 to i32
    %c0_i32_0 = arith.constant 0 : i32
    %2 = arith.cmpi ne, %1, %c0_i32_0 : i32
    scf.if %2 {
      %cst_114 = arith.constant 0.000000e+00 : f32
      %260 = vector.broadcast %cst_114 : f32 to vector<8x128xf32>
      %c0_115 = arith.constant 0 : index
      %c0_116 = arith.constant 0 : index
      %261 = vector.load %arg5[%c0_115, %c0_116] : memref<8x128xf32, #tpu.memory_space<vmem>>, vector<8x128xf32>
      tpu.vector_store %arg5[%c0_115, %c0_116], %260 {strides = array<i32>} : memref<8x128xf32, #tpu.memory_space<vmem>>, vector<8x128xf32>,
      %cst_117 = arith.constant 0.000000e+00 : f32
      %262 = vector.broadcast %cst_117 : f32 to vector<8x128xf32>
      %c0_118 = arith.constant 0 : index
      %c0_119 = arith.constant 0 : index
      %263 = vector.load %arg6[%c0_118, %c0_119] : memref<8x128xf32, #tpu.memory_space<vmem>>, vector<8x128xf32>
      tpu.vector_store %arg6[%c0_118, %c0_119], %262 {strides = array<i32>} : memref<8x128xf32, #tpu.memory_space<vmem>>, vector<8x128xf32>,
    } else {
    }
    %c0 = arith.constant 0 : index
    %c0_1 = arith.constant 0 : index
    %3 = vector.load %arg3[%c0, %c0_1] : memref<128x512xbf16, #tpu.memory_space<vmem>>, vector<128x512xbf16>
    %c0_i32_2 = arith.constant 0 : i32
    %c0_3 = arith.constant 0 : index
    %c0_4 = arith.constant 0 : index
    %4 = vector.load %arg5[%c0_3, %c0_4] : memref<8x128xf32, #tpu.memory_space<vmem>>, vector<8x128xf32>
    %5 = arith.index_cast %c0_i32_2 : i32 to index
    %c0_5 = arith.constant 0 : index
    %c0_6 = arith.constant 0 : index
    %6 = vector.load %arg2[%5, %c0_5, %c0_6] : memref<8x8x512xbf16, #tpu.memory_space<vmem>>, vector<1x8x512xbf16>
    %7 = vector.shape_cast %6 : vector<1x8x512xbf16> to vector<8x512xbf16>
    %8 = arith.extf %7 : vector<8x512xbf16> to vector<8x512xf32>
    %9 = arith.truncf %4 : vector<8x128xf32> to vector<8x128xbf16>
    %cst = arith.constant dense<0.000000e+00> : vector<8x512xf32>
    %10 = tpu.matmul %9, %3, %cst {dimension_numbers = #tpu.dot_dimension_numbers<[1], [0], [0], [1], [0, 0, 1, 1], [], []>} : vector<8x128xbf16>, vector<128x512xbf16>, vector<8x512xf32> -> vector<8x512xf32>
    %11 = arith.addf %8, %10 : vector<8x512xf32>
    %12 = vector.extract_strided_slice %11 {offsets = [0, 0], sizes = [8, 384], strides = [1, 1]} : vector<8x512xf32> to vector<8x384xf32>
    %13 = arith.negf %12 : vector<8x384xf32>
    %14 = math.exp %13 : vector<8x384xf32>
    %cst_7 = arith.constant 1.000000e+00 : f32
    %15 = vector.broadcast %cst_7 : f32 to vector<8x384xf32>
    %16 = arith.addf %15, %14 : vector<8x384xf32>
    %17 = arith.divf %15, %16 : vector<8x384xf32>
    %18 = vector.extract_strided_slice %17 {offsets = [0, 0], sizes = [8, 128], strides = [1, 1]} : vector<8x384xf32> to vector<8x128xf32>
    %19 = vector.extract_strided_slice %17 {offsets = [0, 128], sizes = [8, 128], strides = [1, 1]} : vector<8x384xf32> to vector<8x128xf32>
    %20 = vector.extract_strided_slice %17 {offsets = [0, 256], sizes = [8, 128], strides = [1, 1]} : vector<8x384xf32> to vector<8x128xf32>
    %21 = vector.extract_strided_slice %11 {offsets = [0, 384], sizes = [8, 128], strides = [1, 1]} : vector<8x512xf32> to vector<8x128xf32>
    %22 = math.tanh %21 : vector<8x128xf32>
    %c0_8 = arith.constant 0 : index
    %c0_9 = arith.constant 0 : index
    %23 = vector.load %arg6[%c0_8, %c0_9] : memref<8x128xf32, #tpu.memory_space<vmem>>, vector<8x128xf32>
    %24 = arith.mulf %19, %23 : vector<8x128xf32>
    %25 = arith.mulf %18, %22 : vector<8x128xf32>
    %26 = arith.addf %24, %25 : vector<8x128xf32>
    %27 = math.tanh %26 : vector<8x128xf32>
    %28 = arith.mulf %20, %27 : vector<8x128xf32>
    %c0_10 = arith.constant 0 : index
    %c0_11 = arith.constant 0 : index
    %29 = vector.load %arg6[%c0_10, %c0_11] : memref<8x128xf32, #tpu.memory_space<vmem>>, vector<8x128xf32>
    tpu.vector_store %arg6[%c0_10, %c0_11], %26 {strides = array<i32>} : memref<8x128xf32, #tpu.memory_space<vmem>>, vector<8x128xf32>,
    %c0_12 = arith.constant 0 : index
    %c0_13 = arith.constant 0 : index
    %30 = vector.load %arg5[%c0_12, %c0_13] : memref<8x128xf32, #tpu.memory_space<vmem>>, vector<8x128xf32>
    tpu.vector_store %arg5[%c0_12, %c0_13], %28 {strides = array<i32>} : memref<8x128xf32, #tpu.memory_space<vmem>>, vector<8x128xf32>,
    %31 = arith.truncf %28 : vector<8x128xf32> to vector<8x128xbf16>
    %32 = arith.index_cast %c0_i32_2 : i32 to index
    %c0_14 = arith.constant 0 : index
    %c0_15 = arith.constant 0 : index
    %33 = vector.load %arg4[%32, %c0_14, %c0_15] : memref<8x8x128xbf16, #tpu.memory_space<vmem>>, vector<1x8x128xbf16>
    %34 = vector.shape_cast %33 : vector<1x8x128xbf16> to vector<8x128xbf16>
    %35 = vector.shape_cast %31 : vector<8x128xbf16> to vector<1x8x128xbf16>
    tpu.vector_store %arg4[%32, %c0_14, %c0_15], %35 {strides = array<i32>} : memref<8x8x128xbf16, #tpu.memory_space<vmem>>, vector<1x8x128xbf16>,
    %c1_i32 = arith.constant 1 : i32
    %c0_16 = arith.constant 0 : index
    %c0_17 = arith.constant 0 : index
    %36 = vector.load %arg5[%c0_16, %c0_17] : memref<8x128xf32, #tpu.memory_space<vmem>>, vector<8x128xf32>
    %37 = arith.index_cast %c1_i32 : i32 to index
    %c0_18 = arith.constant 0 : index
    %c0_19 = arith.constant 0 : index
    %38 = vector.load %arg2[%37, %c0_18, %c0_19] : memref<8x8x512xbf16, #tpu.memory_space<vmem>>, vector<1x8x512xbf16>
    %39 = vector.shape_cast %38 : vector<1x8x512xbf16> to vector<8x512xbf16>
    %40 = arith.extf %39 : vector<8x512xbf16> to vector<8x512xf32>
    %41 = arith.truncf %36 : vector<8x128xf32> to vector<8x128xbf16>
    %cst_20 = arith.constant dense<0.000000e+00> : vector<8x512xf32>
    %42 = tpu.matmul %41, %3, %cst_20 {dimension_numbers = #tpu.dot_dimension_numbers<[1], [0], [0], [1], [0, 0, 1, 1], [], []>} : vector<8x128xbf16>, vector<128x512xbf16>, vector<8x512xf32> -> vector<8x512xf32>
    %43 = arith.addf %40, %42 : vector<8x512xf32>
    %44 = vector.extract_strided_slice %43 {offsets = [0, 0], sizes = [8, 384], strides = [1, 1]} : vector<8x512xf32> to vector<8x384xf32>
    %45 = arith.negf %44 : vector<8x384xf32>
    %46 = math.exp %45 : vector<8x384xf32>
    %cst_21 = arith.constant 1.000000e+00 : f32
    %47 = vector.broadcast %cst_21 : f32 to vector<8x384xf32>
    %48 = arith.addf %47, %46 : vector<8x384xf32>
    %49 = arith.divf %47, %48 : vector<8x384xf32>
    %50 = vector.extract_strided_slice %49 {offsets = [0, 0], sizes = [8, 128], strides = [1, 1]} : vector<8x384xf32> to vector<8x128xf32>
    %51 = vector.extract_strided_slice %49 {offsets = [0, 128], sizes = [8, 128], strides = [1, 1]} : vector<8x384xf32> to vector<8x128xf32>
    %52 = vector.extract_strided_slice %49 {offsets = [0, 256], sizes = [8, 128], strides = [1, 1]} : vector<8x384xf32> to vector<8x128xf32>
    %53 = vector.extract_strided_slice %43 {offsets = [0, 384], sizes = [8, 128], strides = [1, 1]} : vector<8x512xf32> to vector<8x128xf32>
    %54 = math.tanh %53 : vector<8x128xf32>
    %c0_22 = arith.constant 0 : index
    %c0_23 = arith.constant 0 : index
    %55 = vector.load %arg6[%c0_22, %c0_23] : memref<8x128xf32, #tpu.memory_space<vmem>>, vector<8x128xf32>
    %56 = arith.mulf %51, %55 : vector<8x128xf32>
    %57 = arith.mulf %50, %54 : vector<8x128xf32>
    %58 = arith.addf %56, %57 : vector<8x128xf32>
    %59 = math.tanh %58 : vector<8x128xf32>
    %60 = arith.mulf %52, %59 : vector<8x128xf32>
    %c0_24 = arith.constant 0 : index
    %c0_25 = arith.constant 0 : index
    %61 = vector.load %arg6[%c0_24, %c0_25] : memref<8x128xf32, #tpu.memory_space<vmem>>, vector<8x128xf32>
    tpu.vector_store %arg6[%c0_24, %c0_25], %58 {strides = array<i32>} : memref<8x128xf32, #tpu.memory_space<vmem>>, vector<8x128xf32>,
    %c0_26 = arith.constant 0 : index
    %c0_27 = arith.constant 0 : index
    %62 = vector.load %arg5[%c0_26, %c0_27] : memref<8x128xf32, #tpu.memory_space<vmem>>, vector<8x128xf32>
    tpu.vector_store %arg5[%c0_26, %c0_27], %60 {strides = array<i32>} : memref<8x128xf32, #tpu.memory_space<vmem>>, vector<8x128xf32>,
    %63 = arith.truncf %60 : vector<8x128xf32> to vector<8x128xbf16>
    %64 = arith.index_cast %c1_i32 : i32 to index
    %c0_28 = arith.constant 0 : index
    %c0_29 = arith.constant 0 : index
    %65 = vector.load %arg4[%64, %c0_28, %c0_29] : memref<8x8x128xbf16, #tpu.memory_space<vmem>>, vector<1x8x128xbf16>
    %66 = vector.shape_cast %65 : vector<1x8x128xbf16> to vector<8x128xbf16>
    %67 = vector.shape_cast %63 : vector<8x128xbf16> to vector<1x8x128xbf16>
    tpu.vector_store %arg4[%64, %c0_28, %c0_29], %67 {strides = array<i32>} : memref<8x8x128xbf16, #tpu.memory_space<vmem>>, vector<1x8x128xbf16>,
    %c2_i32 = arith.constant 2 : i32
    %c0_30 = arith.constant 0 : index
    %c0_31 = arith.constant 0 : index
    %68 = vector.load %arg5[%c0_30, %c0_31] : memref<8x128xf32, #tpu.memory_space<vmem>>, vector<8x128xf32>
    %69 = arith.index_cast %c2_i32 : i32 to index
    %c0_32 = arith.constant 0 : index
    %c0_33 = arith.constant 0 : index
    %70 = vector.load %arg2[%69, %c0_32, %c0_33] : memref<8x8x512xbf16, #tpu.memory_space<vmem>>, vector<1x8x512xbf16>
    %71 = vector.shape_cast %70 : vector<1x8x512xbf16> to vector<8x512xbf16>
    %72 = arith.extf %71 : vector<8x512xbf16> to vector<8x512xf32>
    %73 = arith.truncf %68 : vector<8x128xf32> to vector<8x128xbf16>
    %cst_34 = arith.constant dense<0.000000e+00> : vector<8x512xf32>
    %74 = tpu.matmul %73, %3, %cst_34 {dimension_numbers = #tpu.dot_dimension_numbers<[1], [0], [0], [1], [0, 0, 1, 1], [], []>} : vector<8x128xbf16>, vector<128x512xbf16>, vector<8x512xf32> -> vector<8x512xf32>
    %75 = arith.addf %72, %74 : vector<8x512xf32>
    %76 = vector.extract_strided_slice %75 {offsets = [0, 0], sizes = [8, 384], strides = [1, 1]} : vector<8x512xf32> to vector<8x384xf32>
    %77 = arith.negf %76 : vector<8x384xf32>
    %78 = math.exp %77 : vector<8x384xf32>
    %cst_35 = arith.constant 1.000000e+00 : f32
    %79 = vector.broadcast %cst_35 : f32 to vector<8x384xf32>
    %80 = arith.addf %79, %78 : vector<8x384xf32>
    %81 = arith.divf %79, %80 : vector<8x384xf32>
    %82 = vector.extract_strided_slice %81 {offsets = [0, 0], sizes = [8, 128], strides = [1, 1]} : vector<8x384xf32> to vector<8x128xf32>
    %83 = vector.extract_strided_slice %81 {offsets = [0, 128], sizes = [8, 128], strides = [1, 1]} : vector<8x384xf32> to vector<8x128xf32>
    %84 = vector.extract_strided_slice %81 {offsets = [0, 256], sizes = [8, 128], strides = [1, 1]} : vector<8x384xf32> to vector<8x128xf32>
    %85 = vector.extract_strided_slice %75 {offsets = [0, 384], sizes = [8, 128], strides = [1, 1]} : vector<8x512xf32> to vector<8x128xf32>
    %86 = math.tanh %85 : vector<8x128xf32>
    %c0_36 = arith.constant 0 : index
    %c0_37 = arith.constant 0 : index
    %87 = vector.load %arg6[%c0_36, %c0_37] : memref<8x128xf32, #tpu.memory_space<vmem>>, vector<8x128xf32>
    %88 = arith.mulf %83, %87 : vector<8x128xf32>
    %89 = arith.mulf %82, %86 : vector<8x128xf32>
    %90 = arith.addf %88, %89 : vector<8x128xf32>
    %91 = math.tanh %90 : vector<8x128xf32>
    %92 = arith.mulf %84, %91 : vector<8x128xf32>
    %c0_38 = arith.constant 0 : index
    %c0_39 = arith.constant 0 : index
    %93 = vector.load %arg6[%c0_38, %c0_39] : memref<8x128xf32, #tpu.memory_space<vmem>>, vector<8x128xf32>
    tpu.vector_store %arg6[%c0_38, %c0_39], %90 {strides = array<i32>} : memref<8x128xf32, #tpu.memory_space<vmem>>, vector<8x128xf32>,
    %c0_40 = arith.constant 0 : index
    %c0_41 = arith.constant 0 : index
    %94 = vector.load %arg5[%c0_40, %c0_41] : memref<8x128xf32, #tpu.memory_space<vmem>>, vector<8x128xf32>
    tpu.vector_store %arg5[%c0_40, %c0_41], %92 {strides = array<i32>} : memref<8x128xf32, #tpu.memory_space<vmem>>, vector<8x128xf32>,
    %95 = arith.truncf %92 : vector<8x128xf32> to vector<8x128xbf16>
    %96 = arith.index_cast %c2_i32 : i32 to index
    %c0_42 = arith.constant 0 : index
    %c0_43 = arith.constant 0 : index
    %97 = vector.load %arg4[%96, %c0_42, %c0_43] : memref<8x8x128xbf16, #tpu.memory_space<vmem>>, vector<1x8x128xbf16>
    %98 = vector.shape_cast %97 : vector<1x8x128xbf16> to vector<8x128xbf16>
    %99 = vector.shape_cast %95 : vector<8x128xbf16> to vector<1x8x128xbf16>
    tpu.vector_store %arg4[%96, %c0_42, %c0_43], %99 {strides = array<i32>} : memref<8x8x128xbf16, #tpu.memory_space<vmem>>, vector<1x8x128xbf16>,
    %c3_i32 = arith.constant 3 : i32
    %c0_44 = arith.constant 0 : index
    %c0_45 = arith.constant 0 : index
    %100 = vector.load %arg5[%c0_44, %c0_45] : memref<8x128xf32, #tpu.memory_space<vmem>>, vector<8x128xf32>
    %101 = arith.index_cast %c3_i32 : i32 to index
    %c0_46 = arith.constant 0 : index
    %c0_47 = arith.constant 0 : index
    %102 = vector.load %arg2[%101, %c0_46, %c0_47] : memref<8x8x512xbf16, #tpu.memory_space<vmem>>, vector<1x8x512xbf16>
    %103 = vector.shape_cast %102 : vector<1x8x512xbf16> to vector<8x512xbf16>
    %104 = arith.extf %103 : vector<8x512xbf16> to vector<8x512xf32>
    %105 = arith.truncf %100 : vector<8x128xf32> to vector<8x128xbf16>
    %cst_48 = arith.constant dense<0.000000e+00> : vector<8x512xf32>
    %106 = tpu.matmul %105, %3, %cst_48 {dimension_numbers = #tpu.dot_dimension_numbers<[1], [0], [0], [1], [0, 0, 1, 1], [], []>} : vector<8x128xbf16>, vector<128x512xbf16>, vector<8x512xf32> -> vector<8x512xf32>
    %107 = arith.addf %104, %106 : vector<8x512xf32>
    %108 = vector.extract_strided_slice %107 {offsets = [0, 0], sizes = [8, 384], strides = [1, 1]} : vector<8x512xf32> to vector<8x384xf32>
    %109 = arith.negf %108 : vector<8x384xf32>
    %110 = math.exp %109 : vector<8x384xf32>
    %cst_49 = arith.constant 1.000000e+00 : f32
    %111 = vector.broadcast %cst_49 : f32 to vector<8x384xf32>
    %112 = arith.addf %111, %110 : vector<8x384xf32>
    %113 = arith.divf %111, %112 : vector<8x384xf32>
    %114 = vector.extract_strided_slice %113 {offsets = [0, 0], sizes = [8, 128], strides = [1, 1]} : vector<8x384xf32> to vector<8x128xf32>
    %115 = vector.extract_strided_slice %113 {offsets = [0, 128], sizes = [8, 128], strides = [1, 1]} : vector<8x384xf32> to vector<8x128xf32>
    %116 = vector.extract_strided_slice %113 {offsets = [0, 256], sizes = [8, 128], strides = [1, 1]} : vector<8x384xf32> to vector<8x128xf32>
    %117 = vector.extract_strided_slice %107 {offsets = [0, 384], sizes = [8, 128], strides = [1, 1]} : vector<8x512xf32> to vector<8x128xf32>
    %118 = math.tanh %117 : vector<8x128xf32>
    %c0_50 = arith.constant 0 : index
    %c0_51 = arith.constant 0 : index
    %119 = vector.load %arg6[%c0_50, %c0_51] : memref<8x128xf32, #tpu.memory_space<vmem>>, vector<8x128xf32>
    %120 = arith.mulf %115, %119 : vector<8x128xf32>
    %121 = arith.mulf %114, %118 : vector<8x128xf32>
    %122 = arith.addf %120, %121 : vector<8x128xf32>
    %123 = math.tanh %122 : vector<8x128xf32>
    %124 = arith.mulf %116, %123 : vector<8x128xf32>
    %c0_52 = arith.constant 0 : index
    %c0_53 = arith.constant 0 : index
    %125 = vector.load %arg6[%c0_52, %c0_53] : memref<8x128xf32, #tpu.memory_space<vmem>>, vector<8x128xf32>
    tpu.vector_store %arg6[%c0_52, %c0_53], %122 {strides = array<i32>} : memref<8x128xf32, #tpu.memory_space<vmem>>, vector<8x128xf32>,
    %c0_54 = arith.constant 0 : index
    %c0_55 = arith.constant 0 : index
    %126 = vector.load %arg5[%c0_54, %c0_55] : memref<8x128xf32, #tpu.memory_space<vmem>>, vector<8x128xf32>
    tpu.vector_store %arg5[%c0_54, %c0_55], %124 {strides = array<i32>} : memref<8x128xf32, #tpu.memory_space<vmem>>, vector<8x128xf32>,
    %127 = arith.truncf %124 : vector<8x128xf32> to vector<8x128xbf16>
    %128 = arith.index_cast %c3_i32 : i32 to index
    %c0_56 = arith.constant 0 : index
    %c0_57 = arith.constant 0 : index
    %129 = vector.load %arg4[%128, %c0_56, %c0_57] : memref<8x8x128xbf16, #tpu.memory_space<vmem>>, vector<1x8x128xbf16>
    %130 = vector.shape_cast %129 : vector<1x8x128xbf16> to vector<8x128xbf16>
    %131 = vector.shape_cast %127 : vector<8x128xbf16> to vector<1x8x128xbf16>
    tpu.vector_store %arg4[%128, %c0_56, %c0_57], %131 {strides = array<i32>} : memref<8x8x128xbf16, #tpu.memory_space<vmem>>, vector<1x8x128xbf16>,
    %c4_i32 = arith.constant 4 : i32
    %c0_58 = arith.constant 0 : index
    %c0_59 = arith.constant 0 : index
    %132 = vector.load %arg5[%c0_58, %c0_59] : memref<8x128xf32, #tpu.memory_space<vmem>>, vector<8x128xf32>
    %133 = arith.index_cast %c4_i32 : i32 to index
    %c0_60 = arith.constant 0 : index
    %c0_61 = arith.constant 0 : index
    %134 = vector.load %arg2[%133, %c0_60, %c0_61] : memref<8x8x512xbf16, #tpu.memory_space<vmem>>, vector<1x8x512xbf16>
    %135 = vector.shape_cast %134 : vector<1x8x512xbf16> to vector<8x512xbf16>
    %136 = arith.extf %135 : vector<8x512xbf16> to vector<8x512xf32>
    %137 = arith.truncf %132 : vector<8x128xf32> to vector<8x128xbf16>
    %cst_62 = arith.constant dense<0.000000e+00> : vector<8x512xf32>
    %138 = tpu.matmul %137, %3, %cst_62 {dimension_numbers = #tpu.dot_dimension_numbers<[1], [0], [0], [1], [0, 0, 1, 1], [], []>} : vector<8x128xbf16>, vector<128x512xbf16>, vector<8x512xf32> -> vector<8x512xf32>
    %139 = arith.addf %136, %138 : vector<8x512xf32>
    %140 = vector.extract_strided_slice %139 {offsets = [0, 0], sizes = [8, 384], strides = [1, 1]} : vector<8x512xf32> to vector<8x384xf32>
    %141 = arith.negf %140 : vector<8x384xf32>
    %142 = math.exp %141 : vector<8x384xf32>
    %cst_63 = arith.constant 1.000000e+00 : f32
    %143 = vector.broadcast %cst_63 : f32 to vector<8x384xf32>
    %144 = arith.addf %143, %142 : vector<8x384xf32>
    %145 = arith.divf %143, %144 : vector<8x384xf32>
    %146 = vector.extract_strided_slice %145 {offsets = [0, 0], sizes = [8, 128], strides = [1, 1]} : vector<8x384xf32> to vector<8x128xf32>
    %147 = vector.extract_strided_slice %145 {offsets = [0, 128], sizes = [8, 128], strides = [1, 1]} : vector<8x384xf32> to vector<8x128xf32>
    %148 = vector.extract_strided_slice %145 {offsets = [0, 256], sizes = [8, 128], strides = [1, 1]} : vector<8x384xf32> to vector<8x128xf32>
    %149 = vector.extract_strided_slice %139 {offsets = [0, 384], sizes = [8, 128], strides = [1, 1]} : vector<8x512xf32> to vector<8x128xf32>
    %150 = math.tanh %149 : vector<8x128xf32>
    %c0_64 = arith.constant 0 : index
    %c0_65 = arith.constant 0 : index
    %151 = vector.load %arg6[%c0_64, %c0_65] : memref<8x128xf32, #tpu.memory_space<vmem>>, vector<8x128xf32>
    %152 = arith.mulf %147, %151 : vector<8x128xf32>
    %153 = arith.mulf %146, %150 : vector<8x128xf32>
    %154 = arith.addf %152, %153 : vector<8x128xf32>
    %155 = math.tanh %154 : vector<8x128xf32>
    %156 = arith.mulf %148, %155 : vector<8x128xf32>
    %c0_66 = arith.constant 0 : index
    %c0_67 = arith.constant 0 : index
    %157 = vector.load %arg6[%c0_66, %c0_67] : memref<8x128xf32, #tpu.memory_space<vmem>>, vector<8x128xf32>
    tpu.vector_store %arg6[%c0_66, %c0_67], %154 {strides = array<i32>} : memref<8x128xf32, #tpu.memory_space<vmem>>, vector<8x128xf32>,
    %c0_68 = arith.constant 0 : index
    %c0_69 = arith.constant 0 : index
    %158 = vector.load %arg5[%c0_68, %c0_69] : memref<8x128xf32, #tpu.memory_space<vmem>>, vector<8x128xf32>
    tpu.vector_store %arg5[%c0_68, %c0_69], %156 {strides = array<i32>} : memref<8x128xf32, #tpu.memory_space<vmem>>, vector<8x128xf32>,
    %159 = arith.truncf %156 : vector<8x128xf32> to vector<8x128xbf16>
    %160 = arith.index_cast %c4_i32 : i32 to index
    %c0_70 = arith.constant 0 : index
    %c0_71 = arith.constant 0 : index
    %161 = vector.load %arg4[%160, %c0_70, %c0_71] : memref<8x8x128xbf16, #tpu.memory_space<vmem>>, vector<1x8x128xbf16>
    %162 = vector.shape_cast %161 : vector<1x8x128xbf16> to vector<8x128xbf16>
    %163 = vector.shape_cast %159 : vector<8x128xbf16> to vector<1x8x128xbf16>
    tpu.vector_store %arg4[%160, %c0_70, %c0_71], %163 {strides = array<i32>} : memref<8x8x128xbf16, #tpu.memory_space<vmem>>, vector<1x8x128xbf16>,
    %c5_i32 = arith.constant 5 : i32
    %c0_72 = arith.constant 0 : index
    %c0_73 = arith.constant 0 : index
    %164 = vector.load %arg5[%c0_72, %c0_73] : memref<8x128xf32, #tpu.memory_space<vmem>>, vector<8x128xf32>
    %165 = arith.index_cast %c5_i32 : i32 to index
    %c0_74 = arith.constant 0 : index
    %c0_75 = arith.constant 0 : index
    %166 = vector.load %arg2[%165, %c0_74, %c0_75] : memref<8x8x512xbf16, #tpu.memory_space<vmem>>, vector<1x8x512xbf16>
    %167 = vector.shape_cast %166 : vector<1x8x512xbf16> to vector<8x512xbf16>
    %168 = arith.extf %167 : vector<8x512xbf16> to vector<8x512xf32>
    %169 = arith.truncf %164 : vector<8x128xf32> to vector<8x128xbf16>
    %cst_76 = arith.constant dense<0.000000e+00> : vector<8x512xf32>
    %170 = tpu.matmul %169, %3, %cst_76 {dimension_numbers = #tpu.dot_dimension_numbers<[1], [0], [0], [1], [0, 0, 1, 1], [], []>} : vector<8x128xbf16>, vector<128x512xbf16>, vector<8x512xf32> -> vector<8x512xf32>
    %171 = arith.addf %168, %170 : vector<8x512xf32>
    %172 = vector.extract_strided_slice %171 {offsets = [0, 0], sizes = [8, 384], strides = [1, 1]} : vector<8x512xf32> to vector<8x384xf32>
    %173 = arith.negf %172 : vector<8x384xf32>
    %174 = math.exp %173 : vector<8x384xf32>
    %cst_77 = arith.constant 1.000000e+00 : f32
    %175 = vector.broadcast %cst_77 : f32 to vector<8x384xf32>
    %176 = arith.addf %175, %174 : vector<8x384xf32>
    %177 = arith.divf %175, %176 : vector<8x384xf32>
    %178 = vector.extract_strided_slice %177 {offsets = [0, 0], sizes = [8, 128], strides = [1, 1]} : vector<8x384xf32> to vector<8x128xf32>
    %179 = vector.extract_strided_slice %177 {offsets = [0, 128], sizes = [8, 128], strides = [1, 1]} : vector<8x384xf32> to vector<8x128xf32>
    %180 = vector.extract_strided_slice %177 {offsets = [0, 256], sizes = [8, 128], strides = [1, 1]} : vector<8x384xf32> to vector<8x128xf32>
    %181 = vector.extract_strided_slice %171 {offsets = [0, 384], sizes = [8, 128], strides = [1, 1]} : vector<8x512xf32> to vector<8x128xf32>
    %182 = math.tanh %181 : vector<8x128xf32>
    %c0_78 = arith.constant 0 : index
    %c0_79 = arith.constant 0 : index
    %183 = vector.load %arg6[%c0_78, %c0_79] : memref<8x128xf32, #tpu.memory_space<vmem>>, vector<8x128xf32>
    %184 = arith.mulf %179, %183 : vector<8x128xf32>
    %185 = arith.mulf %178, %182 : vector<8x128xf32>
    %186 = arith.addf %184, %185 : vector<8x128xf32>
    %187 = math.tanh %186 : vector<8x128xf32>
    %188 = arith.mulf %180, %187 : vector<8x128xf32>
    %c0_80 = arith.constant 0 : index
    %c0_81 = arith.constant 0 : index
    %189 = vector.load %arg6[%c0_80, %c0_81] : memref<8x128xf32, #tpu.memory_space<vmem>>, vector<8x128xf32>
    tpu.vector_store %arg6[%c0_80, %c0_81], %186 {strides = array<i32>} : memref<8x128xf32, #tpu.memory_space<vmem>>, vector<8x128xf32>,
    %c0_82 = arith.constant 0 : index
    %c0_83 = arith.constant 0 : index
    %190 = vector.load %arg5[%c0_82, %c0_83] : memref<8x128xf32, #tpu.memory_space<vmem>>, vector<8x128xf32>
    tpu.vector_store %arg5[%c0_82, %c0_83], %188 {strides = array<i32>} : memref<8x128xf32, #tpu.memory_space<vmem>>, vector<8x128xf32>,
    %191 = arith.truncf %188 : vector<8x128xf32> to vector<8x128xbf16>
    %192 = arith.index_cast %c5_i32 : i32 to index
    %c0_84 = arith.constant 0 : index
    %c0_85 = arith.constant 0 : index
    %193 = vector.load %arg4[%192, %c0_84, %c0_85] : memref<8x8x128xbf16, #tpu.memory_space<vmem>>, vector<1x8x128xbf16>
    %194 = vector.shape_cast %193 : vector<1x8x128xbf16> to vector<8x128xbf16>
    %195 = vector.shape_cast %191 : vector<8x128xbf16> to vector<1x8x128xbf16>
    tpu.vector_store %arg4[%192, %c0_84, %c0_85], %195 {strides = array<i32>} : memref<8x8x128xbf16, #tpu.memory_space<vmem>>, vector<1x8x128xbf16>,
    %c6_i32 = arith.constant 6 : i32
    %c0_86 = arith.constant 0 : index
    %c0_87 = arith.constant 0 : index
    %196 = vector.load %arg5[%c0_86, %c0_87] : memref<8x128xf32, #tpu.memory_space<vmem>>, vector<8x128xf32>
    %197 = arith.index_cast %c6_i32 : i32 to index
    %c0_88 = arith.constant 0 : index
    %c0_89 = arith.constant 0 : index
    %198 = vector.load %arg2[%197, %c0_88, %c0_89] : memref<8x8x512xbf16, #tpu.memory_space<vmem>>, vector<1x8x512xbf16>
    %199 = vector.shape_cast %198 : vector<1x8x512xbf16> to vector<8x512xbf16>
    %200 = arith.extf %199 : vector<8x512xbf16> to vector<8x512xf32>
    %201 = arith.truncf %196 : vector<8x128xf32> to vector<8x128xbf16>
    %cst_90 = arith.constant dense<0.000000e+00> : vector<8x512xf32>
    %202 = tpu.matmul %201, %3, %cst_90 {dimension_numbers = #tpu.dot_dimension_numbers<[1], [0], [0], [1], [0, 0, 1, 1], [], []>} : vector<8x128xbf16>, vector<128x512xbf16>, vector<8x512xf32> -> vector<8x512xf32>
    %203 = arith.addf %200, %202 : vector<8x512xf32>
    %204 = vector.extract_strided_slice %203 {offsets = [0, 0], sizes = [8, 384], strides = [1, 1]} : vector<8x512xf32> to vector<8x384xf32>
    %205 = arith.negf %204 : vector<8x384xf32>
    %206 = math.exp %205 : vector<8x384xf32>
    %cst_91 = arith.constant 1.000000e+00 : f32
    %207 = vector.broadcast %cst_91 : f32 to vector<8x384xf32>
    %208 = arith.addf %207, %206 : vector<8x384xf32>
    %209 = arith.divf %207, %208 : vector<8x384xf32>
    %210 = vector.extract_strided_slice %209 {offsets = [0, 0], sizes = [8, 128], strides = [1, 1]} : vector<8x384xf32> to vector<8x128xf32>
    %211 = vector.extract_strided_slice %209 {offsets = [0, 128], sizes = [8, 128], strides = [1, 1]} : vector<8x384xf32> to vector<8x128xf32>
    %212 = vector.extract_strided_slice %209 {offsets = [0, 256], sizes = [8, 128], strides = [1, 1]} : vector<8x384xf32> to vector<8x128xf32>
    %213 = vector.extract_strided_slice %203 {offsets = [0, 384], sizes = [8, 128], strides = [1, 1]} : vector<8x512xf32> to vector<8x128xf32>
    %214 = math.tanh %213 : vector<8x128xf32>
    %c0_92 = arith.constant 0 : index
    %c0_93 = arith.constant 0 : index
    %215 = vector.load %arg6[%c0_92, %c0_93] : memref<8x128xf32, #tpu.memory_space<vmem>>, vector<8x128xf32>
    %216 = arith.mulf %211, %215 : vector<8x128xf32>
    %217 = arith.mulf %210, %214 : vector<8x128xf32>
    %218 = arith.addf %216, %217 : vector<8x128xf32>
    %219 = math.tanh %218 : vector<8x128xf32>
    %220 = arith.mulf %212, %219 : vector<8x128xf32>
    %c0_94 = arith.constant 0 : index
    %c0_95 = arith.constant 0 : index
    %221 = vector.load %arg6[%c0_94, %c0_95] : memref<8x128xf32, #tpu.memory_space<vmem>>, vector<8x128xf32>
    tpu.vector_store %arg6[%c0_94, %c0_95], %218 {strides = array<i32>} : memref<8x128xf32, #tpu.memory_space<vmem>>, vector<8x128xf32>,
    %c0_96 = arith.constant 0 : index
    %c0_97 = arith.constant 0 : index
    %222 = vector.load %arg5[%c0_96, %c0_97] : memref<8x128xf32, #tpu.memory_space<vmem>>, vector<8x128xf32>
    tpu.vector_store %arg5[%c0_96, %c0_97], %220 {strides = array<i32>} : memref<8x128xf32, #tpu.memory_space<vmem>>, vector<8x128xf32>,
    %223 = arith.truncf %220 : vector<8x128xf32> to vector<8x128xbf16>
    %224 = arith.index_cast %c6_i32 : i32 to index
    %c0_98 = arith.constant 0 : index
    %c0_99 = arith.constant 0 : index
    %225 = vector.load %arg4[%224, %c0_98, %c0_99] : memref<8x8x128xbf16, #tpu.memory_space<vmem>>, vector<1x8x128xbf16>
    %226 = vector.shape_cast %225 : vector<1x8x128xbf16> to vector<8x128xbf16>
    %227 = vector.shape_cast %223 : vector<8x128xbf16> to vector<1x8x128xbf16>
    tpu.vector_store %arg4[%224, %c0_98, %c0_99], %227 {strides = array<i32>} : memref<8x8x128xbf16, #tpu.memory_space<vmem>>, vector<1x8x128xbf16>,
    %c7_i32 = arith.constant 7 : i32
    %c0_100 = arith.constant 0 : index
    %c0_101 = arith.constant 0 : index
    %228 = vector.load %arg5[%c0_100, %c0_101] : memref<8x128xf32, #tpu.memory_space<vmem>>, vector<8x128xf32>
    %229 = arith.index_cast %c7_i32 : i32 to index
    %c0_102 = arith.constant 0 : index
    %c0_103 = arith.constant 0 : index
    %230 = vector.load %arg2[%229, %c0_102, %c0_103] : memref<8x8x512xbf16, #tpu.memory_space<vmem>>, vector<1x8x512xbf16>
    %231 = vector.shape_cast %230 : vector<1x8x512xbf16> to vector<8x512xbf16>
    %232 = arith.extf %231 : vector<8x512xbf16> to vector<8x512xf32>
    %233 = arith.truncf %228 : vector<8x128xf32> to vector<8x128xbf16>
    %cst_104 = arith.constant dense<0.000000e+00> : vector<8x512xf32>
    %234 = tpu.matmul %233, %3, %cst_104 {dimension_numbers = #tpu.dot_dimension_numbers<[1], [0], [0], [1], [0, 0, 1, 1], [], []>} : vector<8x128xbf16>, vector<128x512xbf16>, vector<8x512xf32> -> vector<8x512xf32>
    %235 = arith.addf %232, %234 : vector<8x512xf32>
    %236 = vector.extract_strided_slice %235 {offsets = [0, 0], sizes = [8, 384], strides = [1, 1]} : vector<8x512xf32> to vector<8x384xf32>
    %237 = arith.negf %236 : vector<8x384xf32>
    %238 = math.exp %237 : vector<8x384xf32>
    %cst_105 = arith.constant 1.000000e+00 : f32
    %239 = vector.broadcast %cst_105 : f32 to vector<8x384xf32>
    %240 = arith.addf %239, %238 : vector<8x384xf32>
    %241 = arith.divf %239, %240 : vector<8x384xf32>
    %242 = vector.extract_strided_slice %241 {offsets = [0, 0], sizes = [8, 128], strides = [1, 1]} : vector<8x384xf32> to vector<8x128xf32>
    %243 = vector.extract_strided_slice %241 {offsets = [0, 128], sizes = [8, 128], strides = [1, 1]} : vector<8x384xf32> to vector<8x128xf32>
    %244 = vector.extract_strided_slice %241 {offsets = [0, 256], sizes = [8, 128], strides = [1, 1]} : vector<8x384xf32> to vector<8x128xf32>
    %245 = vector.extract_strided_slice %235 {offsets = [0, 384], sizes = [8, 128], strides = [1, 1]} : vector<8x512xf32> to vector<8x128xf32>
    %246 = math.tanh %245 : vector<8x128xf32>
    %c0_106 = arith.constant 0 : index
    %c0_107 = arith.constant 0 : index
    %247 = vector.load %arg6[%c0_106, %c0_107] : memref<8x128xf32, #tpu.memory_space<vmem>>, vector<8x128xf32>
    %248 = arith.mulf %243, %247 : vector<8x128xf32>
    %249 = arith.mulf %242, %246 : vector<8x128xf32>
    %250 = arith.addf %248, %249 : vector<8x128xf32>
    %251 = math.tanh %250 : vector<8x128xf32>
    %252 = arith.mulf %244, %251 : vector<8x128xf32>
    %c0_108 = arith.constant 0 : index
    %c0_109 = arith.constant 0 : index
    %253 = vector.load %arg6[%c0_108, %c0_109] : memref<8x128xf32, #tpu.memory_space<vmem>>, vector<8x128xf32>
    tpu.vector_store %arg6[%c0_108, %c0_109], %250 {strides = array<i32>} : memref<8x128xf32, #tpu.memory_space<vmem>>, vector<8x128xf32>,
    %c0_110 = arith.constant 0 : index
    %c0_111 = arith.constant 0 : index
    %254 = vector.load %arg5[%c0_110, %c0_111] : memref<8x128xf32, #tpu.memory_space<vmem>>, vector<8x128xf32>
    tpu.vector_store %arg5[%c0_110, %c0_111], %252 {strides = array<i32>} : memref<8x128xf32, #tpu.memory_space<vmem>>, vector<8x128xf32>,
    %255 = arith.truncf %252 : vector<8x128xf32> to vector<8x128xbf16>
    %256 = arith.index_cast %c7_i32 : i32 to index
    %c0_112 = arith.constant 0 : index
    %c0_113 = arith.constant 0 : index
    %257 = vector.load %arg4[%256, %c0_112, %c0_113] : memref<8x8x128xbf16, #tpu.memory_space<vmem>>, vector<1x8x128xbf16>
    %258 = vector.shape_cast %257 : vector<1x8x128xbf16> to vector<8x128xbf16>
    %259 = vector.shape_cast %255 : vector<8x128xbf16> to vector<1x8x128xbf16>
    tpu.vector_store %arg4[%256, %c0_112, %c0_113], %259 {strides = array<i32>} : memref<8x8x128xbf16, #tpu.memory_space<vmem>>, vector<1x8x128xbf16>,
    %c8_i32 = arith.constant 8 : i32
    return
  }
  func.func @transform_0(%arg0: i32, %arg1: i32) -> (i32, i32, i32) {
    %c0_i32 = arith.constant 0 : i32
    %c0_i32_0 = arith.constant 0 : i32
    return %arg1, %arg0, %c0_i32 : i32, i32, i32
  }
  func.func @transform_1(%arg0: i32, %arg1: i32) -> (i32, i32) {
    %c0_i32 = arith.constant 0 : i32
    %c0_i32_0 = arith.constant 0 : i32
    %c0_i32_1 = arith.constant 0 : i32
    return %c0_i32, %c0_i32_0 : i32, i32
  }
  func.func @transform_2(%arg0: i32, %arg1: i32) -> (i32, i32, i32) {
    %c0_i32 = arith.constant 0 : i32
    %c0_i32_0 = arith.constant 0 : i32
    return %arg1, %arg0, %c0_i32 : i32, i32, i32
  }
}

module attributes {stable_mosaic.version = 11 : i64} {
  func.func @_lstm_recurrence_kernel(%arg0: i32, %arg1: i32, %arg2: memref<8x8x512xbf16, #tpu.memory_space<vmem>>, %arg3: memref<128x512xbf16, #tpu.memory_space<vmem>>, %arg4: memref<8x8x128xf32, #tpu.memory_space<vmem>>, %arg5: memref<8x128xf32, #tpu.memory_space<vmem>>, %arg6: memref<8x128xf32, #tpu.memory_space<vmem>>) attributes {dimension_semantics = [#tpu.dimension_semantics<parallel>, #tpu.dimension_semantics<arbitrary>], iteration_bounds = array<i64: 1, 1>, scalar_prefetch = 0 : i64, scratch_operands = 2 : i64, tpu.core_type = #tpu.core_type<tc>, window_params = [{transform_indices = @transform_0, window_bounds = array<i64: 8, 8, 512>}, {pipeline_mode = #tpu.pipeline_mode<synchronous>, transform_indices = @transform_1, window_bounds = array<i64: 128, 512>}, {transform_indices = @transform_2, window_bounds = array<i64: 8, 8, 128>}]} {
    %c0_i32 = arith.constant 0 : i32
    %0 = arith.cmpi eq, %arg1, %c0_i32 : i32
    %1 = arith.extui %0 : i1 to i32
    %c0_i32_0 = arith.constant 0 : i32
    %2 = arith.cmpi ne, %1, %c0_i32_0 : i32
    scf.if %2 {
      %cst_114 = arith.constant 0.000000e+00 : f32
      %252 = vector.broadcast %cst_114 : f32 to vector<8x128xf32>
      %c0_115 = arith.constant 0 : index
      %c0_116 = arith.constant 0 : index
      %253 = vector.load %arg5[%c0_115, %c0_116] : memref<8x128xf32, #tpu.memory_space<vmem>>, vector<8x128xf32>
      tpu.vector_store %arg5[%c0_115, %c0_116], %252 {strides = array<i32>} : memref<8x128xf32, #tpu.memory_space<vmem>>, vector<8x128xf32>,
      %cst_117 = arith.constant 0.000000e+00 : f32
      %254 = vector.broadcast %cst_117 : f32 to vector<8x128xf32>
      %c0_118 = arith.constant 0 : index
      %c0_119 = arith.constant 0 : index
      %255 = vector.load %arg6[%c0_118, %c0_119] : memref<8x128xf32, #tpu.memory_space<vmem>>, vector<8x128xf32>
      tpu.vector_store %arg6[%c0_118, %c0_119], %254 {strides = array<i32>} : memref<8x128xf32, #tpu.memory_space<vmem>>, vector<8x128xf32>,
    } else {
    }
    %c0 = arith.constant 0 : index
    %c0_1 = arith.constant 0 : index
    %3 = vector.load %arg3[%c0, %c0_1] : memref<128x512xbf16, #tpu.memory_space<vmem>>, vector<128x512xbf16>
    %c0_i32_2 = arith.constant 0 : i32
    %c0_3 = arith.constant 0 : index
    %c0_4 = arith.constant 0 : index
    %4 = vector.load %arg5[%c0_3, %c0_4] : memref<8x128xf32, #tpu.memory_space<vmem>>, vector<8x128xf32>
    %5 = arith.index_cast %c0_i32_2 : i32 to index
    %c0_5 = arith.constant 0 : index
    %c0_6 = arith.constant 0 : index
    %6 = vector.load %arg2[%5, %c0_5, %c0_6] : memref<8x8x512xbf16, #tpu.memory_space<vmem>>, vector<1x8x512xbf16>
    %7 = vector.shape_cast %6 : vector<1x8x512xbf16> to vector<8x512xbf16>
    %8 = arith.extf %7 : vector<8x512xbf16> to vector<8x512xf32>
    %9 = arith.truncf %4 : vector<8x128xf32> to vector<8x128xbf16>
    %cst = arith.constant dense<0.000000e+00> : vector<8x512xf32>
    %10 = tpu.matmul %9, %3, %cst {dimension_numbers = #tpu.dot_dimension_numbers<[1], [0], [0], [1], [0, 0, 1, 1], [], []>} : vector<8x128xbf16>, vector<128x512xbf16>, vector<8x512xf32> -> vector<8x512xf32>
    %11 = arith.addf %8, %10 : vector<8x512xf32>
    %12 = vector.extract_strided_slice %11 {offsets = [0, 0], sizes = [8, 384], strides = [1, 1]} : vector<8x512xf32> to vector<8x384xf32>
    %13 = arith.negf %12 : vector<8x384xf32>
    %14 = math.exp %13 : vector<8x384xf32>
    %cst_7 = arith.constant 1.000000e+00 : f32
    %15 = vector.broadcast %cst_7 : f32 to vector<8x384xf32>
    %16 = arith.addf %15, %14 : vector<8x384xf32>
    %17 = arith.divf %15, %16 : vector<8x384xf32>
    %18 = vector.extract_strided_slice %17 {offsets = [0, 0], sizes = [8, 128], strides = [1, 1]} : vector<8x384xf32> to vector<8x128xf32>
    %19 = vector.extract_strided_slice %17 {offsets = [0, 128], sizes = [8, 128], strides = [1, 1]} : vector<8x384xf32> to vector<8x128xf32>
    %20 = vector.extract_strided_slice %17 {offsets = [0, 256], sizes = [8, 128], strides = [1, 1]} : vector<8x384xf32> to vector<8x128xf32>
    %21 = vector.extract_strided_slice %11 {offsets = [0, 384], sizes = [8, 128], strides = [1, 1]} : vector<8x512xf32> to vector<8x128xf32>
    %22 = math.tanh %21 : vector<8x128xf32>
    %c0_8 = arith.constant 0 : index
    %c0_9 = arith.constant 0 : index
    %23 = vector.load %arg6[%c0_8, %c0_9] : memref<8x128xf32, #tpu.memory_space<vmem>>, vector<8x128xf32>
    %24 = arith.mulf %19, %23 : vector<8x128xf32>
    %25 = arith.mulf %18, %22 : vector<8x128xf32>
    %26 = arith.addf %24, %25 : vector<8x128xf32>
    %27 = math.tanh %26 : vector<8x128xf32>
    %28 = arith.mulf %20, %27 : vector<8x128xf32>
    %c0_10 = arith.constant 0 : index
    %c0_11 = arith.constant 0 : index
    %29 = vector.load %arg6[%c0_10, %c0_11] : memref<8x128xf32, #tpu.memory_space<vmem>>, vector<8x128xf32>
    tpu.vector_store %arg6[%c0_10, %c0_11], %26 {strides = array<i32>} : memref<8x128xf32, #tpu.memory_space<vmem>>, vector<8x128xf32>,
    %c0_12 = arith.constant 0 : index
    %c0_13 = arith.constant 0 : index
    %30 = vector.load %arg5[%c0_12, %c0_13] : memref<8x128xf32, #tpu.memory_space<vmem>>, vector<8x128xf32>
    tpu.vector_store %arg5[%c0_12, %c0_13], %28 {strides = array<i32>} : memref<8x128xf32, #tpu.memory_space<vmem>>, vector<8x128xf32>,
    %31 = arith.index_cast %c0_i32_2 : i32 to index
    %c0_14 = arith.constant 0 : index
    %c0_15 = arith.constant 0 : index
    %32 = vector.load %arg4[%31, %c0_14, %c0_15] : memref<8x8x128xf32, #tpu.memory_space<vmem>>, vector<1x8x128xf32>
    %33 = vector.shape_cast %32 : vector<1x8x128xf32> to vector<8x128xf32>
    %34 = vector.shape_cast %28 : vector<8x128xf32> to vector<1x8x128xf32>
    tpu.vector_store %arg4[%31, %c0_14, %c0_15], %34 {strides = array<i32>} : memref<8x8x128xf32, #tpu.memory_space<vmem>>, vector<1x8x128xf32>,
    %c1_i32 = arith.constant 1 : i32
    %c0_16 = arith.constant 0 : index
    %c0_17 = arith.constant 0 : index
    %35 = vector.load %arg5[%c0_16, %c0_17] : memref<8x128xf32, #tpu.memory_space<vmem>>, vector<8x128xf32>
    %36 = arith.index_cast %c1_i32 : i32 to index
    %c0_18 = arith.constant 0 : index
    %c0_19 = arith.constant 0 : index
    %37 = vector.load %arg2[%36, %c0_18, %c0_19] : memref<8x8x512xbf16, #tpu.memory_space<vmem>>, vector<1x8x512xbf16>
    %38 = vector.shape_cast %37 : vector<1x8x512xbf16> to vector<8x512xbf16>
    %39 = arith.extf %38 : vector<8x512xbf16> to vector<8x512xf32>
    %40 = arith.truncf %35 : vector<8x128xf32> to vector<8x128xbf16>
    %cst_20 = arith.constant dense<0.000000e+00> : vector<8x512xf32>
    %41 = tpu.matmul %40, %3, %cst_20 {dimension_numbers = #tpu.dot_dimension_numbers<[1], [0], [0], [1], [0, 0, 1, 1], [], []>} : vector<8x128xbf16>, vector<128x512xbf16>, vector<8x512xf32> -> vector<8x512xf32>
    %42 = arith.addf %39, %41 : vector<8x512xf32>
    %43 = vector.extract_strided_slice %42 {offsets = [0, 0], sizes = [8, 384], strides = [1, 1]} : vector<8x512xf32> to vector<8x384xf32>
    %44 = arith.negf %43 : vector<8x384xf32>
    %45 = math.exp %44 : vector<8x384xf32>
    %cst_21 = arith.constant 1.000000e+00 : f32
    %46 = vector.broadcast %cst_21 : f32 to vector<8x384xf32>
    %47 = arith.addf %46, %45 : vector<8x384xf32>
    %48 = arith.divf %46, %47 : vector<8x384xf32>
    %49 = vector.extract_strided_slice %48 {offsets = [0, 0], sizes = [8, 128], strides = [1, 1]} : vector<8x384xf32> to vector<8x128xf32>
    %50 = vector.extract_strided_slice %48 {offsets = [0, 128], sizes = [8, 128], strides = [1, 1]} : vector<8x384xf32> to vector<8x128xf32>
    %51 = vector.extract_strided_slice %48 {offsets = [0, 256], sizes = [8, 128], strides = [1, 1]} : vector<8x384xf32> to vector<8x128xf32>
    %52 = vector.extract_strided_slice %42 {offsets = [0, 384], sizes = [8, 128], strides = [1, 1]} : vector<8x512xf32> to vector<8x128xf32>
    %53 = math.tanh %52 : vector<8x128xf32>
    %c0_22 = arith.constant 0 : index
    %c0_23 = arith.constant 0 : index
    %54 = vector.load %arg6[%c0_22, %c0_23] : memref<8x128xf32, #tpu.memory_space<vmem>>, vector<8x128xf32>
    %55 = arith.mulf %50, %54 : vector<8x128xf32>
    %56 = arith.mulf %49, %53 : vector<8x128xf32>
    %57 = arith.addf %55, %56 : vector<8x128xf32>
    %58 = math.tanh %57 : vector<8x128xf32>
    %59 = arith.mulf %51, %58 : vector<8x128xf32>
    %c0_24 = arith.constant 0 : index
    %c0_25 = arith.constant 0 : index
    %60 = vector.load %arg6[%c0_24, %c0_25] : memref<8x128xf32, #tpu.memory_space<vmem>>, vector<8x128xf32>
    tpu.vector_store %arg6[%c0_24, %c0_25], %57 {strides = array<i32>} : memref<8x128xf32, #tpu.memory_space<vmem>>, vector<8x128xf32>,
    %c0_26 = arith.constant 0 : index
    %c0_27 = arith.constant 0 : index
    %61 = vector.load %arg5[%c0_26, %c0_27] : memref<8x128xf32, #tpu.memory_space<vmem>>, vector<8x128xf32>
    tpu.vector_store %arg5[%c0_26, %c0_27], %59 {strides = array<i32>} : memref<8x128xf32, #tpu.memory_space<vmem>>, vector<8x128xf32>,
    %62 = arith.index_cast %c1_i32 : i32 to index
    %c0_28 = arith.constant 0 : index
    %c0_29 = arith.constant 0 : index
    %63 = vector.load %arg4[%62, %c0_28, %c0_29] : memref<8x8x128xf32, #tpu.memory_space<vmem>>, vector<1x8x128xf32>
    %64 = vector.shape_cast %63 : vector<1x8x128xf32> to vector<8x128xf32>
    %65 = vector.shape_cast %59 : vector<8x128xf32> to vector<1x8x128xf32>
    tpu.vector_store %arg4[%62, %c0_28, %c0_29], %65 {strides = array<i32>} : memref<8x8x128xf32, #tpu.memory_space<vmem>>, vector<1x8x128xf32>,
    %c2_i32 = arith.constant 2 : i32
    %c0_30 = arith.constant 0 : index
    %c0_31 = arith.constant 0 : index
    %66 = vector.load %arg5[%c0_30, %c0_31] : memref<8x128xf32, #tpu.memory_space<vmem>>, vector<8x128xf32>
    %67 = arith.index_cast %c2_i32 : i32 to index
    %c0_32 = arith.constant 0 : index
    %c0_33 = arith.constant 0 : index
    %68 = vector.load %arg2[%67, %c0_32, %c0_33] : memref<8x8x512xbf16, #tpu.memory_space<vmem>>, vector<1x8x512xbf16>
    %69 = vector.shape_cast %68 : vector<1x8x512xbf16> to vector<8x512xbf16>
    %70 = arith.extf %69 : vector<8x512xbf16> to vector<8x512xf32>
    %71 = arith.truncf %66 : vector<8x128xf32> to vector<8x128xbf16>
    %cst_34 = arith.constant dense<0.000000e+00> : vector<8x512xf32>
    %72 = tpu.matmul %71, %3, %cst_34 {dimension_numbers = #tpu.dot_dimension_numbers<[1], [0], [0], [1], [0, 0, 1, 1], [], []>} : vector<8x128xbf16>, vector<128x512xbf16>, vector<8x512xf32> -> vector<8x512xf32>
    %73 = arith.addf %70, %72 : vector<8x512xf32>
    %74 = vector.extract_strided_slice %73 {offsets = [0, 0], sizes = [8, 384], strides = [1, 1]} : vector<8x512xf32> to vector<8x384xf32>
    %75 = arith.negf %74 : vector<8x384xf32>
    %76 = math.exp %75 : vector<8x384xf32>
    %cst_35 = arith.constant 1.000000e+00 : f32
    %77 = vector.broadcast %cst_35 : f32 to vector<8x384xf32>
    %78 = arith.addf %77, %76 : vector<8x384xf32>
    %79 = arith.divf %77, %78 : vector<8x384xf32>
    %80 = vector.extract_strided_slice %79 {offsets = [0, 0], sizes = [8, 128], strides = [1, 1]} : vector<8x384xf32> to vector<8x128xf32>
    %81 = vector.extract_strided_slice %79 {offsets = [0, 128], sizes = [8, 128], strides = [1, 1]} : vector<8x384xf32> to vector<8x128xf32>
    %82 = vector.extract_strided_slice %79 {offsets = [0, 256], sizes = [8, 128], strides = [1, 1]} : vector<8x384xf32> to vector<8x128xf32>
    %83 = vector.extract_strided_slice %73 {offsets = [0, 384], sizes = [8, 128], strides = [1, 1]} : vector<8x512xf32> to vector<8x128xf32>
    %84 = math.tanh %83 : vector<8x128xf32>
    %c0_36 = arith.constant 0 : index
    %c0_37 = arith.constant 0 : index
    %85 = vector.load %arg6[%c0_36, %c0_37] : memref<8x128xf32, #tpu.memory_space<vmem>>, vector<8x128xf32>
    %86 = arith.mulf %81, %85 : vector<8x128xf32>
    %87 = arith.mulf %80, %84 : vector<8x128xf32>
    %88 = arith.addf %86, %87 : vector<8x128xf32>
    %89 = math.tanh %88 : vector<8x128xf32>
    %90 = arith.mulf %82, %89 : vector<8x128xf32>
    %c0_38 = arith.constant 0 : index
    %c0_39 = arith.constant 0 : index
    %91 = vector.load %arg6[%c0_38, %c0_39] : memref<8x128xf32, #tpu.memory_space<vmem>>, vector<8x128xf32>
    tpu.vector_store %arg6[%c0_38, %c0_39], %88 {strides = array<i32>} : memref<8x128xf32, #tpu.memory_space<vmem>>, vector<8x128xf32>,
    %c0_40 = arith.constant 0 : index
    %c0_41 = arith.constant 0 : index
    %92 = vector.load %arg5[%c0_40, %c0_41] : memref<8x128xf32, #tpu.memory_space<vmem>>, vector<8x128xf32>
    tpu.vector_store %arg5[%c0_40, %c0_41], %90 {strides = array<i32>} : memref<8x128xf32, #tpu.memory_space<vmem>>, vector<8x128xf32>,
    %93 = arith.index_cast %c2_i32 : i32 to index
    %c0_42 = arith.constant 0 : index
    %c0_43 = arith.constant 0 : index
    %94 = vector.load %arg4[%93, %c0_42, %c0_43] : memref<8x8x128xf32, #tpu.memory_space<vmem>>, vector<1x8x128xf32>
    %95 = vector.shape_cast %94 : vector<1x8x128xf32> to vector<8x128xf32>
    %96 = vector.shape_cast %90 : vector<8x128xf32> to vector<1x8x128xf32>
    tpu.vector_store %arg4[%93, %c0_42, %c0_43], %96 {strides = array<i32>} : memref<8x8x128xf32, #tpu.memory_space<vmem>>, vector<1x8x128xf32>,
    %c3_i32 = arith.constant 3 : i32
    %c0_44 = arith.constant 0 : index
    %c0_45 = arith.constant 0 : index
    %97 = vector.load %arg5[%c0_44, %c0_45] : memref<8x128xf32, #tpu.memory_space<vmem>>, vector<8x128xf32>
    %98 = arith.index_cast %c3_i32 : i32 to index
    %c0_46 = arith.constant 0 : index
    %c0_47 = arith.constant 0 : index
    %99 = vector.load %arg2[%98, %c0_46, %c0_47] : memref<8x8x512xbf16, #tpu.memory_space<vmem>>, vector<1x8x512xbf16>
    %100 = vector.shape_cast %99 : vector<1x8x512xbf16> to vector<8x512xbf16>
    %101 = arith.extf %100 : vector<8x512xbf16> to vector<8x512xf32>
    %102 = arith.truncf %97 : vector<8x128xf32> to vector<8x128xbf16>
    %cst_48 = arith.constant dense<0.000000e+00> : vector<8x512xf32>
    %103 = tpu.matmul %102, %3, %cst_48 {dimension_numbers = #tpu.dot_dimension_numbers<[1], [0], [0], [1], [0, 0, 1, 1], [], []>} : vector<8x128xbf16>, vector<128x512xbf16>, vector<8x512xf32> -> vector<8x512xf32>
    %104 = arith.addf %101, %103 : vector<8x512xf32>
    %105 = vector.extract_strided_slice %104 {offsets = [0, 0], sizes = [8, 384], strides = [1, 1]} : vector<8x512xf32> to vector<8x384xf32>
    %106 = arith.negf %105 : vector<8x384xf32>
    %107 = math.exp %106 : vector<8x384xf32>
    %cst_49 = arith.constant 1.000000e+00 : f32
    %108 = vector.broadcast %cst_49 : f32 to vector<8x384xf32>
    %109 = arith.addf %108, %107 : vector<8x384xf32>
    %110 = arith.divf %108, %109 : vector<8x384xf32>
    %111 = vector.extract_strided_slice %110 {offsets = [0, 0], sizes = [8, 128], strides = [1, 1]} : vector<8x384xf32> to vector<8x128xf32>
    %112 = vector.extract_strided_slice %110 {offsets = [0, 128], sizes = [8, 128], strides = [1, 1]} : vector<8x384xf32> to vector<8x128xf32>
    %113 = vector.extract_strided_slice %110 {offsets = [0, 256], sizes = [8, 128], strides = [1, 1]} : vector<8x384xf32> to vector<8x128xf32>
    %114 = vector.extract_strided_slice %104 {offsets = [0, 384], sizes = [8, 128], strides = [1, 1]} : vector<8x512xf32> to vector<8x128xf32>
    %115 = math.tanh %114 : vector<8x128xf32>
    %c0_50 = arith.constant 0 : index
    %c0_51 = arith.constant 0 : index
    %116 = vector.load %arg6[%c0_50, %c0_51] : memref<8x128xf32, #tpu.memory_space<vmem>>, vector<8x128xf32>
    %117 = arith.mulf %112, %116 : vector<8x128xf32>
    %118 = arith.mulf %111, %115 : vector<8x128xf32>
    %119 = arith.addf %117, %118 : vector<8x128xf32>
    %120 = math.tanh %119 : vector<8x128xf32>
    %121 = arith.mulf %113, %120 : vector<8x128xf32>
    %c0_52 = arith.constant 0 : index
    %c0_53 = arith.constant 0 : index
    %122 = vector.load %arg6[%c0_52, %c0_53] : memref<8x128xf32, #tpu.memory_space<vmem>>, vector<8x128xf32>
    tpu.vector_store %arg6[%c0_52, %c0_53], %119 {strides = array<i32>} : memref<8x128xf32, #tpu.memory_space<vmem>>, vector<8x128xf32>,
    %c0_54 = arith.constant 0 : index
    %c0_55 = arith.constant 0 : index
    %123 = vector.load %arg5[%c0_54, %c0_55] : memref<8x128xf32, #tpu.memory_space<vmem>>, vector<8x128xf32>
    tpu.vector_store %arg5[%c0_54, %c0_55], %121 {strides = array<i32>} : memref<8x128xf32, #tpu.memory_space<vmem>>, vector<8x128xf32>,
    %124 = arith.index_cast %c3_i32 : i32 to index
    %c0_56 = arith.constant 0 : index
    %c0_57 = arith.constant 0 : index
    %125 = vector.load %arg4[%124, %c0_56, %c0_57] : memref<8x8x128xf32, #tpu.memory_space<vmem>>, vector<1x8x128xf32>
    %126 = vector.shape_cast %125 : vector<1x8x128xf32> to vector<8x128xf32>
    %127 = vector.shape_cast %121 : vector<8x128xf32> to vector<1x8x128xf32>
    tpu.vector_store %arg4[%124, %c0_56, %c0_57], %127 {strides = array<i32>} : memref<8x8x128xf32, #tpu.memory_space<vmem>>, vector<1x8x128xf32>,
    %c4_i32 = arith.constant 4 : i32
    %c0_58 = arith.constant 0 : index
    %c0_59 = arith.constant 0 : index
    %128 = vector.load %arg5[%c0_58, %c0_59] : memref<8x128xf32, #tpu.memory_space<vmem>>, vector<8x128xf32>
    %129 = arith.index_cast %c4_i32 : i32 to index
    %c0_60 = arith.constant 0 : index
    %c0_61 = arith.constant 0 : index
    %130 = vector.load %arg2[%129, %c0_60, %c0_61] : memref<8x8x512xbf16, #tpu.memory_space<vmem>>, vector<1x8x512xbf16>
    %131 = vector.shape_cast %130 : vector<1x8x512xbf16> to vector<8x512xbf16>
    %132 = arith.extf %131 : vector<8x512xbf16> to vector<8x512xf32>
    %133 = arith.truncf %128 : vector<8x128xf32> to vector<8x128xbf16>
    %cst_62 = arith.constant dense<0.000000e+00> : vector<8x512xf32>
    %134 = tpu.matmul %133, %3, %cst_62 {dimension_numbers = #tpu.dot_dimension_numbers<[1], [0], [0], [1], [0, 0, 1, 1], [], []>} : vector<8x128xbf16>, vector<128x512xbf16>, vector<8x512xf32> -> vector<8x512xf32>
    %135 = arith.addf %132, %134 : vector<8x512xf32>
    %136 = vector.extract_strided_slice %135 {offsets = [0, 0], sizes = [8, 384], strides = [1, 1]} : vector<8x512xf32> to vector<8x384xf32>
    %137 = arith.negf %136 : vector<8x384xf32>
    %138 = math.exp %137 : vector<8x384xf32>
    %cst_63 = arith.constant 1.000000e+00 : f32
    %139 = vector.broadcast %cst_63 : f32 to vector<8x384xf32>
    %140 = arith.addf %139, %138 : vector<8x384xf32>
    %141 = arith.divf %139, %140 : vector<8x384xf32>
    %142 = vector.extract_strided_slice %141 {offsets = [0, 0], sizes = [8, 128], strides = [1, 1]} : vector<8x384xf32> to vector<8x128xf32>
    %143 = vector.extract_strided_slice %141 {offsets = [0, 128], sizes = [8, 128], strides = [1, 1]} : vector<8x384xf32> to vector<8x128xf32>
    %144 = vector.extract_strided_slice %141 {offsets = [0, 256], sizes = [8, 128], strides = [1, 1]} : vector<8x384xf32> to vector<8x128xf32>
    %145 = vector.extract_strided_slice %135 {offsets = [0, 384], sizes = [8, 128], strides = [1, 1]} : vector<8x512xf32> to vector<8x128xf32>
    %146 = math.tanh %145 : vector<8x128xf32>
    %c0_64 = arith.constant 0 : index
    %c0_65 = arith.constant 0 : index
    %147 = vector.load %arg6[%c0_64, %c0_65] : memref<8x128xf32, #tpu.memory_space<vmem>>, vector<8x128xf32>
    %148 = arith.mulf %143, %147 : vector<8x128xf32>
    %149 = arith.mulf %142, %146 : vector<8x128xf32>
    %150 = arith.addf %148, %149 : vector<8x128xf32>
    %151 = math.tanh %150 : vector<8x128xf32>
    %152 = arith.mulf %144, %151 : vector<8x128xf32>
    %c0_66 = arith.constant 0 : index
    %c0_67 = arith.constant 0 : index
    %153 = vector.load %arg6[%c0_66, %c0_67] : memref<8x128xf32, #tpu.memory_space<vmem>>, vector<8x128xf32>
    tpu.vector_store %arg6[%c0_66, %c0_67], %150 {strides = array<i32>} : memref<8x128xf32, #tpu.memory_space<vmem>>, vector<8x128xf32>,
    %c0_68 = arith.constant 0 : index
    %c0_69 = arith.constant 0 : index
    %154 = vector.load %arg5[%c0_68, %c0_69] : memref<8x128xf32, #tpu.memory_space<vmem>>, vector<8x128xf32>
    tpu.vector_store %arg5[%c0_68, %c0_69], %152 {strides = array<i32>} : memref<8x128xf32, #tpu.memory_space<vmem>>, vector<8x128xf32>,
    %155 = arith.index_cast %c4_i32 : i32 to index
    %c0_70 = arith.constant 0 : index
    %c0_71 = arith.constant 0 : index
    %156 = vector.load %arg4[%155, %c0_70, %c0_71] : memref<8x8x128xf32, #tpu.memory_space<vmem>>, vector<1x8x128xf32>
    %157 = vector.shape_cast %156 : vector<1x8x128xf32> to vector<8x128xf32>
    %158 = vector.shape_cast %152 : vector<8x128xf32> to vector<1x8x128xf32>
    tpu.vector_store %arg4[%155, %c0_70, %c0_71], %158 {strides = array<i32>} : memref<8x8x128xf32, #tpu.memory_space<vmem>>, vector<1x8x128xf32>,
    %c5_i32 = arith.constant 5 : i32
    %c0_72 = arith.constant 0 : index
    %c0_73 = arith.constant 0 : index
    %159 = vector.load %arg5[%c0_72, %c0_73] : memref<8x128xf32, #tpu.memory_space<vmem>>, vector<8x128xf32>
    %160 = arith.index_cast %c5_i32 : i32 to index
    %c0_74 = arith.constant 0 : index
    %c0_75 = arith.constant 0 : index
    %161 = vector.load %arg2[%160, %c0_74, %c0_75] : memref<8x8x512xbf16, #tpu.memory_space<vmem>>, vector<1x8x512xbf16>
    %162 = vector.shape_cast %161 : vector<1x8x512xbf16> to vector<8x512xbf16>
    %163 = arith.extf %162 : vector<8x512xbf16> to vector<8x512xf32>
    %164 = arith.truncf %159 : vector<8x128xf32> to vector<8x128xbf16>
    %cst_76 = arith.constant dense<0.000000e+00> : vector<8x512xf32>
    %165 = tpu.matmul %164, %3, %cst_76 {dimension_numbers = #tpu.dot_dimension_numbers<[1], [0], [0], [1], [0, 0, 1, 1], [], []>} : vector<8x128xbf16>, vector<128x512xbf16>, vector<8x512xf32> -> vector<8x512xf32>
    %166 = arith.addf %163, %165 : vector<8x512xf32>
    %167 = vector.extract_strided_slice %166 {offsets = [0, 0], sizes = [8, 384], strides = [1, 1]} : vector<8x512xf32> to vector<8x384xf32>
    %168 = arith.negf %167 : vector<8x384xf32>
    %169 = math.exp %168 : vector<8x384xf32>
    %cst_77 = arith.constant 1.000000e+00 : f32
    %170 = vector.broadcast %cst_77 : f32 to vector<8x384xf32>
    %171 = arith.addf %170, %169 : vector<8x384xf32>
    %172 = arith.divf %170, %171 : vector<8x384xf32>
    %173 = vector.extract_strided_slice %172 {offsets = [0, 0], sizes = [8, 128], strides = [1, 1]} : vector<8x384xf32> to vector<8x128xf32>
    %174 = vector.extract_strided_slice %172 {offsets = [0, 128], sizes = [8, 128], strides = [1, 1]} : vector<8x384xf32> to vector<8x128xf32>
    %175 = vector.extract_strided_slice %172 {offsets = [0, 256], sizes = [8, 128], strides = [1, 1]} : vector<8x384xf32> to vector<8x128xf32>
    %176 = vector.extract_strided_slice %166 {offsets = [0, 384], sizes = [8, 128], strides = [1, 1]} : vector<8x512xf32> to vector<8x128xf32>
    %177 = math.tanh %176 : vector<8x128xf32>
    %c0_78 = arith.constant 0 : index
    %c0_79 = arith.constant 0 : index
    %178 = vector.load %arg6[%c0_78, %c0_79] : memref<8x128xf32, #tpu.memory_space<vmem>>, vector<8x128xf32>
    %179 = arith.mulf %174, %178 : vector<8x128xf32>
    %180 = arith.mulf %173, %177 : vector<8x128xf32>
    %181 = arith.addf %179, %180 : vector<8x128xf32>
    %182 = math.tanh %181 : vector<8x128xf32>
    %183 = arith.mulf %175, %182 : vector<8x128xf32>
    %c0_80 = arith.constant 0 : index
    %c0_81 = arith.constant 0 : index
    %184 = vector.load %arg6[%c0_80, %c0_81] : memref<8x128xf32, #tpu.memory_space<vmem>>, vector<8x128xf32>
    tpu.vector_store %arg6[%c0_80, %c0_81], %181 {strides = array<i32>} : memref<8x128xf32, #tpu.memory_space<vmem>>, vector<8x128xf32>,
    %c0_82 = arith.constant 0 : index
    %c0_83 = arith.constant 0 : index
    %185 = vector.load %arg5[%c0_82, %c0_83] : memref<8x128xf32, #tpu.memory_space<vmem>>, vector<8x128xf32>
    tpu.vector_store %arg5[%c0_82, %c0_83], %183 {strides = array<i32>} : memref<8x128xf32, #tpu.memory_space<vmem>>, vector<8x128xf32>,
    %186 = arith.index_cast %c5_i32 : i32 to index
    %c0_84 = arith.constant 0 : index
    %c0_85 = arith.constant 0 : index
    %187 = vector.load %arg4[%186, %c0_84, %c0_85] : memref<8x8x128xf32, #tpu.memory_space<vmem>>, vector<1x8x128xf32>
    %188 = vector.shape_cast %187 : vector<1x8x128xf32> to vector<8x128xf32>
    %189 = vector.shape_cast %183 : vector<8x128xf32> to vector<1x8x128xf32>
    tpu.vector_store %arg4[%186, %c0_84, %c0_85], %189 {strides = array<i32>} : memref<8x8x128xf32, #tpu.memory_space<vmem>>, vector<1x8x128xf32>,
    %c6_i32 = arith.constant 6 : i32
    %c0_86 = arith.constant 0 : index
    %c0_87 = arith.constant 0 : index
    %190 = vector.load %arg5[%c0_86, %c0_87] : memref<8x128xf32, #tpu.memory_space<vmem>>, vector<8x128xf32>
    %191 = arith.index_cast %c6_i32 : i32 to index
    %c0_88 = arith.constant 0 : index
    %c0_89 = arith.constant 0 : index
    %192 = vector.load %arg2[%191, %c0_88, %c0_89] : memref<8x8x512xbf16, #tpu.memory_space<vmem>>, vector<1x8x512xbf16>
    %193 = vector.shape_cast %192 : vector<1x8x512xbf16> to vector<8x512xbf16>
    %194 = arith.extf %193 : vector<8x512xbf16> to vector<8x512xf32>
    %195 = arith.truncf %190 : vector<8x128xf32> to vector<8x128xbf16>
    %cst_90 = arith.constant dense<0.000000e+00> : vector<8x512xf32>
    %196 = tpu.matmul %195, %3, %cst_90 {dimension_numbers = #tpu.dot_dimension_numbers<[1], [0], [0], [1], [0, 0, 1, 1], [], []>} : vector<8x128xbf16>, vector<128x512xbf16>, vector<8x512xf32> -> vector<8x512xf32>
    %197 = arith.addf %194, %196 : vector<8x512xf32>
    %198 = vector.extract_strided_slice %197 {offsets = [0, 0], sizes = [8, 384], strides = [1, 1]} : vector<8x512xf32> to vector<8x384xf32>
    %199 = arith.negf %198 : vector<8x384xf32>
    %200 = math.exp %199 : vector<8x384xf32>
    %cst_91 = arith.constant 1.000000e+00 : f32
    %201 = vector.broadcast %cst_91 : f32 to vector<8x384xf32>
    %202 = arith.addf %201, %200 : vector<8x384xf32>
    %203 = arith.divf %201, %202 : vector<8x384xf32>
    %204 = vector.extract_strided_slice %203 {offsets = [0, 0], sizes = [8, 128], strides = [1, 1]} : vector<8x384xf32> to vector<8x128xf32>
    %205 = vector.extract_strided_slice %203 {offsets = [0, 128], sizes = [8, 128], strides = [1, 1]} : vector<8x384xf32> to vector<8x128xf32>
    %206 = vector.extract_strided_slice %203 {offsets = [0, 256], sizes = [8, 128], strides = [1, 1]} : vector<8x384xf32> to vector<8x128xf32>
    %207 = vector.extract_strided_slice %197 {offsets = [0, 384], sizes = [8, 128], strides = [1, 1]} : vector<8x512xf32> to vector<8x128xf32>
    %208 = math.tanh %207 : vector<8x128xf32>
    %c0_92 = arith.constant 0 : index
    %c0_93 = arith.constant 0 : index
    %209 = vector.load %arg6[%c0_92, %c0_93] : memref<8x128xf32, #tpu.memory_space<vmem>>, vector<8x128xf32>
    %210 = arith.mulf %205, %209 : vector<8x128xf32>
    %211 = arith.mulf %204, %208 : vector<8x128xf32>
    %212 = arith.addf %210, %211 : vector<8x128xf32>
    %213 = math.tanh %212 : vector<8x128xf32>
    %214 = arith.mulf %206, %213 : vector<8x128xf32>
    %c0_94 = arith.constant 0 : index
    %c0_95 = arith.constant 0 : index
    %215 = vector.load %arg6[%c0_94, %c0_95] : memref<8x128xf32, #tpu.memory_space<vmem>>, vector<8x128xf32>
    tpu.vector_store %arg6[%c0_94, %c0_95], %212 {strides = array<i32>} : memref<8x128xf32, #tpu.memory_space<vmem>>, vector<8x128xf32>,
    %c0_96 = arith.constant 0 : index
    %c0_97 = arith.constant 0 : index
    %216 = vector.load %arg5[%c0_96, %c0_97] : memref<8x128xf32, #tpu.memory_space<vmem>>, vector<8x128xf32>
    tpu.vector_store %arg5[%c0_96, %c0_97], %214 {strides = array<i32>} : memref<8x128xf32, #tpu.memory_space<vmem>>, vector<8x128xf32>,
    %217 = arith.index_cast %c6_i32 : i32 to index
    %c0_98 = arith.constant 0 : index
    %c0_99 = arith.constant 0 : index
    %218 = vector.load %arg4[%217, %c0_98, %c0_99] : memref<8x8x128xf32, #tpu.memory_space<vmem>>, vector<1x8x128xf32>
    %219 = vector.shape_cast %218 : vector<1x8x128xf32> to vector<8x128xf32>
    %220 = vector.shape_cast %214 : vector<8x128xf32> to vector<1x8x128xf32>
    tpu.vector_store %arg4[%217, %c0_98, %c0_99], %220 {strides = array<i32>} : memref<8x8x128xf32, #tpu.memory_space<vmem>>, vector<1x8x128xf32>,
    %c7_i32 = arith.constant 7 : i32
    %c0_100 = arith.constant 0 : index
    %c0_101 = arith.constant 0 : index
    %221 = vector.load %arg5[%c0_100, %c0_101] : memref<8x128xf32, #tpu.memory_space<vmem>>, vector<8x128xf32>
    %222 = arith.index_cast %c7_i32 : i32 to index
    %c0_102 = arith.constant 0 : index
    %c0_103 = arith.constant 0 : index
    %223 = vector.load %arg2[%222, %c0_102, %c0_103] : memref<8x8x512xbf16, #tpu.memory_space<vmem>>, vector<1x8x512xbf16>
    %224 = vector.shape_cast %223 : vector<1x8x512xbf16> to vector<8x512xbf16>
    %225 = arith.extf %224 : vector<8x512xbf16> to vector<8x512xf32>
    %226 = arith.truncf %221 : vector<8x128xf32> to vector<8x128xbf16>
    %cst_104 = arith.constant dense<0.000000e+00> : vector<8x512xf32>
    %227 = tpu.matmul %226, %3, %cst_104 {dimension_numbers = #tpu.dot_dimension_numbers<[1], [0], [0], [1], [0, 0, 1, 1], [], []>} : vector<8x128xbf16>, vector<128x512xbf16>, vector<8x512xf32> -> vector<8x512xf32>
    %228 = arith.addf %225, %227 : vector<8x512xf32>
    %229 = vector.extract_strided_slice %228 {offsets = [0, 0], sizes = [8, 384], strides = [1, 1]} : vector<8x512xf32> to vector<8x384xf32>
    %230 = arith.negf %229 : vector<8x384xf32>
    %231 = math.exp %230 : vector<8x384xf32>
    %cst_105 = arith.constant 1.000000e+00 : f32
    %232 = vector.broadcast %cst_105 : f32 to vector<8x384xf32>
    %233 = arith.addf %232, %231 : vector<8x384xf32>
    %234 = arith.divf %232, %233 : vector<8x384xf32>
    %235 = vector.extract_strided_slice %234 {offsets = [0, 0], sizes = [8, 128], strides = [1, 1]} : vector<8x384xf32> to vector<8x128xf32>
    %236 = vector.extract_strided_slice %234 {offsets = [0, 128], sizes = [8, 128], strides = [1, 1]} : vector<8x384xf32> to vector<8x128xf32>
    %237 = vector.extract_strided_slice %234 {offsets = [0, 256], sizes = [8, 128], strides = [1, 1]} : vector<8x384xf32> to vector<8x128xf32>
    %238 = vector.extract_strided_slice %228 {offsets = [0, 384], sizes = [8, 128], strides = [1, 1]} : vector<8x512xf32> to vector<8x128xf32>
    %239 = math.tanh %238 : vector<8x128xf32>
    %c0_106 = arith.constant 0 : index
    %c0_107 = arith.constant 0 : index
    %240 = vector.load %arg6[%c0_106, %c0_107] : memref<8x128xf32, #tpu.memory_space<vmem>>, vector<8x128xf32>
    %241 = arith.mulf %236, %240 : vector<8x128xf32>
    %242 = arith.mulf %235, %239 : vector<8x128xf32>
    %243 = arith.addf %241, %242 : vector<8x128xf32>
    %244 = math.tanh %243 : vector<8x128xf32>
    %245 = arith.mulf %237, %244 : vector<8x128xf32>
    %c0_108 = arith.constant 0 : index
    %c0_109 = arith.constant 0 : index
    %246 = vector.load %arg6[%c0_108, %c0_109] : memref<8x128xf32, #tpu.memory_space<vmem>>, vector<8x128xf32>
    tpu.vector_store %arg6[%c0_108, %c0_109], %243 {strides = array<i32>} : memref<8x128xf32, #tpu.memory_space<vmem>>, vector<8x128xf32>,
    %c0_110 = arith.constant 0 : index
    %c0_111 = arith.constant 0 : index
    %247 = vector.load %arg5[%c0_110, %c0_111] : memref<8x128xf32, #tpu.memory_space<vmem>>, vector<8x128xf32>
    tpu.vector_store %arg5[%c0_110, %c0_111], %245 {strides = array<i32>} : memref<8x128xf32, #tpu.memory_space<vmem>>, vector<8x128xf32>,
    %248 = arith.index_cast %c7_i32 : i32 to index
    %c0_112 = arith.constant 0 : index
    %c0_113 = arith.constant 0 : index
    %249 = vector.load %arg4[%248, %c0_112, %c0_113] : memref<8x8x128xf32, #tpu.memory_space<vmem>>, vector<1x8x128xf32>
    %250 = vector.shape_cast %249 : vector<1x8x128xf32> to vector<8x128xf32>
    %251 = vector.shape_cast %245 : vector<8x128xf32> to vector<1x8x128xf32>
    tpu.vector_store %arg4[%248, %c0_112, %c0_113], %251 {strides = array<i32>} : memref<8x8x128xf32, #tpu.memory_space<vmem>>, vector<1x8x128xf32>,
    %c8_i32 = arith.constant 8 : i32
    return
  }
  func.func @transform_0(%arg0: i32, %arg1: i32) -> (i32, i32, i32) {
    %c0_i32 = arith.constant 0 : i32
    %c0_i32_0 = arith.constant 0 : i32
    return %arg1, %arg0, %c0_i32 : i32, i32, i32
  }
  func.func @transform_1(%arg0: i32, %arg1: i32) -> (i32, i32) {
    %c0_i32 = arith.constant 0 : i32
    %c0_i32_0 = arith.constant 0 : i32
    %c0_i32_1 = arith.constant 0 : i32
    return %c0_i32, %c0_i32_0 : i32, i32
  }
  func.func @transform_2(%arg0: i32, %arg1: i32) -> (i32, i32, i32) {
    %c0_i32 = arith.constant 0 : i32
    %c0_i32_0 = arith.constant 0 : i32
    return %arg1, %arg0, %c0_i32 : i32, i32, i32
  }
}

</mosaic_0001>

<llo_original>
// kernel: seq2seq_blocks_forward.2
$region0: #{seq2seq_blocks_forward.2}
  #allocation0 [shape = 'u32[]', space=smem, size = 0x4, offset = 0x4, fixed_abs, tag = 'smem constant byte address 0x4 - core index']
  #allocation1 [shape = 'u32[144,128]{1,0:T(1,128)}', space=vmem, size = 0x12000, scoped, tag = 'internal scratch']
  #allocation2 [shape = 'f32[8,128]{1,0:T(8,128)}', space=vmem, size = 0x1000, scoped, tag = 'scratch operand']
  #allocation3 [shape = 'f32[8,128]{1,0:T(8,128)}', space=vmem, size = 0x1000, scoped, tag = 'scratch operand']
  %s0 = inlined_call_operand.vmem [shape: bf16[8,8,512], index: 0, kind: input, shape index: {}]
  %s1 = inlined_call_operand.hbm [shape: bf16[128,512], index: 1, kind: input, shape index: {}]
  %s2 = inlined_call_operand.vmem [shape: bf16[8,8,128], index: 2, kind: output, shape index: {}]
  %s3 = sld [smem:[#allocation0]]
  $region26: #{seq2seq_blocks_forward.2} parent=0
    _
  %s5 = ssub.s32 1, %s3
  %s6 = scalar_select 0, %s5, %s3
  $region1: #{seq2seq_blocks_forward.2} parent=0
    #allocation4 [shape = 'u8[131072]{0}', space=vmem, size = 0x20000, scoped, tag = 'input window, operand 1, single buffered']
    #allocation5 [shape = 's32[1]{0}', space=sflag, size = 0x4, scoped, tag = 'scoped memory for seq2seq_blocks_forward.2']
    %7 = vsyncpa [#allocation5], 0
    // Predicated region
    $region2: #{seq2seq_blocks_forward.2} parent=1 // pred_check
      _
    $region3: #{seq2seq_blocks_forward.2} parent=1 // pred_check_branch
      %9 = sbr.rel (0) target = $region5
    $region4: #{seq2seq_blocks_forward.2} parent=1 // pred_region
      _
    $region5: #{seq2seq_blocks_forward.2} parent=1 // pred_fallthru
      _
    // Predicated region
    $region6: #{seq2seq_blocks_forward.2} parent=1 // pred_check
      _
    $region7: #{seq2seq_blocks_forward.2} parent=1 // pred_check_branch
      %11 = sbr.rel (0) target = $region9
    $region8: #{seq2seq_blocks_forward.2} parent=1 // pred_region
      %s13 = ssub.s32 4096, 4096
      %14 = vsyncadd [#allocation5], %s13
      %s15 = sshll.u32 [#allocation4], 4
      %s16 = int_to_ptr.vmem [resolvable:$true] %s15
      %21 = dma.hbm_to_vmem [thread:$0]  %s1, 4096, %s16, [#allocation5], 256, 256, 16
    $region9: #{seq2seq_blocks_forward.2} parent=1 // pred_fallthru
      _
    // Predicated region
    $region10: #{seq2seq_blocks_forward.2} parent=1 // pred_check
      _
    $region11: #{seq2seq_blocks_forward.2} parent=1 // pred_check_branch
      %23 = sbr.rel (0) target = $region13
    $region12: #{seq2seq_blocks_forward.2} parent=1 // pred_region
      %24 = dma.done [#allocation5], 4096
    $region13: #{seq2seq_blocks_forward.2} parent=1 // pred_fallthru
      _
    %p26 = scmp.eq.s32.totalorder 0, 0
    // Predicated region
    $region14: #{seq2seq_blocks_forward.2} parent=1 // pred_check
      %p27 = pneg %p26
    $region15: #{seq2seq_blocks_forward.2} parent=1 // pred_check_branch
      %29 = sbr.rel (%p27) target = $region17
    $region16: #{seq2seq_blocks_forward.2} parent=1 // pred_region
      %30 = vst [vmem:[#allocation2] sm:$0xff] 0.0
      %31 = vst [vmem:[#allocation3] sm:$0xff] 0.0
    $region17: #{seq2seq_blocks_forward.2} parent=1 // pred_fallthru
      _
    %v32 = vld [vmem:[#allocation4] sm:$0xff]
    %v33 = vld [vmem:[#allocation4 + $0x8] sm:$0xff]
    %v34 = vld [vmem:[#allocation4 + $0x10] sm:$0xff]
    %v35 = vld [vmem:[#allocation4 + $0x18] sm:$0xff]
    %v36 = vld [vmem:[#allocation4 + $0x20] sm:$0xff]
    %v37 = vld [vmem:[#allocation4 + $0x28] sm:$0xff]
    %v38 = vld [vmem:[#allocation4 + $0x30] sm:$0xff]
    %v39 = vld [vmem:[#allocation4 + $0x38] sm:$0xff]
    %v40 = vld [vmem:[#allocation4 + $0x40] sm:$0xff]
    %v41 = vld [vmem:[#allocation4 + $0x48] sm:$0xff]
    %v42 = vld [vmem:[#allocation4 + $0x50] sm:$0xff]
    %v43 = vld [vmem:[#allocation4 + $0x58] sm:$0xff]
    %v44 = vld [vmem:[#allocation4 + $0x60] sm:$0xff]
    %v45 = vld [vmem:[#allocation4 + $0x68] sm:$0xff]
    %v46 = vld [vmem:[#allocation4 + $0x70] sm:$0xff]
    %v47 = vld [vmem:[#allocation4 + $0x78] sm:$0xff]
    %v48 = vld [vmem:[#allocation4 + $0x80] sm:$0xff]
    %v49 = vld [vmem:[#allocation4 + $0x88] sm:$0xff]
    %v50 = vld [vmem:[#allocation4 + $0x90] sm:$0xff]
    %v51 = vld [vmem:[#allocation4 + $0x98] sm:$0xff]
    %v52 = vld [vmem:[#allocation4 + $0xa0] sm:$0xff]
    %v53 = vld [vmem:[#allocation4 + $0xa8] sm:$0xff]
    %v54 = vld [vmem:[#allocation4 + $0xb0] sm:$0xff]
    %v55 = vld [vmem:[#allocation4 + $0xb8] sm:$0xff]
    %v56 = vld [vmem:[#allocation4 + $0xc0] sm:$0xff]
    %v57 = vld [vmem:[#allocation4 + $0xc8] sm:$0xff]
    %v58 = vld [vmem:[#allocation4 + $0xd0] sm:$0xff]
    %v59 = vld [vmem:[#allocation4 + $0xd8] sm:$0xff]
    %v60 = vld [vmem:[#allocation4 + $0xe0] sm:$0xff]
    %v61 = vld [vmem:[#allocation4 + $0xe8] sm:$0xff]
    %v62 = vld [vmem:[#allocation4 + $0xf0] sm:$0xff]
    %v63 = vld [vmem:[#allocation4 + $0xf8] sm:$0xff]
    %v64 = vld [vmem:[#allocation2] sm:$0xff]
    %v65 = vld [vmem:[%s0] sm:$0xff]
    %v66 = vld [vmem:[%s0 + $0x8] sm:$0xff]
    %v67 = vunpack.c.l.bf16 %v65
    %v68 = vunpack.c.h.bf16 %v65
    %v69 = vunpack.c.l.bf16 %v66
    %v70 = vunpack.c.h.bf16 %v66
    %v71 = vpack.c.bf16 %v64, %v64
    %v104 = vunpack.c.l.b16 %v32
    %v105 = vunpack.c.h.b16 %v32
    %v106 = vunpack.c.l.b16 %v33
    %v107 = vunpack.c.h.b16 %v33
    %v108 = vunpack.c.l.b16 %v34
    %v109 = vunpack.c.h.b16 %v34
    %v110 = vunpack.c.l.b16 %v35
    %v111 = vunpack.c.h.b16 %v35
    %v112 = vunpack.c.l.b16 %v36
    %v113 = vunpack.c.h.b16 %v36
    %v114 = vunpack.c.l.b16 %v37
    %v115 = vunpack.c.h.b16 %v37
    %v116 = vunpack.c.l.b16 %v38
    %v117 = vunpack.c.h.b16 %v38
    %v118 = vunpack.c.l.b16 %v39
    %v119 = vunpack.c.h.b16 %v39
    %v120 = vunpack.c.l.b16 %v40
    %v121 = vunpack.c.h.b16 %v40
    %v122 = vunpack.c.l.b16 %v41
    %v123 = vunpack.c.h.b16 %v41
    %v124 = vunpack.c.l.b16 %v42
    %v125 = vunpack.c.h.b16 %v42
    %v126 = vunpack.c.l.b16 %v43
    %v127 = vunpack.c.h.b16 %v43
    %v128 = vunpack.c.l.b16 %v44
    %v129 = vunpack.c.h.b16 %v44
    %v130 = vunpack.c.l.b16 %v45
    %v131 = vunpack.c.h.b16 %v45
    %v132 = vunpack.c.l.b16 %v46
    %v133 = vunpack.c.h.b16 %v46
    %v134 = vunpack.c.l.b16 %v47
    %v135 = vunpack.c.h.b16 %v47
    %v136 = vunpack.c.l.b16 %v48
    %v137 = vunpack.c.h.b16 %v48
    %v138 = vunpack.c.l.b16 %v49
    %v139 = vunpack.c.h.b16 %v49
    %v140 = vunpack.c.l.b16 %v50
    %v141 = vunpack.c.h.b16 %v50
    %v142 = vunpack.c.l.b16 %v51
    %v143 = vunpack.c.h.b16 %v51
    %v144 = vunpack.c.l.b16 %v52
    %v145 = vunpack.c.h.b16 %v52
    %v146 = vunpack.c.l.b16 %v53
    %v147 = vunpack.c.h.b16 %v53
    %v148 = vunpack.c.l.b16 %v54
    %v149 = vunpack.c.h.b16 %v54
    %v150 = vunpack.c.l.b16 %v55
    %v151 = vunpack.c.h.b16 %v55
    %v152 = vunpack.c.l.b16 %v56
    %v153 = vunpack.c.h.b16 %v56
    %v154 = vunpack.c.l.b16 %v57
    %v155 = vunpack.c.h.b16 %v57
    %v156 = vunpack.c.l.b16 %v58
    %v157 = vunpack.c.h.b16 %v58
    %v158 = vunpack.c.l.b16 %v59
    %v159 = vunpack.c.h.b16 %v59
    %v160 = vunpack.c.l.b16 %v60
    %v161 = vunpack.c.h.b16 %v60
    %v162 = vunpack.c.l.b16 %v61
    %v163 = vunpack.c.h.b16 %v61
    %v164 = vunpack.c.l.b16 %v62
    %v165 = vunpack.c.h.b16 %v62
    %v166 = vunpack.c.l.b16 %v63
    %v167 = vunpack.c.h.b16 %v63
    %v168 = vpack.c.b16 %v108, %v104
    %v169 = vpack.c.b16 %v109, %v105
    %v170 = vpack.c.b16 %v110, %v106
    %v171 = vpack.c.b16 %v111, %v107
    %v172 = vpack.c.b16 %v116, %v112
    %v173 = vpack.c.b16 %v117, %v113
    %v174 = vpack.c.b16 %v118, %v114
    %v175 = vpack.c.b16 %v119, %v115
    %v176 = vpack.c.b16 %v124, %v120
    %v177 = vpack.c.b16 %v125, %v121
    %v178 = vpack.c.b16 %v126, %v122
    %v179 = vpack.c.b16 %v127, %v123
    %v180 = vpack.c.b16 %v132, %v128
    %v181 = vpack.c.b16 %v133, %v129
    %v182 = vpack.c.b16 %v134, %v130
    %v183 = vpack.c.b16 %v135, %v131
    %v184 = vpack.c.b16 %v140, %v136
    %v185 = vpack.c.b16 %v141, %v137
    %v186 = vpack.c.b16 %v142, %v138
    %v187 = vpack.c.b16 %v143, %v139
    %v188 = vpack.c.b16 %v148, %v144
    %v189 = vpack.c.b16 %v149, %v145
    %v190 = vpack.c.b16 %v150, %v146
    %v191 = vpack.c.b16 %v151, %v147
    %v192 = vpack.c.b16 %v156, %v152
    %v193 = vpack.c.b16 %v157, %v153
    %v194 = vpack.c.b16 %v158, %v154
    %v195 = vpack.c.b16 %v159, %v155
    %v196 = vpack.c.b16 %v164, %v160
    %v197 = vpack.c.b16 %v165, %v161
    %v198 = vpack.c.b16 %v166, %v162
    %v199 = vpack.c.b16 %v167, %v163
    %232 = vmatprep.subr.bf16.mxu0 %v197
    %233 = vmatpush1.bf16.msra.mxu0 %v196
    %234 = vmatprep.subr.bf16.mxu0 %v193
    %235 = vmatpush1.bf16.msra.mxu0 %v192
    %236 = vmatprep.subr.bf16.mxu0 %v189
    %237 = vmatpush1.bf16.msra.mxu0 %v188
    %238 = vmatprep.subr.bf16.mxu0 %v185
    %239 = vmatpush1.bf16.msra.mxu0 %v184
    %240 = vmatprep.subr.bf16.mxu0 %v181
    %241 = vmatpush1.bf16.msra.mxu0 %v180
    %242 = vmatprep.subr.bf16.mxu0 %v177
    %243 = vmatpush1.bf16.msra.mxu0 %v176
    %244 = vmatprep.subr.bf16.mxu0 %v173
    %245 = vmatpush1.bf16.msra.mxu0 %v172
    %246 = vmatprep.subr.bf16.mxu0 %v169
    %247 = vmatpush1.bf16.msra.mxu0 %v168
    %248 = vmatprep.subr.bf16.mxu0 0
    %249 = vmatpush2.bf16.msra.mxu0 0
    %250 = vmatprep.subr.bf16.mxu0 0
    %251 = vmatpush2.bf16.msra.mxu0 0
    %252 = vmatprep.subr.bf16.mxu0 0
    %253 = vmatpush2.bf16.msra.mxu0 0
    %254 = vmatprep.subr.bf16.mxu0 0
    %255 = vmatpush2.bf16.msra.mxu0 0
    %256 = vmatprep.subr.bf16.mxu0 0
    %257 = vmatpush2.bf16.msra.mxu0 0
    %258 = vmatprep.subr.bf16.mxu0 0
    %259 = vmatpush2.bf16.msra.mxu0 0
    %260 = vmatprep.subr.bf16.mxu0 0
    %261 = vmatpush2.bf16.msra.mxu0 0
    %262 = vmatprep.subr.bf16.mxu0 0
    %263 = vmatpush2.bf16.msra.mxu0 0
    %264 = vmatprep.mubr.bf16.mxu0 0
    %265 = vmatmul.mubr.bf16.gmra.mxu0 %v71
    %v266 = vpop.f32.mrf.mxu0
    %v267 = vadd.f32 0.0, %v266
    %v268 = vpop.f32.mrf.mxu0
    %v269 = vadd.f32 0.0, %v268
    %v270 = vpop.f32.mrf.mxu0
    %v271 = vpop.f32.mrf.mxu0
    %272 = vdwg.mxu0
    %273 = vmatprep.subr.bf16.mxu0 %v199
    %274 = vmatpush1.bf16.msra.mxu0 %v198
    %275 = vmatprep.subr.bf16.mxu0 %v195
    %276 = vmatpush1.bf16.msra.mxu0 %v194
    %277 = vmatprep.subr.bf16.mxu0 %v191
    %278 = vmatpush1.bf16.msra.mxu0 %v190
    %279 = vmatprep.subr.bf16.mxu0 %v187
    %280 = vmatpush1.bf16.msra.mxu0 %v186
    %281 = vmatprep.subr.bf16.mxu0 %v183
    %282 = vmatpush1.bf16.msra.mxu0 %v182
    %283 = vmatprep.subr.bf16.mxu0 %v179
    %284 = vmatpush1.bf16.msra.mxu0 %v178
    %285 = vmatprep.subr.bf16.mxu0 %v175
    %286 = vmatpush1.bf16.msra.mxu0 %v174
    %287 = vmatprep.subr.bf16.mxu0 %v171
    %288 = vmatpush1.bf16.msra.mxu0 %v170
    %289 = vmatprep.subr.bf16.mxu0 0
    %290 = vmatpush2.bf16.msra.mxu0 0
    %291 = vmatprep.subr.bf16.mxu0 0
    %292 = vmatpush2.bf16.msra.mxu0 0
    %293 = vmatprep.subr.bf16.mxu0 0
    %294 = vmatpush2.bf16.msra.mxu0 0
    %295 = vmatprep.subr.bf16.mxu0 0
    %296 = vmatpush2.bf16.msra.mxu0 0
    %297 = vmatprep.subr.bf16.mxu0 0
    %298 = vmatpush2.bf16.msra.mxu0 0
    %299 = vmatprep.subr.bf16.mxu0 0
    %300 = vmatpush2.bf16.msra.mxu0 0
    %301 = vmatprep.subr.bf16.mxu0 0
    %302 = vmatpush2.bf16.msra.mxu0 0
    %303 = vmatprep.subr.bf16.mxu0 0
    %304 = vmatpush2.bf16.msra.mxu0 0
    %305 = vmatprep.mubr.bf16.mxu0 0
    %306 = vmatmul.mubr.bf16.gmra.mxu0 %v71
    %v307 = vpop.f32.mrf.mxu0
    %v308 = vadd.f32 0.0, %v307
    %v309 = vpop.f32.mrf.mxu0
    %v310 = vadd.f32 0.0, %v309
    %v311 = vpop.f32.mrf.mxu0
    %v312 = vpop.f32.mrf.mxu0
    %313 = vdwg.mxu0
    %v314 = vadd.f32 %v67, %v267
    %v315 = vadd.f32 %v68, %v269
    %v316 = vadd.f32 %v69, %v308
    %v317 = vadd.f32 %v70, %v310
    %v318 = vxor.u32 %v314, 2147483648
    %v319 = vxor.u32 %v315, 2147483648
    %v320 = vxor.u32 %v316, 2147483648
    %v321 = vmul.f32 %v318, 1.442695
    %v322 = vpow.pop %v321
    %v323 = vmul.f32 %v319, 1.442695
    %v324 = vpow.pop %v323
    %v325 = vmul.f32 %v320, 1.442695
    %v326 = vpow.pop %v325
    %v327 = vadd.f32 %v322, 1.0
    %v328 = vadd.f32 %v324, 1.0
    %v329 = vadd.f32 %v326, 1.0
    %v330 = vrcp.pop %v327
    %v331 = vmul.f32 1.0, %v330
    %v332 = vrcp.pop %v328
    %v333 = vmul.f32 1.0, %v332
    %v334 = vrcp.pop %v329
    %v335 = vmul.f32 1.0, %v334
    %v336 = vtanh.pop %v317
    %v337 = vld [vmem:[#allocation3] sm:$0xff]
    %v338 = vmul.f32 %v333, %v337
    %v339 = vmul.f32 %v331, %v336
    %v340 = vadd.f32 %v338, %v339
    %v341 = vtanh.pop %v340
    %v342 = vmul.f32 %v335, %v341
    %343 = vst [vmem:[#allocation3] sm:$0xff] %v340
    %344 = vst [vmem:[#allocation2] sm:$0xff] %v342
    %v345 = vpack.c.bf16 %v342, %v342
    %346 = vst [vmem:[%s2] sm:$0xf] %v345
    %v347 = vld [vmem:[#allocation2] sm:$0xff]
    %s348 = scalar_lea.vmem %s0, 16
    %v349 = vld [vmem:[%s348] sm:$0xff]
    %v350 = vld [vmem:[%s348 + $0x8] sm:$0xff]
    %v351 = vunpack.c.l.bf16 %v349
    %v352 = vunpack.c.h.bf16 %v349
    %v353 = vunpack.c.l.bf16 %v350
    %v354 = vunpack.c.h.bf16 %v350
    %v355 = vpack.c.bf16 %v347, %v347
    %356 = vmatprep.subr.bf16.mxu0 %v197
    %357 = vmatpush1.bf16.msra.mxu0 %v196
    %358 = vmatprep.subr.bf16.mxu0 %v193
    %359 = vmatpush1.bf16.msra.mxu0 %v192
    %360 = vmatprep.subr.bf16.mxu0 %v189
    %361 = vmatpush1.bf16.msra.mxu0 %v188
    %362 = vmatprep.subr.bf16.mxu0 %v185
    %363 = vmatpush1.bf16.msra.mxu0 %v184
    %364 = vmatprep.subr.bf16.mxu0 %v181
    %365 = vmatpush1.bf16.msra.mxu0 %v180
    %366 = vmatprep.subr.bf16.mxu0 %v177
    %367 = vmatpush1.bf16.msra.mxu0 %v176
    %368 = vmatprep.subr.bf16.mxu0 %v173
    %369 = vmatpush1.bf16.msra.mxu0 %v172
    %370 = vmatprep.subr.bf16.mxu0 %v169
    %371 = vmatpush1.bf16.msra.mxu0 %v168
    %372 = vmatprep.subr.bf16.mxu0 0
    %373 = vmatpush2.bf16.msra.mxu0 0
    %374 = vmatprep.subr.bf16.mxu0 0
    %375 = vmatpush2.bf16.msra.mxu0 0
    %376 = vmatprep.subr.bf16.mxu0 0
    %377 = vmatpush2.bf16.msra.mxu0 0
    %378 = vmatprep.subr.bf16.mxu0 0
    %379 = vmatpush2.bf16.msra.mxu0 0
    %380 = vmatprep.subr.bf16.mxu0 0
    %381 = vmatpush2.bf16.msra.mxu0 0
    %382 = vmatprep.subr.bf16.mxu0 0
    %383 = vmatpush2.bf16.msra.mxu0 0
    %384 = vmatprep.subr.bf16.mxu0 0
    %385 = vmatpush2.bf16.msra.mxu0 0
    %386 = vmatprep.subr.bf16.mxu0 0
    %387 = vmatpush2.bf16.msra.mxu0 0
    %388 = vmatprep.mubr.bf16.mxu0 0
    %389 = vmatmul.mubr.bf16.gmra.mxu0 %v355
    %v390 = vpop.f32.mrf.mxu0
    %v391 = vadd.f32 0.0, %v390
    %v392 = vpop.f32.mrf.mxu0
    %v393 = vadd.f32 0.0, %v392
    %v394 = vpop.f32.mrf.mxu0
    %v395 = vpop.f32.mrf.mxu0
    %396 = vdwg.mxu0
    %397 = vmatprep.subr.bf16.mxu0 %v199
    %398 = vmatpush1.bf16.msra.mxu0 %v198
    %399 = vmatprep.subr.bf16.mxu0 %v195
    %400 = vmatpush1.bf16.msra.mxu0 %v194
    %401 = vmatprep.subr.bf16.mxu0 %v191
    %402 = vmatpush1.bf16.msra.mxu0 %v190
    %403 = vmatprep.subr.bf16.mxu0 %v187
    %404 = vmatpush1.bf16.msra.mxu0 %v186
    %405 = vmatprep.subr.bf16.mxu0 %v183
    %406 = vmatpush1.bf16.msra.mxu0 %v182
    %407 = vmatprep.subr.bf16.mxu0 %v179
    %408 = vmatpush1.bf16.msra.mxu0 %v178
    %409 = vmatprep.subr.bf16.mxu0 %v175
    %410 = vmatpush1.bf16.msra.mxu0 %v174
    %411 = vmatprep.subr.bf16.mxu0 %v171
    %412 = vmatpush1.bf16.msra.mxu0 %v170
    %413 = vmatprep.subr.bf16.mxu0 0
    %414 = vmatpush2.bf16.msra.mxu0 0
    %415 = vmatprep.subr.bf16.mxu0 0
    %416 = vmatpush2.bf16.msra.mxu0 0
    %417 = vmatprep.subr.bf16.mxu0 0
    %418 = vmatpush2.bf16.msra.mxu0 0
    %419 = vmatprep.subr.bf16.mxu0 0
    %420 = vmatpush2.bf16.msra.mxu0 0
    %421 = vmatprep.subr.bf16.mxu0 0
    %422 = vmatpush2.bf16.msra.mxu0 0
    %423 = vmatprep.subr.bf16.mxu0 0
    %424 = vmatpush2.bf16.msra.mxu0 0
    %425 = vmatprep.subr.bf16.mxu0 0
    %426 = vmatpush2.bf16.msra.mxu0 0
    %427 = vmatprep.subr.bf16.mxu0 0
    %428 = vmatpush2.bf16.msra.mxu0 0
    %429 = vmatprep.mubr.bf16.mxu0 0
    %430 = vmatmul.mubr.bf16.gmra.mxu0 %v355
    %v431 = vpop.f32.mrf.mxu0
    %v432 = vadd.f32 0.0, %v431
    %v433 = vpop.f32.mrf.mxu0
    %v434 = vadd.f32 0.0, %v433
    %v435 = vpop.f32.mrf.mxu0
    %v436 = vpop.f32.mrf.mxu0
    %437 = vdwg.mxu0
    %v438 = vadd.f32 %v351, %v391
    %v439 = vadd.f32 %v352, %v393
    %v440 = vadd.f32 %v353, %v432
    %v441 = vadd.f32 %v354, %v434
    %v442 = vxor.u32 %v438, 2147483648
    %v443 = vxor.u32 %v439, 2147483648
    %v444 = vxor.u32 %v440, 2147483648
    %v445 = vmul.f32 %v442, 1.442695
    %v446 = vpow.pop %v445
    %v447 = vmul.f32 %v443, 1.442695
    %v448 = vpow.pop %v447
    %v449 = vmul.f32 %v444, 1.442695
    %v450 = vpow.pop %v449
    %v451 = vadd.f32 %v446, 1.0
    %v452 = vadd.f32 %v448, 1.0
    %v453 = vadd.f32 %v450, 1.0
    %v454 = vrcp.pop %v451
    %v455 = vmul.f32 1.0, %v454
    %v456 = vrcp.pop %v452
    %v457 = vmul.f32 1.0, %v456
    %v458 = vrcp.pop %v453
    %v459 = vmul.f32 1.0, %v458
    %v460 = vtanh.pop %v441
    %v461 = vld [vmem:[#allocation3] sm:$0xff]
    %v462 = vmul.f32 %v457, %v461
    %v463 = vmul.f32 %v455, %v460
    %v464 = vadd.f32 %v462, %v463
    %v465 = vtanh.pop %v464
    %v466 = vmul.f32 %v459, %v465
    %467 = vst [vmem:[#allocation3] sm:$0xff] %v464
    %468 = vst [vmem:[#allocation2] sm:$0xff] %v466
    %v469 = vpack.c.bf16 %v466, %v466
    %s470 = scalar_lea.vmem %s2, 4
    %471 = vst [vmem:[%s470] sm:$0xf] %v469
    %v472 = vld [vmem:[#allocation2] sm:$0xff]
    %s473 = scalar_lea.vmem %s0, 32
    %v474 = vld [vmem:[%s473] sm:$0xff]
    %v475 = vld [vmem:[%s473 + $0x8] sm:$0xff]
    %v476 = vunpack.c.l.bf16 %v474
    %v477 = vunpack.c.h.bf16 %v474
    %v478 = vunpack.c.l.bf16 %v475
    %v479 = vunpack.c.h.bf16 %v475
    %v480 = vpack.c.bf16 %v472, %v472
    %481 = vmatprep.subr.bf16.mxu0 %v197
    %482 = vmatpush1.bf16.msra.mxu0 %v196
    %483 = vmatprep.subr.bf16.mxu0 %v193
    %484 = vmatpush1.bf16.msra.mxu0 %v192
    %485 = vmatprep.subr.bf16.mxu0 %v189
    %486 = vmatpush1.bf16.msra.mxu0 %v188
    %487 = vmatprep.subr.bf16.mxu0 %v185
    %488 = vmatpush1.bf16.msra.mxu0 %v184
    %489 = vmatprep.subr.bf16.mxu0 %v181
    %490 = vmatpush1.bf16.msra.mxu0 %v180
    %491 = vmatprep.subr.bf16.mxu0 %v177
    %492 = vmatpush1.bf16.msra.mxu0 %v176
    %493 = vmatprep.subr.bf16.mxu0 %v173
    %494 = vmatpush1.bf16.msra.mxu0 %v172
    %495 = vmatprep.subr.bf16.mxu0 %v169
    %496 = vmatpush1.bf16.msra.mxu0 %v168
    %497 = vmatprep.subr.bf16.mxu0 0
    %498 = vmatpush2.bf16.msra.mxu0 0
    %499 = vmatprep.subr.bf16.mxu0 0
    %500 = vmatpush2.bf16.msra.mxu0 0
    %501 = vmatprep.subr.bf16.mxu0 0
    %502 = vmatpush2.bf16.msra.mxu0 0
    %503 = vmatprep.subr.bf16.mxu0 0
    %504 = vmatpush2.bf16.msra.mxu0 0
    %505 = vmatprep.subr.bf16.mxu0 0
    %506 = vmatpush2.bf16.msra.mxu0 0
    %507 = vmatprep.subr.bf16.mxu0 0
    %508 = vmatpush2.bf16.msra.mxu0 0
    %509 = vmatprep.subr.bf16.mxu0 0
    %510 = vmatpush2.bf16.msra.mxu0 0
    %511 = vmatprep.subr.bf16.mxu0 0
    %512 = vmatpush2.bf16.msra.mxu0 0
    %513 = vmatprep.mubr.bf16.mxu0 0
    %514 = vmatmul.mubr.bf16.gmra.mxu0 %v480
    %v515 = vpop.f32.mrf.mxu0
    %v516 = vadd.f32 0.0, %v515
    %v517 = vpop.f32.mrf.mxu0
    %v518 = vadd.f32 0.0, %v517
    %v519 = vpop.f32.mrf.mxu0
    %v520 = vpop.f32.mrf.mxu0
    %521 = vdwg.mxu0
    %522 = vmatprep.subr.bf16.mxu0 %v199
    %523 = vmatpush1.bf16.msra.mxu0 %v198
    %524 = vmatprep.subr.bf16.mxu0 %v195
    %525 = vmatpush1.bf16.msra.mxu0 %v194
    %526 = vmatprep.subr.bf16.mxu0 %v191
    %527 = vmatpush1.bf16.msra.mxu0 %v190
    %528 = vmatprep.subr.bf16.mxu0 %v187
    %529 = vmatpush1.bf16.msra.mxu0 %v186
    %530 = vmatprep.subr.bf16.mxu0 %v183
    %531 = vmatpush1.bf16.msra.mxu0 %v182
    %532 = vmatprep.subr.bf16.mxu0 %v179
    %533 = vmatpush1.bf16.msra.mxu0 %v178
    %534 = vmatprep.subr.bf16.mxu0 %v175
    %535 = vmatpush1.bf16.msra.mxu0 %v174
    %536 = vmatprep.subr.bf16.mxu0 %v171
    %537 = vmatpush1.bf16.msra.mxu0 %v170
    %538 = vmatprep.subr.bf16.mxu0 0
    %539 = vmatpush2.bf16.msra.mxu0 0
    %540 = vmatprep.subr.bf16.mxu0 0
    %541 = vmatpush2.bf16.msra.mxu0 0
    %542 = vmatprep.subr.bf16.mxu0 0
    %543 = vmatpush2.bf16.msra.mxu0 0
    %544 = vmatprep.subr.bf16.mxu0 0
    %545 = vmatpush2.bf16.msra.mxu0 0
    %546 = vmatprep.subr.bf16.mxu0 0
    %547 = vmatpush2.bf16.msra.mxu0 0
    %548 = vmatprep.subr.bf16.mxu0 0
    %549 = vmatpush2.bf16.msra.mxu0 0
    %550 = vmatprep.subr.bf16.mxu0 0
    %551 = vmatpush2.bf16.msra.mxu0 0
    %552 = vmatprep.subr.bf16.mxu0 0
    %553 = vmatpush2.bf16.msra.mxu0 0
    %554 = vmatprep.mubr.bf16.mxu0 0
    %555 = vmatmul.mubr.bf16.gmra.mxu0 %v480
    %v556 = vpop.f32.mrf.mxu0
    %v557 = vadd.f32 0.0, %v556
    %v558 = vpop.f32.mrf.mxu0
    %v559 = vadd.f32 0.0, %v558
    %v560 = vpop.f32.mrf.mxu0
    %v561 = vpop.f32.mrf.mxu0
    %562 = vdwg.mxu0
    %v563 = vadd.f32 %v476, %v516
    %v564 = vadd.f32 %v477, %v518
    %v565 = vadd.f32 %v478, %v557
    %v566 = vadd.f32 %v479, %v559
    %v567 = vxor.u32 %v563, 2147483648
    %v568 = vxor.u32 %v564, 2147483648
    %v569 = vxor.u32 %v565, 2147483648
    %v570 = vmul.f32 %v567, 1.442695
    %v571 = vpow.pop %v570
    %v572 = vmul.f32 %v568, 1.442695
    %v573 = vpow.pop %v572
    %v574 = vmul.f32 %v569, 1.442695
    %v575 = vpow.pop %v574
    %v576 = vadd.f32 %v571, 1.0
    %v577 = vadd.f32 %v573, 1.0
    %v578 = vadd.f32 %v575, 1.0
    %v579 = vrcp.pop %v576
    %v580 = vmul.f32 1.0, %v579
    %v581 = vrcp.pop %v577
    %v582 = vmul.f32 1.0, %v581
    %v583 = vrcp.pop %v578
    %v584 = vmul.f32 1.0, %v583
    %v585 = vtanh.pop %v566
    %v586 = vld [vmem:[#allocation3] sm:$0xff]
    %v587 = vmul.f32 %v582, %v586
    %v588 = vmul.f32 %v580, %v585
    %v589 = vadd.f32 %v587, %v588
    %v590 = vtanh.pop %v589
    %v591 = vmul.f32 %v584, %v590
    %592 = vst [vmem:[#allocation3] sm:$0xff] %v589
    %593 = vst [vmem:[#allocation2] sm:$0xff] %v591
    %v594 = vpack.c.bf16 %v591, %v591
    %s595 = scalar_lea.vmem %s2, 8
    %596 = vst [vmem:[%s595] sm:$0xf] %v594
    %v597 = vld [vmem:[#allocation2] sm:$0xff]
    %s598 = scalar_lea.vmem %s0, 48
    %v599 = vld [vmem:[%s598] sm:$0xff]
    %v600 = vld [vmem:[%s598 + $0x8] sm:$0xff]
    %v601 = vunpack.c.l.bf16 %v599
    %v602 = vunpack.c.h.bf16 %v599
    %v603 = vunpack.c.l.bf16 %v600
    %v604 = vunpack.c.h.bf16 %v600
    %v605 = vpack.c.bf16 %v597, %v597
    %606 = vmatprep.subr.bf16.mxu0 %v197
    %607 = vmatpush1.bf16.msra.mxu0 %v196
    %608 = vmatprep.subr.bf16.mxu0 %v193
    %609 = vmatpush1.bf16.msra.mxu0 %v192
    %610 = vmatprep.subr.bf16.mxu0 %v189
    %611 = vmatpush1.bf16.msra.mxu0 %v188
    %612 = vmatprep.subr.bf16.mxu0 %v185
    %613 = vmatpush1.bf16.msra.mxu0 %v184
    %614 = vmatprep.subr.bf16.mxu0 %v181
    %615 = vmatpush1.bf16.msra.mxu0 %v180
    %616 = vmatprep.subr.bf16.mxu0 %v177
    %617 = vmatpush1.bf16.msra.mxu0 %v176
    %618 = vmatprep.subr.bf16.mxu0 %v173
    %619 = vmatpush1.bf16.msra.mxu0 %v172
    %620 = vmatprep.subr.bf16.mxu0 %v169
    %621 = vmatpush1.bf16.msra.mxu0 %v168
    %622 = vmatprep.subr.bf16.mxu0 0
    %623 = vmatpush2.bf16.msra.mxu0 0
    %624 = vmatprep.subr.bf16.mxu0 0
    %625 = vmatpush2.bf16.msra.mxu0 0
    %626 = vmatprep.subr.bf16.mxu0 0
    %627 = vmatpush2.bf16.msra.mxu0 0
    %628 = vmatprep.subr.bf16.mxu0 0
    %629 = vmatpush2.bf16.msra.mxu0 0
    %630 = vmatprep.subr.bf16.mxu0 0
    %631 = vmatpush2.bf16.msra.mxu0 0
    %632 = vmatprep.subr.bf16.mxu0 0
    %633 = vmatpush2.bf16.msra.mxu0 0
    %634 = vmatprep.subr.bf16.mxu0 0
    %635 = vmatpush2.bf16.msra.mxu0 0
    %636 = vmatprep.subr.bf16.mxu0 0
    %637 = vmatpush2.bf16.msra.mxu0 0
    %638 = vmatprep.mubr.bf16.mxu0 0
    %639 = vmatmul.mubr.bf16.gmra.mxu0 %v605
    %v640 = vpop.f32.mrf.mxu0
    %v641 = vadd.f32 0.0, %v640
    %v642 = vpop.f32.mrf.mxu0
    %v643 = vadd.f32 0.0, %v642
    %v644 = vpop.f32.mrf.mxu0
    %v645 = vpop.f32.mrf.mxu0
    %646 = vdwg.mxu0
    %647 = vmatprep.subr.bf16.mxu0 %v199
    %648 = vmatpush1.bf16.msra.mxu0 %v198
    %649 = vmatprep.subr.bf16.mxu0 %v195
    %650 = vmatpush1.bf16.msra.mxu0 %v194
    %651 = vmatprep.subr.bf16.mxu0 %v191
    %652 = vmatpush1.bf16.msra.mxu0 %v190
    %653 = vmatprep.subr.bf16.mxu0 %v187
    %654 = vmatpush1.bf16.msra.mxu0 %v186
    %655 = vmatprep.subr.bf16.mxu0 %v183
    %656 = vmatpush1.bf16.msra.mxu0 %v182
    %657 = vmatprep.subr.bf16.mxu0 %v179
    %658 = vmatpush1.bf16.msra.mxu0 %v178
    %659 = vmatprep.subr.bf16.mxu0 %v175
    %660 = vmatpush1.bf16.msra.mxu0 %v174
    %661 = vmatprep.subr.bf16.mxu0 %v171
    %662 = vmatpush1.bf16.msra.mxu0 %v170
    %663 = vmatprep.subr.bf16.mxu0 0
    %664 = vmatpush2.bf16.msra.mxu0 0
    %665 = vmatprep.subr.bf16.mxu0 0
    %666 = vmatpush2.bf16.msra.mxu0 0
    %667 = vmatprep.subr.bf16.mxu0 0
    %668 = vmatpush2.bf16.msra.mxu0 0
    %669 = vmatprep.subr.bf16.mxu0 0
    %670 = vmatpush2.bf16.msra.mxu0 0
    %671 = vmatprep.subr.bf16.mxu0 0
    %672 = vmatpush2.bf16.msra.mxu0 0
    %673 = vmatprep.subr.bf16.mxu0 0
    %674 = vmatpush2.bf16.msra.mxu0 0
    %675 = vmatprep.subr.bf16.mxu0 0
    %676 = vmatpush2.bf16.msra.mxu0 0
    %677 = vmatprep.subr.bf16.mxu0 0
    %678 = vmatpush2.bf16.msra.mxu0 0
    %679 = vmatprep.mubr.bf16.mxu0 0
    %680 = vmatmul.mubr.bf16.gmra.mxu0 %v605
    %v681 = vpop.f32.mrf.mxu0
    %v682 = vadd.f32 0.0, %v681
    %v683 = vpop.f32.mrf.mxu0
    %v684 = vadd.f32 0.0, %v683
    %v685 = vpop.f32.mrf.mxu0
    %v686 = vpop.f32.mrf.mxu0
    %687 = vdwg.mxu0
    %v688 = vadd.f32 %v601, %v641
    %v689 = vadd.f32 %v602, %v643
    %v690 = vadd.f32 %v603, %v682
    %v691 = vadd.f32 %v604, %v684
    %v692 = vxor.u32 %v688, 2147483648
    %v693 = vxor.u32 %v689, 2147483648
    %v694 = vxor.u32 %v690, 2147483648
    %v695 = vmul.f32 %v692, 1.442695
    %v696 = vpow.pop %v695
    %v697 = vmul.f32 %v693, 1.442695
    %v698 = vpow.pop %v697
    %v699 = vmul.f32 %v694, 1.442695
    %v700 = vpow.pop %v699
    %v701 = vadd.f32 %v696, 1.0
    %v702 = vadd.f32 %v698, 1.0
    %v703 = vadd.f32 %v700, 1.0
    %v704 = vrcp.pop %v701
    %v705 = vmul.f32 1.0, %v704
    %v706 = vrcp.pop %v702
    %v707 = vmul.f32 1.0, %v706
    %v708 = vrcp.pop %v703
    %v709 = vmul.f32 1.0, %v708
    %v710 = vtanh.pop %v691
    %v711 = vld [vmem:[#allocation3] sm:$0xff]
    %v712 = vmul.f32 %v707, %v711
    %v713 = vmul.f32 %v705, %v710
    %v714 = vadd.f32 %v712, %v713
    %v715 = vtanh.pop %v714
    %v716 = vmul.f32 %v709, %v715
    %717 = vst [vmem:[#allocation3] sm:$0xff] %v714
    %718 = vst [vmem:[#allocation2] sm:$0xff] %v716
    %v719 = vpack.c.bf16 %v716, %v716
    %s720 = scalar_lea.vmem %s2, 12
    %721 = vst [vmem:[%s720] sm:$0xf] %v719
    %v722 = vld [vmem:[#allocation2] sm:$0xff]
    %s723 = scalar_lea.vmem %s0, 64
    %v724 = vld [vmem:[%s723] sm:$0xff]
    %v725 = vld [vmem:[%s723 + $0x8] sm:$0xff]
    %v726 = vunpack.c.l.bf16 %v724
    %v727 = vunpack.c.h.bf16 %v724
    %v728 = vunpack.c.l.bf16 %v725
    %v729 = vunpack.c.h.bf16 %v725
    %v730 = vpack.c.bf16 %v722, %v722
    %731 = vmatprep.subr.bf16.mxu0 %v197
    %732 = vmatpush1.bf16.msra.mxu0 %v196
    %733 = vmatprep.subr.bf16.mxu0 %v193
    %734 = vmatpush1.bf16.msra.mxu0 %v192
    %735 = vmatprep.subr.bf16.mxu0 %v189
    %736 = vmatpush1.bf16.msra.mxu0 %v188
    %737 = vmatprep.subr.bf16.mxu0 %v185
    %738 = vmatpush1.bf16.msra.mxu0 %v184
    %739 = vmatprep.subr.bf16.mxu0 %v181
    %740 = vmatpush1.bf16.msra.mxu0 %v180
    %741 = vmatprep.subr.bf16.mxu0 %v177
    %742 = vmatpush1.bf16.msra.mxu0 %v176
    %743 = vmatprep.subr.bf16.mxu0 %v173
    %744 = vmatpush1.bf16.msra.mxu0 %v172
    %745 = vmatprep.subr.bf16.mxu0 %v169
    %746 = vmatpush1.bf16.msra.mxu0 %v168
    %747 = vmatprep.subr.bf16.mxu0 0
    %748 = vmatpush2.bf16.msra.mxu0 0
    %749 = vmatprep.subr.bf16.mxu0 0
    %750 = vmatpush2.bf16.msra.mxu0 0
    %751 = vmatprep.subr.bf16.mxu0 0
    %752 = vmatpush2.bf16.msra.mxu0 0
    %753 = vmatprep.subr.bf16.mxu0 0
    %754 = vmatpush2.bf16.msra.mxu0 0
    %755 = vmatprep.subr.bf16.mxu0 0
    %756 = vmatpush2.bf16.msra.mxu0 0
    %757 = vmatprep.subr.bf16.mxu0 0
    %758 = vmatpush2.bf16.msra.mxu0 0
    %759 = vmatprep.subr.bf16.mxu0 0
    %760 = vmatpush2.bf16.msra.mxu0 0
    %761 = vmatprep.subr.bf16.mxu0 0
    %762 = vmatpush2.bf16.msra.mxu0 0
    %763 = vmatprep.mubr.bf16.mxu0 0
    %764 = vmatmul.mubr.bf16.gmra.mxu0 %v730
    %v765 = vpop.f32.mrf.mxu0
    %v766 = vadd.f32 0.0, %v765
    %v767 = vpop.f32.mrf.mxu0
    %v768 = vadd.f32 0.0, %v767
    %v769 = vpop.f32.mrf.mxu0
    %v770 = vpop.f32.mrf.mxu0
    %771 = vdwg.mxu0
    %772 = vmatprep.subr.bf16.mxu0 %v199
    %773 = vmatpush1.bf16.msra.mxu0 %v198
    %774 = vmatprep.subr.bf16.mxu0 %v195
    %775 = vmatpush1.bf16.msra.mxu0 %v194
    %776 = vmatprep.subr.bf16.mxu0 %v191
    %777 = vmatpush1.bf16.msra.mxu0 %v190
    %778 = vmatprep.subr.bf16.mxu0 %v187
    %779 = vmatpush1.bf16.msra.mxu0 %v186
    %780 = vmatprep.subr.bf16.mxu0 %v183
    %781 = vmatpush1.bf16.msra.mxu0 %v182
    %782 = vmatprep.subr.bf16.mxu0 %v179
    %783 = vmatpush1.bf16.msra.mxu0 %v178
    %784 = vmatprep.subr.bf16.mxu0 %v175
    %785 = vmatpush1.bf16.msra.mxu0 %v174
    %786 = vmatprep.subr.bf16.mxu0 %v171
    %787 = vmatpush1.bf16.msra.mxu0 %v170
    %788 = vmatprep.subr.bf16.mxu0 0
    %789 = vmatpush2.bf16.msra.mxu0 0
    %790 = vmatprep.subr.bf16.mxu0 0
    %791 = vmatpush2.bf16.msra.mxu0 0
    %792 = vmatprep.subr.bf16.mxu0 0
    %793 = vmatpush2.bf16.msra.mxu0 0
    %794 = vmatprep.subr.bf16.mxu0 0
    %795 = vmatpush2.bf16.msra.mxu0 0
    %796 = vmatprep.subr.bf16.mxu0 0
    %797 = vmatpush2.bf16.msra.mxu0 0
    %798 = vmatprep.subr.bf16.mxu0 0
    %799 = vmatpush2.bf16.msra.mxu0 0
    %800 = vmatprep.subr.bf16.mxu0 0
    %801 = vmatpush2.bf16.msra.mxu0 0
    %802 = vmatprep.subr.bf16.mxu0 0
    %803 = vmatpush2.bf16.msra.mxu0 0
    %804 = vmatprep.mubr.bf16.mxu0 0
    %805 = vmatmul.mubr.bf16.gmra.mxu0 %v730
    %v806 = vpop.f32.mrf.mxu0
    %v807 = vadd.f32 0.0, %v806
    %v808 = vpop.f32.mrf.mxu0
    %v809 = vadd.f32 0.0, %v808
    %v810 = vpop.f32.mrf.mxu0
    %v811 = vpop.f32.mrf.mxu0
    %812 = vdwg.mxu0
    %v813 = vadd.f32 %v726, %v766
    %v814 = vadd.f32 %v727, %v768
    %v815 = vadd.f32 %v728, %v807
    %v816 = vadd.f32 %v729, %v809
    %v817 = vxor.u32 %v813, 2147483648
    %v818 = vxor.u32 %v814, 2147483648
    %v819 = vxor.u32 %v815, 2147483648
    %v820 = vmul.f32 %v817, 1.442695
    %v821 = vpow.pop %v820
    %v822 = vmul.f32 %v818, 1.442695
    %v823 = vpow.pop %v822
    %v824 = vmul.f32 %v819, 1.442695
    %v825 = vpow.pop %v824
    %v826 = vadd.f32 %v821, 1.0
    %v827 = vadd.f32 %v823, 1.0
    %v828 = vadd.f32 %v825, 1.0
    %v829 = vrcp.pop %v826
    %v830 = vmul.f32 1.0, %v829
    %v831 = vrcp.pop %v827
    %v832 = vmul.f32 1.0, %v831
    %v833 = vrcp.pop %v828
    %v834 = vmul.f32 1.0, %v833
    %v835 = vtanh.pop %v816
    %v836 = vld [vmem:[#allocation3] sm:$0xff]
    %v837 = vmul.f32 %v832, %v836
    %v838 = vmul.f32 %v830, %v835
    %v839 = vadd.f32 %v837, %v838
    %v840 = vtanh.pop %v839
    %v841 = vmul.f32 %v834, %v840
    %842 = vst [vmem:[#allocation3] sm:$0xff] %v839
    %843 = vst [vmem:[#allocation2] sm:$0xff] %v841
    %v844 = vpack.c.bf16 %v841, %v841
    %s845 = scalar_lea.vmem %s2, 16
    %846 = vst [vmem:[%s845] sm:$0xf] %v844
    %v847 = vld [vmem:[#allocation2] sm:$0xff]
    %s848 = scalar_lea.vmem %s0, 80
    %v849 = vld [vmem:[%s848] sm:$0xff]
    %v850 = vld [vmem:[%s848 + $0x8] sm:$0xff]
    %v851 = vunpack.c.l.bf16 %v849
    %v852 = vunpack.c.h.bf16 %v849
    %v853 = vunpack.c.l.bf16 %v850
    %v854 = vunpack.c.h.bf16 %v850
    %v855 = vpack.c.bf16 %v847, %v847
    %856 = vmatprep.subr.bf16.mxu0 %v197
    %857 = vmatpush1.bf16.msra.mxu0 %v196
    %858 = vmatprep.subr.bf16.mxu0 %v193
    %859 = vmatpush1.bf16.msra.mxu0 %v192
    %860 = vmatprep.subr.bf16.mxu0 %v189
    %861 = vmatpush1.bf16.msra.mxu0 %v188
    %862 = vmatprep.subr.bf16.mxu0 %v185
    %863 = vmatpush1.bf16.msra.mxu0 %v184
    %864 = vmatprep.subr.bf16.mxu0 %v181
    %865 = vmatpush1.bf16.msra.mxu0 %v180
    %866 = vmatprep.subr.bf16.mxu0 %v177
    %867 = vmatpush1.bf16.msra.mxu0 %v176
    %868 = vmatprep.subr.bf16.mxu0 %v173
    %869 = vmatpush1.bf16.msra.mxu0 %v172
    %870 = vmatprep.subr.bf16.mxu0 %v169
    %871 = vmatpush1.bf16.msra.mxu0 %v168
    %872 = vmatprep.subr.bf16.mxu0 0
    %873 = vmatpush2.bf16.msra.mxu0 0
    %874 = vmatprep.subr.bf16.mxu0 0
    %875 = vmatpush2.bf16.msra.mxu0 0
    %876 = vmatprep.subr.bf16.mxu0 0
    %877 = vmatpush2.bf16.msra.mxu0 0
    %878 = vmatprep.subr.bf16.mxu0 0
    %879 = vmatpush2.bf16.msra.mxu0 0
    %880 = vmatprep.subr.bf16.mxu0 0
    %881 = vmatpush2.bf16.msra.mxu0 0
    %882 = vmatprep.subr.bf16.mxu0 0
    %883 = vmatpush2.bf16.msra.mxu0 0
    %884 = vmatprep.subr.bf16.mxu0 0
    %885 = vmatpush2.bf16.msra.mxu0 0
    %886 = vmatprep.subr.bf16.mxu0 0
    %887 = vmatpush2.bf16.msra.mxu0 0
    %888 = vmatprep.mubr.bf16.mxu0 0
    %889 = vmatmul.mubr.bf16.gmra.mxu0 %v855
    %v890 = vpop.f32.mrf.mxu0
    %v891 = vadd.f32 0.0, %v890
    %v892 = vpop.f32.mrf.mxu0
    %v893 = vadd.f32 0.0, %v892
    %v894 = vpop.f32.mrf.mxu0
    %v895 = vpop.f32.mrf.mxu0
    %896 = vdwg.mxu0
    %897 = vmatprep.subr.bf16.mxu0 %v199
    %898 = vmatpush1.bf16.msra.mxu0 %v198
    %899 = vmatprep.subr.bf16.mxu0 %v195
    %900 = vmatpush1.bf16.msra.mxu0 %v194
    %901 = vmatprep.subr.bf16.mxu0 %v191
    %902 = vmatpush1.bf16.msra.mxu0 %v190
    %903 = vmatprep.subr.bf16.mxu0 %v187
    %904 = vmatpush1.bf16.msra.mxu0 %v186
    %905 = vmatprep.subr.bf16.mxu0 %v183
    %906 = vmatpush1.bf16.msra.mxu0 %v182
    %907 = vmatprep.subr.bf16.mxu0 %v179
    %908 = vmatpush1.bf16.msra.mxu0 %v178
    %909 = vmatprep.subr.bf16.mxu0 %v175
    %910 = vmatpush1.bf16.msra.mxu0 %v174
    %911 = vmatprep.subr.bf16.mxu0 %v171
    %912 = vmatpush1.bf16.msra.mxu0 %v170
    %913 = vmatprep.subr.bf16.mxu0 0
    %914 = vmatpush2.bf16.msra.mxu0 0
    %915 = vmatprep.subr.bf16.mxu0 0
    %916 = vmatpush2.bf16.msra.mxu0 0
    %917 = vmatprep.subr.bf16.mxu0 0
    %918 = vmatpush2.bf16.msra.mxu0 0
    %919 = vmatprep.subr.bf16.mxu0 0
    %920 = vmatpush2.bf16.msra.mxu0 0
    %921 = vmatprep.subr.bf16.mxu0 0
    %922 = vmatpush2.bf16.msra.mxu0 0
    %923 = vmatprep.subr.bf16.mxu0 0
    %924 = vmatpush2.bf16.msra.mxu0 0
    %925 = vmatprep.subr.bf16.mxu0 0
    %926 = vmatpush2.bf16.msra.mxu0 0
    %927 = vmatprep.subr.bf16.mxu0 0
    %928 = vmatpush2.bf16.msra.mxu0 0
    %929 = vmatprep.mubr.bf16.mxu0 0
    %930 = vmatmul.mubr.bf16.gmra.mxu0 %v855
    %v931 = vpop.f32.mrf.mxu0
    %v932 = vadd.f32 0.0, %v931
    %v933 = vpop.f32.mrf.mxu0
    %v934 = vadd.f32 0.0, %v933
    %v935 = vpop.f32.mrf.mxu0
    %v936 = vpop.f32.mrf.mxu0
    %937 = vdwg.mxu0
    %v938 = vadd.f32 %v851, %v891
    %v939 = vadd.f32 %v852, %v893
    %v940 = vadd.f32 %v853, %v932
    %v941 = vadd.f32 %v854, %v934
    %v942 = vxor.u32 %v938, 2147483648
    %v943 = vxor.u32 %v939, 2147483648
    %v944 = vxor.u32 %v940, 2147483648
    %v945 = vmul.f32 %v942, 1.442695
    %v946 = vpow.pop %v945
    %v947 = vmul.f32 %v943, 1.442695
    %v948 = vpow.pop %v947
    %v949 = vmul.f32 %v944, 1.442695
    %v950 = vpow.pop %v949
    %v951 = vadd.f32 %v946, 1.0
    %v952 = vadd.f32 %v948, 1.0
    %v953 = vadd.f32 %v950, 1.0
    %v954 = vrcp.pop %v951
    %v955 = vmul.f32 1.0, %v954
    %v956 = vrcp.pop %v952
    %v957 = vmul.f32 1.0, %v956
    %v958 = vrcp.pop %v953
    %v959 = vmul.f32 1.0, %v958
    %v960 = vtanh.pop %v941
    %v961 = vld [vmem:[#allocation3] sm:$0xff]
    %v962 = vmul.f32 %v957, %v961
    %v963 = vmul.f32 %v955, %v960
    %v964 = vadd.f32 %v962, %v963
    %v965 = vtanh.pop %v964
    %v966 = vmul.f32 %v959, %v965
    %967 = vst [vmem:[#allocation3] sm:$0xff] %v964
    %968 = vst [vmem:[#allocation2] sm:$0xff] %v966
    %v969 = vpack.c.bf16 %v966, %v966
    %s970 = scalar_lea.vmem %s2, 20
    %971 = vst [vmem:[%s970] sm:$0xf] %v969
    %v972 = vld [vmem:[#allocation2] sm:$0xff]
    %s973 = scalar_lea.vmem %s0, 96
    %v974 = vld [vmem:[%s973] sm:$0xff]
    %v975 = vld [vmem:[%s973 + $0x8] sm:$0xff]
    %v976 = vunpack.c.l.bf16 %v974
    %v977 = vunpack.c.h.bf16 %v974
    %v978 = vunpack.c.l.bf16 %v975
    %v979 = vunpack.c.h.bf16 %v975
    %v980 = vpack.c.bf16 %v972, %v972
    %981 = vmatprep.subr.bf16.mxu0 %v197
    %982 = vmatpush1.bf16.msra.mxu0 %v196
    %983 = vmatprep.subr.bf16.mxu0 %v193
    %984 = vmatpush1.bf16.msra.mxu0 %v192
    %985 = vmatprep.subr.bf16.mxu0 %v189
    %986 = vmatpush1.bf16.msra.mxu0 %v188
    %987 = vmatprep.subr.bf16.mxu0 %v185
    %988 = vmatpush1.bf16.msra.mxu0 %v184
    %989 = vmatprep.subr.bf16.mxu0 %v181
    %990 = vmatpush1.bf16.msra.mxu0 %v180
    %991 = vmatprep.subr.bf16.mxu0 %v177
    %992 = vmatpush1.bf16.msra.mxu0 %v176
    %993 = vmatprep.subr.bf16.mxu0 %v173
    %994 = vmatpush1.bf16.msra.mxu0 %v172
    %995 = vmatprep.subr.bf16.mxu0 %v169
    %996 = vmatpush1.bf16.msra.mxu0 %v168
    %997 = vmatprep.subr.bf16.mxu0 0
    %998 = vmatpush2.bf16.msra.mxu0 0
    %999 = vmatprep.subr.bf16.mxu0 0
    %1000 = vmatpush2.bf16.msra.mxu0 0
    %1001 = vmatprep.subr.bf16.mxu0 0
    %1002 = vmatpush2.bf16.msra.mxu0 0
    %1003 = vmatprep.subr.bf16.mxu0 0
    %1004 = vmatpush2.bf16.msra.mxu0 0
    %1005 = vmatprep.subr.bf16.mxu0 0
    %1006 = vmatpush2.bf16.msra.mxu0 0
    %1007 = vmatprep.subr.bf16.mxu0 0
    %1008 = vmatpush2.bf16.msra.mxu0 0
    %1009 = vmatprep.subr.bf16.mxu0 0
    %1010 = vmatpush2.bf16.msra.mxu0 0
    %1011 = vmatprep.subr.bf16.mxu0 0
    %1012 = vmatpush2.bf16.msra.mxu0 0
    %1013 = vmatprep.mubr.bf16.mxu0 0
    %1014 = vmatmul.mubr.bf16.gmra.mxu0 %v980
    %v1015 = vpop.f32.mrf.mxu0
    %v1016 = vadd.f32 0.0, %v1015
    %v1017 = vpop.f32.mrf.mxu0
    %v1018 = vadd.f32 0.0, %v1017
    %v1019 = vpop.f32.mrf.mxu0
    %v1020 = vpop.f32.mrf.mxu0
    %1021 = vdwg.mxu0
    %1022 = vmatprep.subr.bf16.mxu0 %v199
    %1023 = vmatpush1.bf16.msra.mxu0 %v198
    %1024 = vmatprep.subr.bf16.mxu0 %v195
    %1025 = vmatpush1.bf16.msra.mxu0 %v194
    %1026 = vmatprep.subr.bf16.mxu0 %v191
    %1027 = vmatpush1.bf16.msra.mxu0 %v190
    %1028 = vmatprep.subr.bf16.mxu0 %v187
    %1029 = vmatpush1.bf16.msra.mxu0 %v186
    %1030 = vmatprep.subr.bf16.mxu0 %v183
    %1031 = vmatpush1.bf16.msra.mxu0 %v182
    %1032 = vmatprep.subr.bf16.mxu0 %v179
    %1033 = vmatpush1.bf16.msra.mxu0 %v178
    %1034 = vmatprep.subr.bf16.mxu0 %v175
    %1035 = vmatpush1.bf16.msra.mxu0 %v174
    %1036 = vmatprep.subr.bf16.mxu0 %v171
    %1037 = vmatpush1.bf16.msra.mxu0 %v170
    %1038 = vmatprep.subr.bf16.mxu0 0
    %1039 = vmatpush2.bf16.msra.mxu0 0
    %1040 = vmatprep.subr.bf16.mxu0 0
    %1041 = vmatpush2.bf16.msra.mxu0 0
    %1042 = vmatprep.subr.bf16.mxu0 0
    %1043 = vmatpush2.bf16.msra.mxu0 0
    %1044 = vmatprep.subr.bf16.mxu0 0
    %1045 = vmatpush2.bf16.msra.mxu0 0
    %1046 = vmatprep.subr.bf16.mxu0 0
    %1047 = vmatpush2.bf16.msra.mxu0 0
    %1048 = vmatprep.subr.bf16.mxu0 0
    %1049 = vmatpush2.bf16.msra.mxu0 0
    %1050 = vmatprep.subr.bf16.mxu0 0
    %1051 = vmatpush2.bf16.msra.mxu0 0
    %1052 = vmatprep.subr.bf16.mxu0 0
    %1053 = vmatpush2.bf16.msra.mxu0 0
    %1054 = vmatprep.mubr.bf16.mxu0 0
    %1055 = vmatmul.mubr.bf16.gmra.mxu0 %v980
    %v1056 = vpop.f32.mrf.mxu0
    %v1057 = vadd.f32 0.0, %v1056
    %v1058 = vpop.f32.mrf.mxu0
    %v1059 = vadd.f32 0.0, %v1058
    %v1060 = vpop.f32.mrf.mxu0
    %v1061 = vpop.f32.mrf.mxu0
    %1062 = vdwg.mxu0
    %v1063 = vadd.f32 %v976, %v1016
    %v1064 = vadd.f32 %v977, %v1018
    %v1065 = vadd.f32 %v978, %v1057
    %v1066 = vadd.f32 %v979, %v1059
    %v1067 = vxor.u32 %v1063, 2147483648
    %v1068 = vxor.u32 %v1064, 2147483648
    %v1069 = vxor.u32 %v1065, 2147483648
    %v1070 = vmul.f32 %v1067, 1.442695
    %v1071 = vpow.pop %v1070
    %v1072 = vmul.f32 %v1068, 1.442695
    %v1073 = vpow.pop %v1072
    %v1074 = vmul.f32 %v1069, 1.442695
    %v1075 = vpow.pop %v1074
    %v1076 = vadd.f32 %v1071, 1.0
    %v1077 = vadd.f32 %v1073, 1.0
    %v1078 = vadd.f32 %v1075, 1.0
    %v1079 = vrcp.pop %v1076
    %v1080 = vmul.f32 1.0, %v1079
    %v1081 = vrcp.pop %v1077
    %v1082 = vmul.f32 1.0, %v1081
    %v1083 = vrcp.pop %v1078
    %v1084 = vmul.f32 1.0, %v1083
    %v1085 = vtanh.pop %v1066
    %v1086 = vld [vmem:[#allocation3] sm:$0xff]
    %v1087 = vmul.f32 %v1082, %v1086
    %v1088 = vmul.f32 %v1080, %v1085
    %v1089 = vadd.f32 %v1087, %v1088
    %v1090 = vtanh.pop %v1089
    %v1091 = vmul.f32 %v1084, %v1090
    %1092 = vst [vmem:[#allocation3] sm:$0xff] %v1089
    %1093 = vst [vmem:[#allocation2] sm:$0xff] %v1091
    %v1094 = vpack.c.bf16 %v1091, %v1091
    %s1095 = scalar_lea.vmem %s2, 24
    %1096 = vst [vmem:[%s1095] sm:$0xf] %v1094
    %v1097 = vld [vmem:[#allocation2] sm:$0xff]
    %s1098 = scalar_lea.vmem %s0, 112
    %v1099 = vld [vmem:[%s1098] sm:$0xff]
    %v1100 = vld [vmem:[%s1098 + $0x8] sm:$0xff]
    %v1101 = vunpack.c.l.bf16 %v1099
    %v1102 = vunpack.c.h.bf16 %v1099
    %v1103 = vunpack.c.l.bf16 %v1100
    %v1104 = vunpack.c.h.bf16 %v1100
    %v1105 = vpack.c.bf16 %v1097, %v1097
    %1106 = vmatprep.subr.bf16.mxu0 %v197
    %1107 = vmatpush1.bf16.msra.mxu0 %v196
    %1108 = vmatprep.subr.bf16.mxu0 %v193
    %1109 = vmatpush1.bf16.msra.mxu0 %v192
    %1110 = vmatprep.subr.bf16.mxu0 %v189
    %1111 = vmatpush1.bf16.msra.mxu0 %v188
    %1112 = vmatprep.subr.bf16.mxu0 %v185
    %1113 = vmatpush1.bf16.msra.mxu0 %v184
    %1114 = vmatprep.subr.bf16.mxu0 %v181
    %1115 = vmatpush1.bf16.msra.mxu0 %v180
    %1116 = vmatprep.subr.bf16.mxu0 %v177
    %1117 = vmatpush1.bf16.msra.mxu0 %v176
    %1118 = vmatprep.subr.bf16.mxu0 %v173
    %1119 = vmatpush1.bf16.msra.mxu0 %v172
    %1120 = vmatprep.subr.bf16.mxu0 %v169
    %1121 = vmatpush1.bf16.msra.mxu0 %v168
    %1122 = vmatprep.subr.bf16.mxu0 0
    %1123 = vmatpush2.bf16.msra.mxu0 0
    %1124 = vmatprep.subr.bf16.mxu0 0
    %1125 = vmatpush2.bf16.msra.mxu0 0
    %1126 = vmatprep.subr.bf16.mxu0 0
    %1127 = vmatpush2.bf16.msra.mxu0 0
    %1128 = vmatprep.subr.bf16.mxu0 0
    %1129 = vmatpush2.bf16.msra.mxu0 0
    %1130 = vmatprep.subr.bf16.mxu0 0
    %1131 = vmatpush2.bf16.msra.mxu0 0
    %1132 = vmatprep.subr.bf16.mxu0 0
    %1133 = vmatpush2.bf16.msra.mxu0 0
    %1134 = vmatprep.subr.bf16.mxu0 0
    %1135 = vmatpush2.bf16.msra.mxu0 0
    %1136 = vmatprep.subr.bf16.mxu0 0
    %1137 = vmatpush2.bf16.msra.mxu0 0
    %1138 = vmatprep.mubr.bf16.mxu0 0
    %1139 = vmatmul.mubr.bf16.gmra.mxu0 %v1105
    %v1140 = vpop.f32.mrf.mxu0
    %v1141 = vadd.f32 0.0, %v1140
    %v1142 = vpop.f32.mrf.mxu0
    %v1143 = vadd.f32 0.0, %v1142
    %v1144 = vpop.f32.mrf.mxu0
    %v1145 = vpop.f32.mrf.mxu0
    %1146 = vdwg.mxu0
    %1147 = vmatprep.subr.bf16.mxu0 %v199
    %1148 = vmatpush1.bf16.msra.mxu0 %v198
    %1149 = vmatprep.subr.bf16.mxu0 %v195
    %1150 = vmatpush1.bf16.msra.mxu0 %v194
    %1151 = vmatprep.subr.bf16.mxu0 %v191
    %1152 = vmatpush1.bf16.msra.mxu0 %v190
    %1153 = vmatprep.subr.bf16.mxu0 %v187
    %1154 = vmatpush1.bf16.msra.mxu0 %v186
    %1155 = vmatprep.subr.bf16.mxu0 %v183
    %1156 = vmatpush1.bf16.msra.mxu0 %v182
    %1157 = vmatprep.subr.bf16.mxu0 %v179
    %1158 = vmatpush1.bf16.msra.mxu0 %v178
    %1159 = vmatprep.subr.bf16.mxu0 %v175
    %1160 = vmatpush1.bf16.msra.mxu0 %v174
    %1161 = vmatprep.subr.bf16.mxu0 %v171
    %1162 = vmatpush1.bf16.msra.mxu0 %v170
    %1163 = vmatprep.subr.bf16.mxu0 0
    %1164 = vmatpush2.bf16.msra.mxu0 0
    %1165 = vmatprep.subr.bf16.mxu0 0
    %1166 = vmatpush2.bf16.msra.mxu0 0
    %1167 = vmatprep.subr.bf16.mxu0 0
    %1168 = vmatpush2.bf16.msra.mxu0 0
    %1169 = vmatprep.subr.bf16.mxu0 0
    %1170 = vmatpush2.bf16.msra.mxu0 0
    %1171 = vmatprep.subr.bf16.mxu0 0
    %1172 = vmatpush2.bf16.msra.mxu0 0
    %1173 = vmatprep.subr.bf16.mxu0 0
    %1174 = vmatpush2.bf16.msra.mxu0 0
    %1175 = vmatprep.subr.bf16.mxu0 0
    %1176 = vmatpush2.bf16.msra.mxu0 0
    %1177 = vmatprep.subr.bf16.mxu0 0
    %1178 = vmatpush2.bf16.msra.mxu0 0
    %1179 = vmatprep.mubr.bf16.mxu0 0
    %1180 = vmatmul.mubr.bf16.gmra.mxu0 %v1105
    %v1181 = vpop.f32.mrf.mxu0
    %v1182 = vadd.f32 0.0, %v1181
    %v1183 = vpop.f32.mrf.mxu0
    %v1184 = vadd.f32 0.0, %v1183
    %v1185 = vpop.f32.mrf.mxu0
    %v1186 = vpop.f32.mrf.mxu0
    %1187 = vdwg.mxu0
    %v1188 = vadd.f32 %v1101, %v1141
    %v1189 = vadd.f32 %v1102, %v1143
    %v1190 = vadd.f32 %v1103, %v1182
    %v1191 = vadd.f32 %v1104, %v1184
    %v1192 = vxor.u32 %v1188, 2147483648
    %v1193 = vxor.u32 %v1189, 2147483648
    %v1194 = vxor.u32 %v1190, 2147483648
    %v1195 = vmul.f32 %v1192, 1.442695
    %v1196 = vpow.pop %v1195
    %v1197 = vmul.f32 %v1193, 1.442695
    %v1198 = vpow.pop %v1197
    %v1199 = vmul.f32 %v1194, 1.442695
    %v1200 = vpow.pop %v1199
    %v1201 = vadd.f32 %v1196, 1.0
    %v1202 = vadd.f32 %v1198, 1.0
    %v1203 = vadd.f32 %v1200, 1.0
    %v1204 = vrcp.pop %v1201
    %v1205 = vmul.f32 1.0, %v1204
    %v1206 = vrcp.pop %v1202
    %v1207 = vmul.f32 1.0, %v1206
    %v1208 = vrcp.pop %v1203
    %v1209 = vmul.f32 1.0, %v1208
    %v1210 = vtanh.pop %v1191
    %v1211 = vld [vmem:[#allocation3] sm:$0xff]
    %v1212 = vmul.f32 %v1207, %v1211
    %v1213 = vmul.f32 %v1205, %v1210
    %v1214 = vadd.f32 %v1212, %v1213
    %v1215 = vtanh.pop %v1214
    %v1216 = vmul.f32 %v1209, %v1215
    %1217 = vst [vmem:[#allocation3] sm:$0xff] %v1214
    %1218 = vst [vmem:[#allocation2] sm:$0xff] %v1216
    %v1219 = vpack.c.bf16 %v1216, %v1216
    %s1220 = scalar_lea.vmem %s2, 28
    %1221 = vst [vmem:[%s1220] sm:$0xf] %v1219
    // Predicated region
    $region18: #{seq2seq_blocks_forward.2} parent=1 // pred_check
      _
    $region19: #{seq2seq_blocks_forward.2} parent=1 // pred_check_branch
      %1223 = sbr.rel (0) target = $region21
    $region20: #{seq2seq_blocks_forward.2} parent=1 // pred_region
      _
    $region21: #{seq2seq_blocks_forward.2} parent=1 // pred_fallthru
      _
    // Predicated region
    $region22: #{seq2seq_blocks_forward.2} parent=1 // pred_check
      _
    $region23: #{seq2seq_blocks_forward.2} parent=1 // pred_check_branch
      %1225 = sbr.rel (0) target = $region25
    $region24: #{seq2seq_blocks_forward.2} parent=1 // pred_region
      _
    $region25: #{seq2seq_blocks_forward.2} parent=1 // pred_fallthru
      _
    %1226 = vsyncpa [#allocation5], 1

// kernel: seq2seq_blocks_forward.3
$region0: #{seq2seq_blocks_forward.3}
  #allocation0 [shape = 'u32[]', space=smem, size = 0x4, offset = 0x4, fixed_abs, tag = 'smem constant byte address 0x4 - core index']
  #allocation1 [shape = 'u32[144,128]{1,0:T(1,128)}', space=vmem, size = 0x12000, scoped, tag = 'internal scratch']
  #allocation2 [shape = 'f32[8,128]{1,0:T(8,128)}', space=vmem, size = 0x1000, scoped, tag = 'scratch operand']
  #allocation3 [shape = 'f32[8,128]{1,0:T(8,128)}', space=vmem, size = 0x1000, scoped, tag = 'scratch operand']
  %s0 = inlined_call_operand.vmem [shape: bf16[8,8,512], index: 0, kind: input, shape index: {}]
  %s1 = inlined_call_operand.vmem [shape: bf16[128,512], index: 1, kind: input, shape index: {}]
  %s2 = inlined_call_operand.vmem [shape: f32[8,8,128], index: 2, kind: output, shape index: {}]
  %s3 = sld [smem:[#allocation0]]
  $region22: #{seq2seq_blocks_forward.3} parent=0
    _
  %s5 = ssub.s32 1, %s3
  %s6 = scalar_select 0, %s5, %s3
  // Predicated region
  $region2: #{seq2seq_blocks_forward.3} parent=0 // pred_check
    _
  $region3: #{seq2seq_blocks_forward.3} parent=0 // pred_check_branch
    %8 = sbr.rel (0) target = $region5
  $region4: #{seq2seq_blocks_forward.3} parent=0 // pred_region
    _
  $region5: #{seq2seq_blocks_forward.3} parent=0 // pred_fallthru
    _
  // Predicated region
  $region6: #{seq2seq_blocks_forward.3} parent=0 // pred_check
    _
  $region7: #{seq2seq_blocks_forward.3} parent=0 // pred_check_branch
    %10 = sbr.rel (0) target = $region9
  $region8: #{seq2seq_blocks_forward.3} parent=0 // pred_region
    _
  $region9: #{seq2seq_blocks_forward.3} parent=0 // pred_fallthru
    _
  %p12 = scmp.eq.s32.totalorder 0, 0
  // Predicated region
  $region10: #{seq2seq_blocks_forward.3} parent=0 // pred_check
    %p13 = pneg %p12
  $region11: #{seq2seq_blocks_forward.3} parent=0 // pred_check_branch
    %15 = sbr.rel (%p13) target = $region13
  $region12: #{seq2seq_blocks_forward.3} parent=0 // pred_region
    %16 = vst [vmem:[#allocation2] sm:$0xff] 0.0
    %17 = vst [vmem:[#allocation3] sm:$0xff] 0.0
  $region13: #{seq2seq_blocks_forward.3} parent=0 // pred_fallthru
    _
  %v18 = vld [vmem:[%s1] sm:$0xff]
  %v19 = vld [vmem:[%s1 + $0x8] sm:$0xff]
  %v20 = vld [vmem:[%s1 + $0x10] sm:$0xff]
  %v21 = vld [vmem:[%s1 + $0x18] sm:$0xff]
  %v22 = vld [vmem:[%s1 + $0x20] sm:$0xff]
  %v23 = vld [vmem:[%s1 + $0x28] sm:$0xff]
  %v24 = vld [vmem:[%s1 + $0x30] sm:$0xff]
  %v25 = vld [vmem:[%s1 + $0x38] sm:$0xff]
  %v26 = vld [vmem:[%s1 + $0x40] sm:$0xff]
  %v27 = vld [vmem:[%s1 + $0x48] sm:$0xff]
  %v28 = vld [vmem:[%s1 + $0x50] sm:$0xff]
  %v29 = vld [vmem:[%s1 + $0x58] sm:$0xff]
  %v30 = vld [vmem:[%s1 + $0x60] sm:$0xff]
  %v31 = vld [vmem:[%s1 + $0x68] sm:$0xff]
  %v32 = vld [vmem:[%s1 + $0x70] sm:$0xff]
  %v33 = vld [vmem:[%s1 + $0x78] sm:$0xff]
  %v34 = vld [vmem:[%s1 + $0x80] sm:$0xff]
  %v35 = vld [vmem:[%s1 + $0x88] sm:$0xff]
  %v36 = vld [vmem:[%s1 + $0x90] sm:$0xff]
  %v37 = vld [vmem:[%s1 + $0x98] sm:$0xff]
  %v38 = vld [vmem:[%s1 + $0xa0] sm:$0xff]
  %v39 = vld [vmem:[%s1 + $0xa8] sm:$0xff]
  %v40 = vld [vmem:[%s1 + $0xb0] sm:$0xff]
  %v41 = vld [vmem:[%s1 + $0xb8] sm:$0xff]
  %v42 = vld [vmem:[%s1 + $0xc0] sm:$0xff]
  %v43 = vld [vmem:[%s1 + $0xc8] sm:$0xff]
  %v44 = vld [vmem:[%s1 + $0xd0] sm:$0xff]
  %v45 = vld [vmem:[%s1 + $0xd8] sm:$0xff]
  %v46 = vld [vmem:[%s1 + $0xe0] sm:$0xff]
  %v47 = vld [vmem:[%s1 + $0xe8] sm:$0xff]
  %v48 = vld [vmem:[%s1 + $0xf0] sm:$0xff]
  %v49 = vld [vmem:[%s1 + $0xf8] sm:$0xff]
  %v50 = vld [vmem:[#allocation2] sm:$0xff]
  %v51 = vld [vmem:[%s0] sm:$0xff]
  %v52 = vld [vmem:[%s0 + $0x8] sm:$0xff]
  %v53 = vunpack.c.l.bf16 %v51
  %v54 = vunpack.c.h.bf16 %v51
  %v55 = vunpack.c.l.bf16 %v52
  %v56 = vunpack.c.h.bf16 %v52
  %v57 = vpack.c.bf16 %v50, %v50
  %v90 = vunpack.c.l.b16 %v18
  %v91 = vunpack.c.h.b16 %v18
  %v92 = vunpack.c.l.b16 %v19
  %v93 = vunpack.c.h.b16 %v19
  %v94 = vunpack.c.l.b16 %v20
  %v95 = vunpack.c.h.b16 %v20
  %v96 = vunpack.c.l.b16 %v21
  %v97 = vunpack.c.h.b16 %v21
  %v98 = vunpack.c.l.b16 %v22
  %v99 = vunpack.c.h.b16 %v22
  %v100 = vunpack.c.l.b16 %v23
  %v101 = vunpack.c.h.b16 %v23
  %v102 = vunpack.c.l.b16 %v24
  %v103 = vunpack.c.h.b16 %v24
  %v104 = vunpack.c.l.b16 %v25
  %v105 = vunpack.c.h.b16 %v25
  %v106 = vunpack.c.l.b16 %v26
  %v107 = vunpack.c.h.b16 %v26
  %v108 = vunpack.c.l.b16 %v27
  %v109 = vunpack.c.h.b16 %v27
  %v110 = vunpack.c.l.b16 %v28
  %v111 = vunpack.c.h.b16 %v28
  %v112 = vunpack.c.l.b16 %v29
  %v113 = vunpack.c.h.b16 %v29
  %v114 = vunpack.c.l.b16 %v30
  %v115 = vunpack.c.h.b16 %v30
  %v116 = vunpack.c.l.b16 %v31
  %v117 = vunpack.c.h.b16 %v31
  %v118 = vunpack.c.l.b16 %v32
  %v119 = vunpack.c.h.b16 %v32
  %v120 = vunpack.c.l.b16 %v33
  %v121 = vunpack.c.h.b16 %v33
  %v122 = vunpack.c.l.b16 %v34
  %v123 = vunpack.c.h.b16 %v34
  %v124 = vunpack.c.l.b16 %v35
  %v125 = vunpack.c.h.b16 %v35
  %v126 = vunpack.c.l.b16 %v36
  %v127 = vunpack.c.h.b16 %v36
  %v128 = vunpack.c.l.b16 %v37
  %v129 = vunpack.c.h.b16 %v37
  %v130 = vunpack.c.l.b16 %v38
  %v131 = vunpack.c.h.b16 %v38
  %v132 = vunpack.c.l.b16 %v39
  %v133 = vunpack.c.h.b16 %v39
  %v134 = vunpack.c.l.b16 %v40
  %v135 = vunpack.c.h.b16 %v40
  %v136 = vunpack.c.l.b16 %v41
  %v137 = vunpack.c.h.b16 %v41
  %v138 = vunpack.c.l.b16 %v42
  %v139 = vunpack.c.h.b16 %v42
  %v140 = vunpack.c.l.b16 %v43
  %v141 = vunpack.c.h.b16 %v43
  %v142 = vunpack.c.l.b16 %v44
  %v143 = vunpack.c.h.b16 %v44
  %v144 = vunpack.c.l.b16 %v45
  %v145 = vunpack.c.h.b16 %v45
  %v146 = vunpack.c.l.b16 %v46
  %v147 = vunpack.c.h.b16 %v46
  %v148 = vunpack.c.l.b16 %v47
  %v149 = vunpack.c.h.b16 %v47
  %v150 = vunpack.c.l.b16 %v48
  %v151 = vunpack.c.h.b16 %v48
  %v152 = vunpack.c.l.b16 %v49
  %v153 = vunpack.c.h.b16 %v49
  %v154 = vpack.c.b16 %v94, %v90
  %v155 = vpack.c.b16 %v95, %v91
  %v156 = vpack.c.b16 %v96, %v92
  %v157 = vpack.c.b16 %v97, %v93
  %v158 = vpack.c.b16 %v102, %v98
  %v159 = vpack.c.b16 %v103, %v99
  %v160 = vpack.c.b16 %v104, %v100
  %v161 = vpack.c.b16 %v105, %v101
  %v162 = vpack.c.b16 %v110, %v106
  %v163 = vpack.c.b16 %v111, %v107
  %v164 = vpack.c.b16 %v112, %v108
  %v165 = vpack.c.b16 %v113, %v109
  %v166 = vpack.c.b16 %v118, %v114
  %v167 = vpack.c.b16 %v119, %v115
  %v168 = vpack.c.b16 %v120, %v116
  %v169 = vpack.c.b16 %v121, %v117
  %v170 = vpack.c.b16 %v126, %v122
  %v171 = vpack.c.b16 %v127, %v123
  %v172 = vpack.c.b16 %v128, %v124
  %v173 = vpack.c.b16 %v129, %v125
  %v174 = vpack.c.b16 %v134, %v130
  %v175 = vpack.c.b16 %v135, %v131
  %v176 = vpack.c.b16 %v136, %v132
  %v177 = vpack.c.b16 %v137, %v133
  %v178 = vpack.c.b16 %v142, %v138
  %v179 = vpack.c.b16 %v143, %v139
  %v180 = vpack.c.b16 %v144, %v140
  %v181 = vpack.c.b16 %v145, %v141
  %v182 = vpack.c.b16 %v150, %v146
  %v183 = vpack.c.b16 %v151, %v147
  %v184 = vpack.c.b16 %v152, %v148
  %v185 = vpack.c.b16 %v153, %v149
  %218 = vmatprep.subr.bf16.mxu0 %v183
  %219 = vmatpush1.bf16.msra.mxu0 %v182
  %220 = vmatprep.subr.bf16.mxu0 %v179
  %221 = vmatpush1.bf16.msra.mxu0 %v178
  %222 = vmatprep.subr.bf16.mxu0 %v175
  %223 = vmatpush1.bf16.msra.mxu0 %v174
  %224 = vmatprep.subr.bf16.mxu0 %v171
  %225 = vmatpush1.bf16.msra.mxu0 %v170
  %226 = vmatprep.subr.bf16.mxu0 %v167
  %227 = vmatpush1.bf16.msra.mxu0 %v166
  %228 = vmatprep.subr.bf16.mxu0 %v163
  %229 = vmatpush1.bf16.msra.mxu0 %v162
  %230 = vmatprep.subr.bf16.mxu0 %v159
  %231 = vmatpush1.bf16.msra.mxu0 %v158
  %232 = vmatprep.subr.bf16.mxu0 %v155
  %233 = vmatpush1.bf16.msra.mxu0 %v154
  %234 = vmatprep.subr.bf16.mxu0 0
  %235 = vmatpush2.bf16.msra.mxu0 0
  %236 = vmatprep.subr.bf16.mxu0 0
  %237 = vmatpush2.bf16.msra.mxu0 0
  %238 = vmatprep.subr.bf16.mxu0 0
  %239 = vmatpush2.bf16.msra.mxu0 0
  %240 = vmatprep.subr.bf16.mxu0 0
  %241 = vmatpush2.bf16.msra.mxu0 0
  %242 = vmatprep.subr.bf16.mxu0 0
  %243 = vmatpush2.bf16.msra.mxu0 0
  %244 = vmatprep.subr.bf16.mxu0 0
  %245 = vmatpush2.bf16.msra.mxu0 0
  %246 = vmatprep.subr.bf16.mxu0 0
  %247 = vmatpush2.bf16.msra.mxu0 0
  %248 = vmatprep.subr.bf16.mxu0 0
  %249 = vmatpush2.bf16.msra.mxu0 0
  %250 = vmatprep.mubr.bf16.mxu0 0
  %251 = vmatmul.mubr.bf16.gmra.mxu0 %v57
  %v252 = vpop.f32.mrf.mxu0
  %v253 = vadd.f32 0.0, %v252
  %v254 = vpop.f32.mrf.mxu0
  %v255 = vadd.f32 0.0, %v254
  %v256 = vpop.f32.mrf.mxu0
  %v257 = vpop.f32.mrf.mxu0
  %258 = vdwg.mxu0
  %259 = vmatprep.subr.bf16.mxu0 %v185
  %260 = vmatpush1.bf16.msra.mxu0 %v184
  %261 = vmatprep.subr.bf16.mxu0 %v181
  %262 = vmatpush1.bf16.msra.mxu0 %v180
  %263 = vmatprep.subr.bf16.mxu0 %v177
  %264 = vmatpush1.bf16.msra.mxu0 %v176
  %265 = vmatprep.subr.bf16.mxu0 %v173
  %266 = vmatpush1.bf16.msra.mxu0 %v172
  %267 = vmatprep.subr.bf16.mxu0 %v169
  %268 = vmatpush1.bf16.msra.mxu0 %v168
  %269 = vmatprep.subr.bf16.mxu0 %v165
  %270 = vmatpush1.bf16.msra.mxu0 %v164
  %271 = vmatprep.subr.bf16.mxu0 %v161
  %272 = vmatpush1.bf16.msra.mxu0 %v160
  %273 = vmatprep.subr.bf16.mxu0 %v157
  %274 = vmatpush1.bf16.msra.mxu0 %v156
  %275 = vmatprep.subr.bf16.mxu0 0
  %276 = vmatpush2.bf16.msra.mxu0 0
  %277 = vmatprep.subr.bf16.mxu0 0
  %278 = vmatpush2.bf16.msra.mxu0 0
  %279 = vmatprep.subr.bf16.mxu0 0
  %280 = vmatpush2.bf16.msra.mxu0 0
  %281 = vmatprep.subr.bf16.mxu0 0
  %282 = vmatpush2.bf16.msra.mxu0 0
  %283 = vmatprep.subr.bf16.mxu0 0
  %284 = vmatpush2.bf16.msra.mxu0 0
  %285 = vmatprep.subr.bf16.mxu0 0
  %286 = vmatpush2.bf16.msra.mxu0 0
  %287 = vmatprep.subr.bf16.mxu0 0
  %288 = vmatpush2.bf16.msra.mxu0 0
  %289 = vmatprep.subr.bf16.mxu0 0
  %290 = vmatpush2.bf16.msra.mxu0 0
  %291 = vmatprep.mubr.bf16.mxu0 0
  %292 = vmatmul.mubr.bf16.gmra.mxu0 %v57
  %v293 = vpop.f32.mrf.mxu0
  %v294 = vadd.f32 0.0, %v293
  %v295 = vpop.f32.mrf.mxu0
  %v296 = vadd.f32 0.0, %v295
  %v297 = vpop.f32.mrf.mxu0
  %v298 = vpop.f32.mrf.mxu0
  %299 = vdwg.mxu0
  %v300 = vadd.f32 %v53, %v253
  %v301 = vadd.f32 %v54, %v255
  %v302 = vadd.f32 %v55, %v294
  %v303 = vadd.f32 %v56, %v296
  %v304 = vxor.u32 %v300, 2147483648
  %v305 = vxor.u32 %v301, 2147483648
  %v306 = vxor.u32 %v302, 2147483648
  %v307 = vmul.f32 %v304, 1.442695
  %v308 = vpow.pop %v307
  %v309 = vmul.f32 %v305, 1.442695
  %v310 = vpow.pop %v309
  %v311 = vmul.f32 %v306, 1.442695
  %v312 = vpow.pop %v311
  %v313 = vadd.f32 %v308, 1.0
  %v314 = vadd.f32 %v310, 1.0
  %v315 = vadd.f32 %v312, 1.0
  %v316 = vrcp.pop %v313
  %v317 = vmul.f32 1.0, %v316
  %v318 = vrcp.pop %v314
  %v319 = vmul.f32 1.0, %v318
  %v320 = vrcp.pop %v315
  %v321 = vmul.f32 1.0, %v320
  %v322 = vtanh.pop %v303
  %v323 = vld [vmem:[#allocation3] sm:$0xff]
  %v324 = vmul.f32 %v319, %v323
  %v325 = vmul.f32 %v317, %v322
  %v326 = vadd.f32 %v324, %v325
  %v327 = vtanh.pop %v326
  %v328 = vmul.f32 %v321, %v327
  %329 = vst [vmem:[#allocation3] sm:$0xff] %v326
  %330 = vst [vmem:[#allocation2] sm:$0xff] %v328
  %331 = vst [vmem:[%s2] sm:$0xff] %v328
  %v332 = vld [vmem:[#allocation2] sm:$0xff]
  %s333 = scalar_lea.vmem %s0, 16
  %v334 = vld [vmem:[%s333] sm:$0xff]
  %v335 = vld [vmem:[%s333 + $0x8] sm:$0xff]
  %v336 = vunpack.c.l.bf16 %v334
  %v337 = vunpack.c.h.bf16 %v334
  %v338 = vunpack.c.l.bf16 %v335
  %v339 = vunpack.c.h.bf16 %v335
  %v340 = vpack.c.bf16 %v332, %v332
  %341 = vmatprep.subr.bf16.mxu0 %v183
  %342 = vmatpush1.bf16.msra.mxu0 %v182
  %343 = vmatprep.subr.bf16.mxu0 %v179
  %344 = vmatpush1.bf16.msra.mxu0 %v178
  %345 = vmatprep.subr.bf16.mxu0 %v175
  %346 = vmatpush1.bf16.msra.mxu0 %v174
  %347 = vmatprep.subr.bf16.mxu0 %v171
  %348 = vmatpush1.bf16.msra.mxu0 %v170
  %349 = vmatprep.subr.bf16.mxu0 %v167
  %350 = vmatpush1.bf16.msra.mxu0 %v166
  %351 = vmatprep.subr.bf16.mxu0 %v163
  %352 = vmatpush1.bf16.msra.mxu0 %v162
  %353 = vmatprep.subr.bf16.mxu0 %v159
  %354 = vmatpush1.bf16.msra.mxu0 %v158
  %355 = vmatprep.subr.bf16.mxu0 %v155
  %356 = vmatpush1.bf16.msra.mxu0 %v154
  %357 = vmatprep.subr.bf16.mxu0 0
  %358 = vmatpush2.bf16.msra.mxu0 0
  %359 = vmatprep.subr.bf16.mxu0 0
  %360 = vmatpush2.bf16.msra.mxu0 0
  %361 = vmatprep.subr.bf16.mxu0 0
  %362 = vmatpush2.bf16.msra.mxu0 0
  %363 = vmatprep.subr.bf16.mxu0 0
  %364 = vmatpush2.bf16.msra.mxu0 0
  %365 = vmatprep.subr.bf16.mxu0 0
  %366 = vmatpush2.bf16.msra.mxu0 0
  %367 = vmatprep.subr.bf16.mxu0 0
  %368 = vmatpush2.bf16.msra.mxu0 0
  %369 = vmatprep.subr.bf16.mxu0 0
  %370 = vmatpush2.bf16.msra.mxu0 0
  %371 = vmatprep.subr.bf16.mxu0 0
  %372 = vmatpush2.bf16.msra.mxu0 0
  %373 = vmatprep.mubr.bf16.mxu0 0
  %374 = vmatmul.mubr.bf16.gmra.mxu0 %v340
  %v375 = vpop.f32.mrf.mxu0
  %v376 = vadd.f32 0.0, %v375
  %v377 = vpop.f32.mrf.mxu0
  %v378 = vadd.f32 0.0, %v377
  %v379 = vpop.f32.mrf.mxu0
  %v380 = vpop.f32.mrf.mxu0
  %381 = vdwg.mxu0
  %382 = vmatprep.subr.bf16.mxu0 %v185
  %383 = vmatpush1.bf16.msra.mxu0 %v184
  %384 = vmatprep.subr.bf16.mxu0 %v181
  %385 = vmatpush1.bf16.msra.mxu0 %v180
  %386 = vmatprep.subr.bf16.mxu0 %v177
  %387 = vmatpush1.bf16.msra.mxu0 %v176
  %388 = vmatprep.subr.bf16.mxu0 %v173
  %389 = vmatpush1.bf16.msra.mxu0 %v172
  %390 = vmatprep.subr.bf16.mxu0 %v169
  %391 = vmatpush1.bf16.msra.mxu0 %v168
  %392 = vmatprep.subr.bf16.mxu0 %v165
  %393 = vmatpush1.bf16.msra.mxu0 %v164
  %394 = vmatprep.subr.bf16.mxu0 %v161
  %395 = vmatpush1.bf16.msra.mxu0 %v160
  %396 = vmatprep.subr.bf16.mxu0 %v157
  %397 = vmatpush1.bf16.msra.mxu0 %v156
  %398 = vmatprep.subr.bf16.mxu0 0
  %399 = vmatpush2.bf16.msra.mxu0 0
  %400 = vmatprep.subr.bf16.mxu0 0
  %401 = vmatpush2.bf16.msra.mxu0 0
  %402 = vmatprep.subr.bf16.mxu0 0
  %403 = vmatpush2.bf16.msra.mxu0 0
  %404 = vmatprep.subr.bf16.mxu0 0
  %405 = vmatpush2.bf16.msra.mxu0 0
  %406 = vmatprep.subr.bf16.mxu0 0
  %407 = vmatpush2.bf16.msra.mxu0 0
  %408 = vmatprep.subr.bf16.mxu0 0
  %409 = vmatpush2.bf16.msra.mxu0 0
  %410 = vmatprep.subr.bf16.mxu0 0
  %411 = vmatpush2.bf16.msra.mxu0 0
  %412 = vmatprep.subr.bf16.mxu0 0
  %413 = vmatpush2.bf16.msra.mxu0 0
  %414 = vmatprep.mubr.bf16.mxu0 0
  %415 = vmatmul.mubr.bf16.gmra.mxu0 %v340
  %v416 = vpop.f32.mrf.mxu0
  %v417 = vadd.f32 0.0, %v416
  %v418 = vpop.f32.mrf.mxu0
  %v419 = vadd.f32 0.0, %v418
  %v420 = vpop.f32.mrf.mxu0
  %v421 = vpop.f32.mrf.mxu0
  %422 = vdwg.mxu0
  %v423 = vadd.f32 %v336, %v376
  %v424 = vadd.f32 %v337, %v378
  %v425 = vadd.f32 %v338, %v417
  %v426 = vadd.f32 %v339, %v419
  %v427 = vxor.u32 %v423, 2147483648
  %v428 = vxor.u32 %v424, 2147483648
  %v429 = vxor.u32 %v425, 2147483648
  %v430 = vmul.f32 %v427, 1.442695
  %v431 = vpow.pop %v430
  %v432 = vmul.f32 %v428, 1.442695
  %v433 = vpow.pop %v432
  %v434 = vmul.f32 %v429, 1.442695
  %v435 = vpow.pop %v434
  %v436 = vadd.f32 %v431, 1.0
  %v437 = vadd.f32 %v433, 1.0
  %v438 = vadd.f32 %v435, 1.0
  %v439 = vrcp.pop %v436
  %v440 = vmul.f32 1.0, %v439
  %v441 = vrcp.pop %v437
  %v442 = vmul.f32 1.0, %v441
  %v443 = vrcp.pop %v438
  %v444 = vmul.f32 1.0, %v443
  %v445 = vtanh.pop %v426
  %v446 = vld [vmem:[#allocation3] sm:$0xff]
  %v447 = vmul.f32 %v442, %v446
  %v448 = vmul.f32 %v440, %v445
  %v449 = vadd.f32 %v447, %v448
  %v450 = vtanh.pop %v449
  %v451 = vmul.f32 %v444, %v450
  %452 = vst [vmem:[#allocation3] sm:$0xff] %v449
  %453 = vst [vmem:[#allocation2] sm:$0xff] %v451
  %s454 = scalar_lea.vmem %s2, 8
  %455 = vst [vmem:[%s454] sm:$0xff] %v451
  %v456 = vld [vmem:[#allocation2] sm:$0xff]
  %s457 = scalar_lea.vmem %s0, 32
  %v458 = vld [vmem:[%s457] sm:$0xff]
  %v459 = vld [vmem:[%s457 + $0x8] sm:$0xff]
  %v460 = vunpack.c.l.bf16 %v458
  %v461 = vunpack.c.h.bf16 %v458
  %v462 = vunpack.c.l.bf16 %v459
  %v463 = vunpack.c.h.bf16 %v459
  %v464 = vpack.c.bf16 %v456, %v456
  %465 = vmatprep.subr.bf16.mxu0 %v183
  %466 = vmatpush1.bf16.msra.mxu0 %v182
  %467 = vmatprep.subr.bf16.mxu0 %v179
  %468 = vmatpush1.bf16.msra.mxu0 %v178
  %469 = vmatprep.subr.bf16.mxu0 %v175
  %470 = vmatpush1.bf16.msra.mxu0 %v174
  %471 = vmatprep.subr.bf16.mxu0 %v171
  %472 = vmatpush1.bf16.msra.mxu0 %v170
  %473 = vmatprep.subr.bf16.mxu0 %v167
  %474 = vmatpush1.bf16.msra.mxu0 %v166
  %475 = vmatprep.subr.bf16.mxu0 %v163
  %476 = vmatpush1.bf16.msra.mxu0 %v162
  %477 = vmatprep.subr.bf16.mxu0 %v159
  %478 = vmatpush1.bf16.msra.mxu0 %v158
  %479 = vmatprep.subr.bf16.mxu0 %v155
  %480 = vmatpush1.bf16.msra.mxu0 %v154
  %481 = vmatprep.subr.bf16.mxu0 0
  %482 = vmatpush2.bf16.msra.mxu0 0
  %483 = vmatprep.subr.bf16.mxu0 0
  %484 = vmatpush2.bf16.msra.mxu0 0
  %485 = vmatprep.subr.bf16.mxu0 0
  %486 = vmatpush2.bf16.msra.mxu0 0
  %487 = vmatprep.subr.bf16.mxu0 0
  %488 = vmatpush2.bf16.msra.mxu0 0
  %489 = vmatprep.subr.bf16.mxu0 0
  %490 = vmatpush2.bf16.msra.mxu0 0
  %491 = vmatprep.subr.bf16.mxu0 0
  %492 = vmatpush2.bf16.msra.mxu0 0
  %493 = vmatprep.subr.bf16.mxu0 0
  %494 = vmatpush2.bf16.msra.mxu0 0
  %495 = vmatprep.subr.bf16.mxu0 0
  %496 = vmatpush2.bf16.msra.mxu0 0
  %497 = vmatprep.mubr.bf16.mxu0 0
  %498 = vmatmul.mubr.bf16.gmra.mxu0 %v464
  %v499 = vpop.f32.mrf.mxu0
  %v500 = vadd.f32 0.0, %v499
  %v501 = vpop.f32.mrf.mxu0
  %v502 = vadd.f32 0.0, %v501
  %v503 = vpop.f32.mrf.mxu0
  %v504 = vpop.f32.mrf.mxu0
  %505 = vdwg.mxu0
  %506 = vmatprep.subr.bf16.mxu0 %v185
  %507 = vmatpush1.bf16.msra.mxu0 %v184
  %508 = vmatprep.subr.bf16.mxu0 %v181
  %509 = vmatpush1.bf16.msra.mxu0 %v180
  %510 = vmatprep.subr.bf16.mxu0 %v177
  %511 = vmatpush1.bf16.msra.mxu0 %v176
  %512 = vmatprep.subr.bf16.mxu0 %v173
  %513 = vmatpush1.bf16.msra.mxu0 %v172
  %514 = vmatprep.subr.bf16.mxu0 %v169
  %515 = vmatpush1.bf16.msra.mxu0 %v168
  %516 = vmatprep.subr.bf16.mxu0 %v165
  %517 = vmatpush1.bf16.msra.mxu0 %v164
  %518 = vmatprep.subr.bf16.mxu0 %v161
  %519 = vmatpush1.bf16.msra.mxu0 %v160
  %520 = vmatprep.subr.bf16.mxu0 %v157
  %521 = vmatpush1.bf16.msra.mxu0 %v156
  %522 = vmatprep.subr.bf16.mxu0 0
  %523 = vmatpush2.bf16.msra.mxu0 0
  %524 = vmatprep.subr.bf16.mxu0 0
  %525 = vmatpush2.bf16.msra.mxu0 0
  %526 = vmatprep.subr.bf16.mxu0 0
  %527 = vmatpush2.bf16.msra.mxu0 0
  %528 = vmatprep.subr.bf16.mxu0 0
  %529 = vmatpush2.bf16.msra.mxu0 0
  %530 = vmatprep.subr.bf16.mxu0 0
  %531 = vmatpush2.bf16.msra.mxu0 0
  %532 = vmatprep.subr.bf16.mxu0 0
  %533 = vmatpush2.bf16.msra.mxu0 0
  %534 = vmatprep.subr.bf16.mxu0 0
  %535 = vmatpush2.bf16.msra.mxu0 0
  %536 = vmatprep.subr.bf16.mxu0 0
  %537 = vmatpush2.bf16.msra.mxu0 0
  %538 = vmatprep.mubr.bf16.mxu0 0
  %539 = vmatmul.mubr.bf16.gmra.mxu0 %v464
  %v540 = vpop.f32.mrf.mxu0
  %v541 = vadd.f32 0.0, %v540
  %v542 = vpop.f32.mrf.mxu0
  %v543 = vadd.f32 0.0, %v542
  %v544 = vpop.f32.mrf.mxu0
  %v545 = vpop.f32.mrf.mxu0
  %546 = vdwg.mxu0
  %v547 = vadd.f32 %v460, %v500
  %v548 = vadd.f32 %v461, %v502
  %v549 = vadd.f32 %v462, %v541
  %v550 = vadd.f32 %v463, %v543
  %v551 = vxor.u32 %v547, 2147483648
  %v552 = vxor.u32 %v548, 2147483648
  %v553 = vxor.u32 %v549, 2147483648
  %v554 = vmul.f32 %v551, 1.442695
  %v555 = vpow.pop %v554
  %v556 = vmul.f32 %v552, 1.442695
  %v557 = vpow.pop %v556
  %v558 = vmul.f32 %v553, 1.442695
  %v559 = vpow.pop %v558
  %v560 = vadd.f32 %v555, 1.0
  %v561 = vadd.f32 %v557, 1.0
  %v562 = vadd.f32 %v559, 1.0
  %v563 = vrcp.pop %v560
  %v564 = vmul.f32 1.0, %v563
  %v565 = vrcp.pop %v561
  %v566 = vmul.f32 1.0, %v565
  %v567 = vrcp.pop %v562
  %v568 = vmul.f32 1.0, %v567
  %v569 = vtanh.pop %v550
  %v570 = vld [vmem:[#allocation3] sm:$0xff]
  %v571 = vmul.f32 %v566, %v570
  %v572 = vmul.f32 %v564, %v569
  %v573 = vadd.f32 %v571, %v572
  %v574 = vtanh.pop %v573
  %v575 = vmul.f32 %v568, %v574
  %576 = vst [vmem:[#allocation3] sm:$0xff] %v573
  %577 = vst [vmem:[#allocation2] sm:$0xff] %v575
  %s578 = scalar_lea.vmem %s2, 16
  %579 = vst [vmem:[%s578] sm:$0xff] %v575
  %v580 = vld [vmem:[#allocation2] sm:$0xff]
  %s581 = scalar_lea.vmem %s0, 48
  %v582 = vld [vmem:[%s581] sm:$0xff]
  %v583 = vld [vmem:[%s581 + $0x8] sm:$0xff]
  %v584 = vunpack.c.l.bf16 %v582
  %v585 = vunpack.c.h.bf16 %v582
  %v586 = vunpack.c.l.bf16 %v583
  %v587 = vunpack.c.h.bf16 %v583
  %v588 = vpack.c.bf16 %v580, %v580
  %589 = vmatprep.subr.bf16.mxu0 %v183
  %590 = vmatpush1.bf16.msra.mxu0 %v182
  %591 = vmatprep.subr.bf16.mxu0 %v179
  %592 = vmatpush1.bf16.msra.mxu0 %v178
  %593 = vmatprep.subr.bf16.mxu0 %v175
  %594 = vmatpush1.bf16.msra.mxu0 %v174
  %595 = vmatprep.subr.bf16.mxu0 %v171
  %596 = vmatpush1.bf16.msra.mxu0 %v170
  %597 = vmatprep.subr.bf16.mxu0 %v167
  %598 = vmatpush1.bf16.msra.mxu0 %v166
  %599 = vmatprep.subr.bf16.mxu0 %v163
  %600 = vmatpush1.bf16.msra.mxu0 %v162
  %601 = vmatprep.subr.bf16.mxu0 %v159
  %602 = vmatpush1.bf16.msra.mxu0 %v158
  %603 = vmatprep.subr.bf16.mxu0 %v155
  %604 = vmatpush1.bf16.msra.mxu0 %v154
  %605 = vmatprep.subr.bf16.mxu0 0
  %606 = vmatpush2.bf16.msra.mxu0 0
  %607 = vmatprep.subr.bf16.mxu0 0
  %608 = vmatpush2.bf16.msra.mxu0 0
  %609 = vmatprep.subr.bf16.mxu0 0
  %610 = vmatpush2.bf16.msra.mxu0 0
  %611 = vmatprep.subr.bf16.mxu0 0
  %612 = vmatpush2.bf16.msra.mxu0 0
  %613 = vmatprep.subr.bf16.mxu0 0
  %614 = vmatpush2.bf16.msra.mxu0 0
  %615 = vmatprep.subr.bf16.mxu0 0
  %616 = vmatpush2.bf16.msra.mxu0 0
  %617 = vmatprep.subr.bf16.mxu0 0
  %618 = vmatpush2.bf16.msra.mxu0 0
  %619 = vmatprep.subr.bf16.mxu0 0
  %620 = vmatpush2.bf16.msra.mxu0 0
  %621 = vmatprep.mubr.bf16.mxu0 0
  %622 = vmatmul.mubr.bf16.gmra.mxu0 %v588
  %v623 = vpop.f32.mrf.mxu0
  %v624 = vadd.f32 0.0, %v623
  %v625 = vpop.f32.mrf.mxu0
  %v626 = vadd.f32 0.0, %v625
  %v627 = vpop.f32.mrf.mxu0
  %v628 = vpop.f32.mrf.mxu0
  %629 = vdwg.mxu0
  %630 = vmatprep.subr.bf16.mxu0 %v185
  %631 = vmatpush1.bf16.msra.mxu0 %v184
  %632 = vmatprep.subr.bf16.mxu0 %v181
  %633 = vmatpush1.bf16.msra.mxu0 %v180
  %634 = vmatprep.subr.bf16.mxu0 %v177
  %635 = vmatpush1.bf16.msra.mxu0 %v176
  %636 = vmatprep.subr.bf16.mxu0 %v173
  %637 = vmatpush1.bf16.msra.mxu0 %v172
  %638 = vmatprep.subr.bf16.mxu0 %v169
  %639 = vmatpush1.bf16.msra.mxu0 %v168
  %640 = vmatprep.subr.bf16.mxu0 %v165
  %641 = vmatpush1.bf16.msra.mxu0 %v164
  %642 = vmatprep.subr.bf16.mxu0 %v161
  %643 = vmatpush1.bf16.msra.mxu0 %v160
  %644 = vmatprep.subr.bf16.mxu0 %v157
  %645 = vmatpush1.bf16.msra.mxu0 %v156
  %646 = vmatprep.subr.bf16.mxu0 0
  %647 = vmatpush2.bf16.msra.mxu0 0
  %648 = vmatprep.subr.bf16.mxu0 0
  %649 = vmatpush2.bf16.msra.mxu0 0
  %650 = vmatprep.subr.bf16.mxu0 0
  %651 = vmatpush2.bf16.msra.mxu0 0
  %652 = vmatprep.subr.bf16.mxu0 0
  %653 = vmatpush2.bf16.msra.mxu0 0
  %654 = vmatprep.subr.bf16.mxu0 0
  %655 = vmatpush2.bf16.msra.mxu0 0
  %656 = vmatprep.subr.bf16.mxu0 0
  %657 = vmatpush2.bf16.msra.mxu0 0
  %658 = vmatprep.subr.bf16.mxu0 0
  %659 = vmatpush2.bf16.msra.mxu0 0
  %660 = vmatprep.subr.bf16.mxu0 0
  %661 = vmatpush2.bf16.msra.mxu0 0
  %662 = vmatprep.mubr.bf16.mxu0 0
  %663 = vmatmul.mubr.bf16.gmra.mxu0 %v588
  %v664 = vpop.f32.mrf.mxu0
  %v665 = vadd.f32 0.0, %v664
  %v666 = vpop.f32.mrf.mxu0
  %v667 = vadd.f32 0.0, %v666
  %v668 = vpop.f32.mrf.mxu0
  %v669 = vpop.f32.mrf.mxu0
  %670 = vdwg.mxu0
  %v671 = vadd.f32 %v584, %v624
  %v672 = vadd.f32 %v585, %v626
  %v673 = vadd.f32 %v586, %v665
  %v674 = vadd.f32 %v587, %v667
  %v675 = vxor.u32 %v671, 2147483648
  %v676 = vxor.u32 %v672, 2147483648
  %v677 = vxor.u32 %v673, 2147483648
  %v678 = vmul.f32 %v675, 1.442695
  %v679 = vpow.pop %v678
  %v680 = vmul.f32 %v676, 1.442695
  %v681 = vpow.pop %v680
  %v682 = vmul.f32 %v677, 1.442695
  %v683 = vpow.pop %v682
  %v684 = vadd.f32 %v679, 1.0
  %v685 = vadd.f32 %v681, 1.0
  %v686 = vadd.f32 %v683, 1.0
  %v687 = vrcp.pop %v684
  %v688 = vmul.f32 1.0, %v687
  %v689 = vrcp.pop %v685
  %v690 = vmul.f32 1.0, %v689
  %v691 = vrcp.pop %v686
  %v692 = vmul.f32 1.0, %v691
  %v693 = vtanh.pop %v674
  %v694 = vld [vmem:[#allocation3] sm:$0xff]
  %v695 = vmul.f32 %v690, %v694
  %v696 = vmul.f32 %v688, %v693
  %v697 = vadd.f32 %v695, %v696
  %v698 = vtanh.pop %v697
  %v699 = vmul.f32 %v692, %v698
  %700 = vst [vmem:[#allocation3] sm:$0xff] %v697
  %701 = vst [vmem:[#allocation2] sm:$0xff] %v699
  %s702 = scalar_lea.vmem %s2, 24
  %703 = vst [vmem:[%s702] sm:$0xff] %v699
  %v704 = vld [vmem:[#allocation2] sm:$0xff]
  %s705 = scalar_lea.vmem %s0, 64
  %v706 = vld [vmem:[%s705] sm:$0xff]
  %v707 = vld [vmem:[%s705 + $0x8] sm:$0xff]
  %v708 = vunpack.c.l.bf16 %v706
  %v709 = vunpack.c.h.bf16 %v706
  %v710 = vunpack.c.l.bf16 %v707
  %v711 = vunpack.c.h.bf16 %v707
  %v712 = vpack.c.bf16 %v704, %v704
  %713 = vmatprep.subr.bf16.mxu0 %v183
  %714 = vmatpush1.bf16.msra.mxu0 %v182
  %715 = vmatprep.subr.bf16.mxu0 %v179
  %716 = vmatpush1.bf16.msra.mxu0 %v178
  %717 = vmatprep.subr.bf16.mxu0 %v175
  %718 = vmatpush1.bf16.msra.mxu0 %v174
  %719 = vmatprep.subr.bf16.mxu0 %v171
  %720 = vmatpush1.bf16.msra.mxu0 %v170
  %721 = vmatprep.subr.bf16.mxu0 %v167
  %722 = vmatpush1.bf16.msra.mxu0 %v166
  %723 = vmatprep.subr.bf16.mxu0 %v163
  %724 = vmatpush1.bf16.msra.mxu0 %v162
  %725 = vmatprep.subr.bf16.mxu0 %v159
  %726 = vmatpush1.bf16.msra.mxu0 %v158
  %727 = vmatprep.subr.bf16.mxu0 %v155
  %728 = vmatpush1.bf16.msra.mxu0 %v154
  %729 = vmatprep.subr.bf16.mxu0 0
  %730 = vmatpush2.bf16.msra.mxu0 0
  %731 = vmatprep.subr.bf16.mxu0 0
  %732 = vmatpush2.bf16.msra.mxu0 0
  %733 = vmatprep.subr.bf16.mxu0 0
  %734 = vmatpush2.bf16.msra.mxu0 0
  %735 = vmatprep.subr.bf16.mxu0 0
  %736 = vmatpush2.bf16.msra.mxu0 0
  %737 = vmatprep.subr.bf16.mxu0 0
  %738 = vmatpush2.bf16.msra.mxu0 0
  %739 = vmatprep.subr.bf16.mxu0 0
  %740 = vmatpush2.bf16.msra.mxu0 0
  %741 = vmatprep.subr.bf16.mxu0 0
  %742 = vmatpush2.bf16.msra.mxu0 0
  %743 = vmatprep.subr.bf16.mxu0 0
  %744 = vmatpush2.bf16.msra.mxu0 0
  %745 = vmatprep.mubr.bf16.mxu0 0
  %746 = vmatmul.mubr.bf16.gmra.mxu0 %v712
  %v747 = vpop.f32.mrf.mxu0
  %v748 = vadd.f32 0.0, %v747
  %v749 = vpop.f32.mrf.mxu0
  %v750 = vadd.f32 0.0, %v749
  %v751 = vpop.f32.mrf.mxu0
  %v752 = vpop.f32.mrf.mxu0
  %753 = vdwg.mxu0
  %754 = vmatprep.subr.bf16.mxu0 %v185
  %755 = vmatpush1.bf16.msra.mxu0 %v184
  %756 = vmatprep.subr.bf16.mxu0 %v181
  %757 = vmatpush1.bf16.msra.mxu0 %v180
  %758 = vmatprep.subr.bf16.mxu0 %v177
  %759 = vmatpush1.bf16.msra.mxu0 %v176
  %760 = vmatprep.subr.bf16.mxu0 %v173
  %761 = vmatpush1.bf16.msra.mxu0 %v172
  %762 = vmatprep.subr.bf16.mxu0 %v169
  %763 = vmatpush1.bf16.msra.mxu0 %v168
  %764 = vmatprep.subr.bf16.mxu0 %v165
  %765 = vmatpush1.bf16.msra.mxu0 %v164
  %766 = vmatprep.subr.bf16.mxu0 %v161
  %767 = vmatpush1.bf16.msra.mxu0 %v160
  %768 = vmatprep.subr.bf16.mxu0 %v157
  %769 = vmatpush1.bf16.msra.mxu0 %v156
  %770 = vmatprep.subr.bf16.mxu0 0
  %771 = vmatpush2.bf16.msra.mxu0 0
  %772 = vmatprep.subr.bf16.mxu0 0
  %773 = vmatpush2.bf16.msra.mxu0 0
  %774 = vmatprep.subr.bf16.mxu0 0
  %775 = vmatpush2.bf16.msra.mxu0 0
  %776 = vmatprep.subr.bf16.mxu0 0
  %777 = vmatpush2.bf16.msra.mxu0 0
  %778 = vmatprep.subr.bf16.mxu0 0
  %779 = vmatpush2.bf16.msra.mxu0 0
  %780 = vmatprep.subr.bf16.mxu0 0
  %781 = vmatpush2.bf16.msra.mxu0 0
  %782 = vmatprep.subr.bf16.mxu0 0
  %783 = vmatpush2.bf16.msra.mxu0 0
  %784 = vmatprep.subr.bf16.mxu0 0
  %785 = vmatpush2.bf16.msra.mxu0 0
  %786 = vmatprep.mubr.bf16.mxu0 0
  %787 = vmatmul.mubr.bf16.gmra.mxu0 %v712
  %v788 = vpop.f32.mrf.mxu0
  %v789 = vadd.f32 0.0, %v788
  %v790 = vpop.f32.mrf.mxu0
  %v791 = vadd.f32 0.0, %v790
  %v792 = vpop.f32.mrf.mxu0
  %v793 = vpop.f32.mrf.mxu0
  %794 = vdwg.mxu0
  %v795 = vadd.f32 %v708, %v748
  %v796 = vadd.f32 %v709, %v750
  %v797 = vadd.f32 %v710, %v789
  %v798 = vadd.f32 %v711, %v791
  %v799 = vxor.u32 %v795, 2147483648
  %v800 = vxor.u32 %v796, 2147483648
  %v801 = vxor.u32 %v797, 2147483648
  %v802 = vmul.f32 %v799, 1.442695
  %v803 = vpow.pop %v802
  %v804 = vmul.f32 %v800, 1.442695
  %v805 = vpow.pop %v804
  %v806 = vmul.f32 %v801, 1.442695
  %v807 = vpow.pop %v806
  %v808 = vadd.f32 %v803, 1.0
  %v809 = vadd.f32 %v805, 1.0
  %v810 = vadd.f32 %v807, 1.0
  %v811 = vrcp.pop %v808
  %v812 = vmul.f32 1.0, %v811
  %v813 = vrcp.pop %v809
  %v814 = vmul.f32 1.0, %v813
  %v815 = vrcp.pop %v810
  %v816 = vmul.f32 1.0, %v815
  %v817 = vtanh.pop %v798
  %v818 = vld [vmem:[#allocation3] sm:$0xff]
  %v819 = vmul.f32 %v814, %v818
  %v820 = vmul.f32 %v812, %v817
  %v821 = vadd.f32 %v819, %v820
  %v822 = vtanh.pop %v821
  %v823 = vmul.f32 %v816, %v822
  %824 = vst [vmem:[#allocation3] sm:$0xff] %v821
  %825 = vst [vmem:[#allocation2] sm:$0xff] %v823
  %s826 = scalar_lea.vmem %s2, 32
  %827 = vst [vmem:[%s826] sm:$0xff] %v823
  %v828 = vld [vmem:[#allocation2] sm:$0xff]
  %s829 = scalar_lea.vmem %s0, 80
  %v830 = vld [vmem:[%s829] sm:$0xff]
  %v831 = vld [vmem:[%s829 + $0x8] sm:$0xff]
  %v832 = vunpack.c.l.bf16 %v830
  %v833 = vunpack.c.h.bf16 %v830
  %v834 = vunpack.c.l.bf16 %v831
  %v835 = vunpack.c.h.bf16 %v831
  %v836 = vpack.c.bf16 %v828, %v828
  %837 = vmatprep.subr.bf16.mxu0 %v183
  %838 = vmatpush1.bf16.msra.mxu0 %v182
  %839 = vmatprep.subr.bf16.mxu0 %v179
  %840 = vmatpush1.bf16.msra.mxu0 %v178
  %841 = vmatprep.subr.bf16.mxu0 %v175
  %842 = vmatpush1.bf16.msra.mxu0 %v174
  %843 = vmatprep.subr.bf16.mxu0 %v171
  %844 = vmatpush1.bf16.msra.mxu0 %v170
  %845 = vmatprep.subr.bf16.mxu0 %v167
  %846 = vmatpush1.bf16.msra.mxu0 %v166
  %847 = vmatprep.subr.bf16.mxu0 %v163
  %848 = vmatpush1.bf16.msra.mxu0 %v162
  %849 = vmatprep.subr.bf16.mxu0 %v159
  %850 = vmatpush1.bf16.msra.mxu0 %v158
  %851 = vmatprep.subr.bf16.mxu0 %v155
  %852 = vmatpush1.bf16.msra.mxu0 %v154
  %853 = vmatprep.subr.bf16.mxu0 0
  %854 = vmatpush2.bf16.msra.mxu0 0
  %855 = vmatprep.subr.bf16.mxu0 0
  %856 = vmatpush2.bf16.msra.mxu0 0
  %857 = vmatprep.subr.bf16.mxu0 0
  %858 = vmatpush2.bf16.msra.mxu0 0
  %859 = vmatprep.subr.bf16.mxu0 0
  %860 = vmatpush2.bf16.msra.mxu0 0
  %861 = vmatprep.subr.bf16.mxu0 0
  %862 = vmatpush2.bf16.msra.mxu0 0
  %863 = vmatprep.subr.bf16.mxu0 0
  %864 = vmatpush2.bf16.msra.mxu0 0
  %865 = vmatprep.subr.bf16.mxu0 0
  %866 = vmatpush2.bf16.msra.mxu0 0
  %867 = vmatprep.subr.bf16.mxu0 0
  %868 = vmatpush2.bf16.msra.mxu0 0
  %869 = vmatprep.mubr.bf16.mxu0 0
  %870 = vmatmul.mubr.bf16.gmra.mxu0 %v836
  %v871 = vpop.f32.mrf.mxu0
  %v872 = vadd.f32 0.0, %v871
  %v873 = vpop.f32.mrf.mxu0
  %v874 = vadd.f32 0.0, %v873
  %v875 = vpop.f32.mrf.mxu0
  %v876 = vpop.f32.mrf.mxu0
  %877 = vdwg.mxu0
  %878 = vmatprep.subr.bf16.mxu0 %v185
  %879 = vmatpush1.bf16.msra.mxu0 %v184
  %880 = vmatprep.subr.bf16.mxu0 %v181
  %881 = vmatpush1.bf16.msra.mxu0 %v180
  %882 = vmatprep.subr.bf16.mxu0 %v177
  %883 = vmatpush1.bf16.msra.mxu0 %v176
  %884 = vmatprep.subr.bf16.mxu0 %v173
  %885 = vmatpush1.bf16.msra.mxu0 %v172
  %886 = vmatprep.subr.bf16.mxu0 %v169
  %887 = vmatpush1.bf16.msra.mxu0 %v168
  %888 = vmatprep.subr.bf16.mxu0 %v165
  %889 = vmatpush1.bf16.msra.mxu0 %v164
  %890 = vmatprep.subr.bf16.mxu0 %v161
  %891 = vmatpush1.bf16.msra.mxu0 %v160
  %892 = vmatprep.subr.bf16.mxu0 %v157
  %893 = vmatpush1.bf16.msra.mxu0 %v156
  %894 = vmatprep.subr.bf16.mxu0 0
  %895 = vmatpush2.bf16.msra.mxu0 0
  %896 = vmatprep.subr.bf16.mxu0 0
  %897 = vmatpush2.bf16.msra.mxu0 0
  %898 = vmatprep.subr.bf16.mxu0 0
  %899 = vmatpush2.bf16.msra.mxu0 0
  %900 = vmatprep.subr.bf16.mxu0 0
  %901 = vmatpush2.bf16.msra.mxu0 0
  %902 = vmatprep.subr.bf16.mxu0 0
  %903 = vmatpush2.bf16.msra.mxu0 0
  %904 = vmatprep.subr.bf16.mxu0 0
  %905 = vmatpush2.bf16.msra.mxu0 0
  %906 = vmatprep.subr.bf16.mxu0 0
  %907 = vmatpush2.bf16.msra.mxu0 0
  %908 = vmatprep.subr.bf16.mxu0 0
  %909 = vmatpush2.bf16.msra.mxu0 0
  %910 = vmatprep.mubr.bf16.mxu0 0
  %911 = vmatmul.mubr.bf16.gmra.mxu0 %v836
  %v912 = vpop.f32.mrf.mxu0
  %v913 = vadd.f32 0.0, %v912
  %v914 = vpop.f32.mrf.mxu0
  %v915 = vadd.f32 0.0, %v914
  %v916 = vpop.f32.mrf.mxu0
  %v917 = vpop.f32.mrf.mxu0
  %918 = vdwg.mxu0
  %v919 = vadd.f32 %v832, %v872
  %v920 = vadd.f32 %v833, %v874
  %v921 = vadd.f32 %v834, %v913
  %v922 = vadd.f32 %v835, %v915
  %v923 = vxor.u32 %v919, 2147483648
  %v924 = vxor.u32 %v920, 2147483648
  %v925 = vxor.u32 %v921, 2147483648
  %v926 = vmul.f32 %v923, 1.442695
  %v927 = vpow.pop %v926
  %v928 = vmul.f32 %v924, 1.442695
  %v929 = vpow.pop %v928
  %v930 = vmul.f32 %v925, 1.442695
  %v931 = vpow.pop %v930
  %v932 = vadd.f32 %v927, 1.0
  %v933 = vadd.f32 %v929, 1.0
  %v934 = vadd.f32 %v931, 1.0
  %v935 = vrcp.pop %v932
  %v936 = vmul.f32 1.0, %v935
  %v937 = vrcp.pop %v933
  %v938 = vmul.f32 1.0, %v937
  %v939 = vrcp.pop %v934
  %v940 = vmul.f32 1.0, %v939
  %v941 = vtanh.pop %v922
  %v942 = vld [vmem:[#allocation3] sm:$0xff]
  %v943 = vmul.f32 %v938, %v942
  %v944 = vmul.f32 %v936, %v941
  %v945 = vadd.f32 %v943, %v944
  %v946 = vtanh.pop %v945
  %v947 = vmul.f32 %v940, %v946
  %948 = vst [vmem:[#allocation3] sm:$0xff] %v945
  %949 = vst [vmem:[#allocation2] sm:$0xff] %v947
  %s950 = scalar_lea.vmem %s2, 40
  %951 = vst [vmem:[%s950] sm:$0xff] %v947
  %v952 = vld [vmem:[#allocation2] sm:$0xff]
  %s953 = scalar_lea.vmem %s0, 96
  %v954 = vld [vmem:[%s953] sm:$0xff]
  %v955 = vld [vmem:[%s953 + $0x8] sm:$0xff]
  %v956 = vunpack.c.l.bf16 %v954
  %v957 = vunpack.c.h.bf16 %v954
  %v958 = vunpack.c.l.bf16 %v955
  %v959 = vunpack.c.h.bf16 %v955
  %v960 = vpack.c.bf16 %v952, %v952
  %961 = vmatprep.subr.bf16.mxu0 %v183
  %962 = vmatpush1.bf16.msra.mxu0 %v182
  %963 = vmatprep.subr.bf16.mxu0 %v179
  %964 = vmatpush1.bf16.msra.mxu0 %v178
  %965 = vmatprep.subr.bf16.mxu0 %v175
  %966 = vmatpush1.bf16.msra.mxu0 %v174
  %967 = vmatprep.subr.bf16.mxu0 %v171
  %968 = vmatpush1.bf16.msra.mxu0 %v170
  %969 = vmatprep.subr.bf16.mxu0 %v167
  %970 = vmatpush1.bf16.msra.mxu0 %v166
  %971 = vmatprep.subr.bf16.mxu0 %v163
  %972 = vmatpush1.bf16.msra.mxu0 %v162
  %973 = vmatprep.subr.bf16.mxu0 %v159
  %974 = vmatpush1.bf16.msra.mxu0 %v158
  %975 = vmatprep.subr.bf16.mxu0 %v155
  %976 = vmatpush1.bf16.msra.mxu0 %v154
  %977 = vmatprep.subr.bf16.mxu0 0
  %978 = vmatpush2.bf16.msra.mxu0 0
  %979 = vmatprep.subr.bf16.mxu0 0
  %980 = vmatpush2.bf16.msra.mxu0 0
  %981 = vmatprep.subr.bf16.mxu0 0
  %982 = vmatpush2.bf16.msra.mxu0 0
  %983 = vmatprep.subr.bf16.mxu0 0
  %984 = vmatpush2.bf16.msra.mxu0 0
  %985 = vmatprep.subr.bf16.mxu0 0
  %986 = vmatpush2.bf16.msra.mxu0 0
  %987 = vmatprep.subr.bf16.mxu0 0
  %988 = vmatpush2.bf16.msra.mxu0 0
  %989 = vmatprep.subr.bf16.mxu0 0
  %990 = vmatpush2.bf16.msra.mxu0 0
  %991 = vmatprep.subr.bf16.mxu0 0
  %992 = vmatpush2.bf16.msra.mxu0 0
  %993 = vmatprep.mubr.bf16.mxu0 0
  %994 = vmatmul.mubr.bf16.gmra.mxu0 %v960
  %v995 = vpop.f32.mrf.mxu0
  %v996 = vadd.f32 0.0, %v995
  %v997 = vpop.f32.mrf.mxu0
  %v998 = vadd.f32 0.0, %v997
  %v999 = vpop.f32.mrf.mxu0
  %v1000 = vpop.f32.mrf.mxu0
  %1001 = vdwg.mxu0
  %1002 = vmatprep.subr.bf16.mxu0 %v185
  %1003 = vmatpush1.bf16.msra.mxu0 %v184
  %1004 = vmatprep.subr.bf16.mxu0 %v181
  %1005 = vmatpush1.bf16.msra.mxu0 %v180
  %1006 = vmatprep.subr.bf16.mxu0 %v177
  %1007 = vmatpush1.bf16.msra.mxu0 %v176
  %1008 = vmatprep.subr.bf16.mxu0 %v173
  %1009 = vmatpush1.bf16.msra.mxu0 %v172
  %1010 = vmatprep.subr.bf16.mxu0 %v169
  %1011 = vmatpush1.bf16.msra.mxu0 %v168
  %1012 = vmatprep.subr.bf16.mxu0 %v165
  %1013 = vmatpush1.bf16.msra.mxu0 %v164
  %1014 = vmatprep.subr.bf16.mxu0 %v161
  %1015 = vmatpush1.bf16.msra.mxu0 %v160
  %1016 = vmatprep.subr.bf16.mxu0 %v157
  %1017 = vmatpush1.bf16.msra.mxu0 %v156
  %1018 = vmatprep.subr.bf16.mxu0 0
  %1019 = vmatpush2.bf16.msra.mxu0 0
  %1020 = vmatprep.subr.bf16.mxu0 0
  %1021 = vmatpush2.bf16.msra.mxu0 0
  %1022 = vmatprep.subr.bf16.mxu0 0
  %1023 = vmatpush2.bf16.msra.mxu0 0
  %1024 = vmatprep.subr.bf16.mxu0 0
  %1025 = vmatpush2.bf16.msra.mxu0 0
  %1026 = vmatprep.subr.bf16.mxu0 0
  %1027 = vmatpush2.bf16.msra.mxu0 0
  %1028 = vmatprep.subr.bf16.mxu0 0
  %1029 = vmatpush2.bf16.msra.mxu0 0
  %1030 = vmatprep.subr.bf16.mxu0 0
  %1031 = vmatpush2.bf16.msra.mxu0 0
  %1032 = vmatprep.subr.bf16.mxu0 0
  %1033 = vmatpush2.bf16.msra.mxu0 0
  %1034 = vmatprep.mubr.bf16.mxu0 0
  %1035 = vmatmul.mubr.bf16.gmra.mxu0 %v960
  %v1036 = vpop.f32.mrf.mxu0
  %v1037 = vadd.f32 0.0, %v1036
  %v1038 = vpop.f32.mrf.mxu0
  %v1039 = vadd.f32 0.0, %v1038
  %v1040 = vpop.f32.mrf.mxu0
  %v1041 = vpop.f32.mrf.mxu0
  %1042 = vdwg.mxu0
  %v1043 = vadd.f32 %v956, %v996
  %v1044 = vadd.f32 %v957, %v998
  %v1045 = vadd.f32 %v958, %v1037
  %v1046 = vadd.f32 %v959, %v1039
  %v1047 = vxor.u32 %v1043, 2147483648
  %v1048 = vxor.u32 %v1044, 2147483648
  %v1049 = vxor.u32 %v1045, 2147483648
  %v1050 = vmul.f32 %v1047, 1.442695
  %v1051 = vpow.pop %v1050
  %v1052 = vmul.f32 %v1048, 1.442695
  %v1053 = vpow.pop %v1052
  %v1054 = vmul.f32 %v1049, 1.442695
  %v1055 = vpow.pop %v1054
  %v1056 = vadd.f32 %v1051, 1.0
  %v1057 = vadd.f32 %v1053, 1.0
  %v1058 = vadd.f32 %v1055, 1.0
  %v1059 = vrcp.pop %v1056
  %v1060 = vmul.f32 1.0, %v1059
  %v1061 = vrcp.pop %v1057
  %v1062 = vmul.f32 1.0, %v1061
  %v1063 = vrcp.pop %v1058
  %v1064 = vmul.f32 1.0, %v1063
  %v1065 = vtanh.pop %v1046
  %v1066 = vld [vmem:[#allocation3] sm:$0xff]
  %v1067 = vmul.f32 %v1062, %v1066
  %v1068 = vmul.f32 %v1060, %v1065
  %v1069 = vadd.f32 %v1067, %v1068
  %v1070 = vtanh.pop %v1069
  %v1071 = vmul.f32 %v1064, %v1070
  %1072 = vst [vmem:[#allocation3] sm:$0xff] %v1069
  %1073 = vst [vmem:[#allocation2] sm:$0xff] %v1071
  %s1074 = scalar_lea.vmem %s2, 48
  %1075 = vst [vmem:[%s1074] sm:$0xff] %v1071
  %v1076 = vld [vmem:[#allocation2] sm:$0xff]
  %s1077 = scalar_lea.vmem %s0, 112
  %v1078 = vld [vmem:[%s1077] sm:$0xff]
  %v1079 = vld [vmem:[%s1077 + $0x8] sm:$0xff]
  %v1080 = vunpack.c.l.bf16 %v1078
  %v1081 = vunpack.c.h.bf16 %v1078
  %v1082 = vunpack.c.l.bf16 %v1079
  %v1083 = vunpack.c.h.bf16 %v1079
  %v1084 = vpack.c.bf16 %v1076, %v1076
  %1085 = vmatprep.subr.bf16.mxu0 %v183
  %1086 = vmatpush1.bf16.msra.mxu0 %v182
  %1087 = vmatprep.subr.bf16.mxu0 %v179
  %1088 = vmatpush1.bf16.msra.mxu0 %v178
  %1089 = vmatprep.subr.bf16.mxu0 %v175
  %1090 = vmatpush1.bf16.msra.mxu0 %v174
  %1091 = vmatprep.subr.bf16.mxu0 %v171
  %1092 = vmatpush1.bf16.msra.mxu0 %v170
  %1093 = vmatprep.subr.bf16.mxu0 %v167
  %1094 = vmatpush1.bf16.msra.mxu0 %v166
  %1095 = vmatprep.subr.bf16.mxu0 %v163
  %1096 = vmatpush1.bf16.msra.mxu0 %v162
  %1097 = vmatprep.subr.bf16.mxu0 %v159
  %1098 = vmatpush1.bf16.msra.mxu0 %v158
  %1099 = vmatprep.subr.bf16.mxu0 %v155
  %1100 = vmatpush1.bf16.msra.mxu0 %v154
  %1101 = vmatprep.subr.bf16.mxu0 0
  %1102 = vmatpush2.bf16.msra.mxu0 0
  %1103 = vmatprep.subr.bf16.mxu0 0
  %1104 = vmatpush2.bf16.msra.mxu0 0
  %1105 = vmatprep.subr.bf16.mxu0 0
  %1106 = vmatpush2.bf16.msra.mxu0 0
  %1107 = vmatprep.subr.bf16.mxu0 0
  %1108 = vmatpush2.bf16.msra.mxu0 0
  %1109 = vmatprep.subr.bf16.mxu0 0
  %1110 = vmatpush2.bf16.msra.mxu0 0
  %1111 = vmatprep.subr.bf16.mxu0 0
  %1112 = vmatpush2.bf16.msra.mxu0 0
  %1113 = vmatprep.subr.bf16.mxu0 0
  %1114 = vmatpush2.bf16.msra.mxu0 0
  %1115 = vmatprep.subr.bf16.mxu0 0
  %1116 = vmatpush2.bf16.msra.mxu0 0
  %1117 = vmatprep.mubr.bf16.mxu0 0
  %1118 = vmatmul.mubr.bf16.gmra.mxu0 %v1084
  %v1119 = vpop.f32.mrf.mxu0
  %v1120 = vadd.f32 0.0, %v1119
  %v1121 = vpop.f32.mrf.mxu0
  %v1122 = vadd.f32 0.0, %v1121
  %v1123 = vpop.f32.mrf.mxu0
  %v1124 = vpop.f32.mrf.mxu0
  %1125 = vdwg.mxu0
  %1126 = vmatprep.subr.bf16.mxu0 %v185
  %1127 = vmatpush1.bf16.msra.mxu0 %v184
  %1128 = vmatprep.subr.bf16.mxu0 %v181
  %1129 = vmatpush1.bf16.msra.mxu0 %v180
  %1130 = vmatprep.subr.bf16.mxu0 %v177
  %1131 = vmatpush1.bf16.msra.mxu0 %v176
  %1132 = vmatprep.subr.bf16.mxu0 %v173
  %1133 = vmatpush1.bf16.msra.mxu0 %v172
  %1134 = vmatprep.subr.bf16.mxu0 %v169
  %1135 = vmatpush1.bf16.msra.mxu0 %v168
  %1136 = vmatprep.subr.bf16.mxu0 %v165
  %1137 = vmatpush1.bf16.msra.mxu0 %v164
  %1138 = vmatprep.subr.bf16.mxu0 %v161
  %1139 = vmatpush1.bf16.msra.mxu0 %v160
  %1140 = vmatprep.subr.bf16.mxu0 %v157
  %1141 = vmatpush1.bf16.msra.mxu0 %v156
  %1142 = vmatprep.subr.bf16.mxu0 0
  %1143 = vmatpush2.bf16.msra.mxu0 0
  %1144 = vmatprep.subr.bf16.mxu0 0
  %1145 = vmatpush2.bf16.msra.mxu0 0
  %1146 = vmatprep.subr.bf16.mxu0 0
  %1147 = vmatpush2.bf16.msra.mxu0 0
  %1148 = vmatprep.subr.bf16.mxu0 0
  %1149 = vmatpush2.bf16.msra.mxu0 0
  %1150 = vmatprep.subr.bf16.mxu0 0
  %1151 = vmatpush2.bf16.msra.mxu0 0
  %1152 = vmatprep.subr.bf16.mxu0 0
  %1153 = vmatpush2.bf16.msra.mxu0 0
  %1154 = vmatprep.subr.bf16.mxu0 0
  %1155 = vmatpush2.bf16.msra.mxu0 0
  %1156 = vmatprep.subr.bf16.mxu0 0
  %1157 = vmatpush2.bf16.msra.mxu0 0
  %1158 = vmatprep.mubr.bf16.mxu0 0
  %1159 = vmatmul.mubr.bf16.gmra.mxu0 %v1084
  %v1160 = vpop.f32.mrf.mxu0
  %v1161 = vadd.f32 0.0, %v1160
  %v1162 = vpop.f32.mrf.mxu0
  %v1163 = vadd.f32 0.0, %v1162
  %v1164 = vpop.f32.mrf.mxu0
  %v1165 = vpop.f32.mrf.mxu0
  %1166 = vdwg.mxu0
  %v1167 = vadd.f32 %v1080, %v1120
  %v1168 = vadd.f32 %v1081, %v1122
  %v1169 = vadd.f32 %v1082, %v1161
  %v1170 = vadd.f32 %v1083, %v1163
  %v1171 = vxor.u32 %v1167, 2147483648
  %v1172 = vxor.u32 %v1168, 2147483648
  %v1173 = vxor.u32 %v1169, 2147483648
  %v1174 = vmul.f32 %v1171, 1.442695
  %v1175 = vpow.pop %v1174
  %v1176 = vmul.f32 %v1172, 1.442695
  %v1177 = vpow.pop %v1176
  %v1178 = vmul.f32 %v1173, 1.442695
  %v1179 = vpow.pop %v1178
  %v1180 = vadd.f32 %v1175, 1.0
  %v1181 = vadd.f32 %v1177, 1.0
  %v1182 = vadd.f32 %v1179, 1.0
  %v1183 = vrcp.pop %v1180
  %v1184 = vmul.f32 1.0, %v1183
  %v1185 = vrcp.pop %v1181
  %v1186 = vmul.f32 1.0, %v1185
  %v1187 = vrcp.pop %v1182
  %v1188 = vmul.f32 1.0, %v1187
  %v1189 = vtanh.pop %v1170
  %v1190 = vld [vmem:[#allocation3] sm:$0xff]
  %v1191 = vmul.f32 %v1186, %v1190
  %v1192 = vmul.f32 %v1184, %v1189
  %v1193 = vadd.f32 %v1191, %v1192
  %v1194 = vtanh.pop %v1193
  %v1195 = vmul.f32 %v1188, %v1194
  %1196 = vst [vmem:[#allocation3] sm:$0xff] %v1193
  %1197 = vst [vmem:[#allocation2] sm:$0xff] %v1195
  %s1198 = scalar_lea.vmem %s2, 56
  %1199 = vst [vmem:[%s1198] sm:$0xff] %v1195
  // Predicated region
  $region14: #{seq2seq_blocks_forward.3} parent=0 // pred_check
    _
  $region15: #{seq2seq_blocks_forward.3} parent=0 // pred_check_branch
    %1201 = sbr.rel (0) target = $region17
  $region16: #{seq2seq_blocks_forward.3} parent=0 // pred_region
    _
  $region17: #{seq2seq_blocks_forward.3} parent=0 // pred_fallthru
    _
  // Predicated region
  $region18: #{seq2seq_blocks_forward.3} parent=0 // pred_check
    _
  $region19: #{seq2seq_blocks_forward.3} parent=0 // pred_check_branch
    %1203 = sbr.rel (0) target = $region21
  $region20: #{seq2seq_blocks_forward.3} parent=0 // pred_region
    _
  $region21: #{seq2seq_blocks_forward.3} parent=0 // pred_fallthru
    _

</llo_original>
